<compile_context>
chip_gen: v7x
topology: tpu7x:2x2x1
jax: 0.10.0
libtpu: 0.0.40
codegen_flags: <defaults>
</compile_context>

<pallas_src>
import math
import functools

import jax
import jax.numpy as jnp
from jax import lax
from jax.experimental import pallas as pl
from jax.experimental.pallas import tpu as pltpu

NEG_INF = -1e30    # finite "-inf": avoids inf-inf NaNs in the online softmax


@functools.lru_cache(maxsize=None)
def _vmem_limit_bytes():
    """Generation-aware scoped-VMEM budget: ~85% of physical VMEM per TensorCore."""
    cap = 128 * 1024 * 1024
    try:
        info = pltpu.get_tpu_info()
        cap = int(getattr(info, "vmem_capacity_bytes", cap) or cap)
    except Exception:
        pass
    return int(cap * 0.85)


def _pick_tile(pref, dim, quantum):
    """Largest tile <= pref that divides dim and is a multiple of quantum."""
    if dim % quantum != 0:
        return dim                               # full-extent block is always legal
    t = max(quantum, (min(pref, dim) // quantum) * quantum)
    while dim % t:
        t -= quantum
    return t


# ---------------------------------------------------------------------------
# Kernel 1: tiled dense projection  y = x @ w_t
# ---------------------------------------------------------------------------
def _matmul_kernel(x_ref, w_ref, o_ref, acc_ref):
    @pl.when(pl.program_id(2) == 0)
    def _init():
        acc_ref[...] = jnp.zeros_like(acc_ref)

    acc_ref[...] += jnp.dot(x_ref[...], w_ref[...],
                            preferred_element_type=jnp.float32)

    @pl.when(pl.program_id(2) == pl.num_programs(2) - 1)
    def _finalize():
        o_ref[...] = acc_ref[...].astype(o_ref.dtype)


def linear(x, w_t, *, out_dtype=jnp.float32, tm=512, tn=512, tk=512):
    """x: (M, K), w_t: (K, N) -> (M, N). Tiled, pipelined, f32 accumulation."""
    M, K = x.shape
    K2, N = w_t.shape
    assert K == K2
    tm = _pick_tile(tm, M, 8)
    tn = _pick_tile(tn, N, 128)
    tk = _pick_tile(tk, K, 128)
    assert M % tm == 0 and N % tn == 0 and K % tk == 0
    grid = (M // tm, N // tn, K // tk)
    return pl.pallas_call(
        _matmul_kernel,
        out_shape=jax.ShapeDtypeStruct((M, N), out_dtype),
        grid_spec=pltpu.PrefetchScalarGridSpec(
            num_scalar_prefetch=0,
            grid=grid,
            in_specs=[
                pl.BlockSpec((tm, tk), lambda i, j, k: (i, k)),
                pl.BlockSpec((tk, tn), lambda i, j, k: (k, j)),
            ],
            out_specs=pl.BlockSpec((tm, tn), lambda i, j, k: (i, j)),
            scratch_shapes=[pltpu.VMEM((tm, tn), jnp.float32)],
        ),
        compiler_params=pltpu.CompilerParams(
            dimension_semantics=("parallel", "parallel", "arbitrary"),
            vmem_limit_bytes=_vmem_limit_bytes(),
        ),
    )(x, w_t)


# ---------------------------------------------------------------------------
# Kernel 2: projection with RoPE fused into the finalize epilogue.
# rotate_half(t)*sin == pltpu.roll(t, d/2)*sin_signed  with sin_signed = [-s, s].
# The softmax scale for Q is pre-folded into its cos/sin tables.
# ---------------------------------------------------------------------------
def _matmul_rope_kernel(x_ref, w_ref, cos_ref, sin_ref, o_ref, acc_ref, *, d_head):
    @pl.when(pl.program_id(2) == 0)
    def _init():
        acc_ref[...] = jnp.zeros_like(acc_ref)

    acc_ref[...] += jnp.dot(x_ref[...], w_ref[...],
                            preferred_element_type=jnp.float32)

    @pl.when(pl.program_id(2) == pl.num_programs(2) - 1)
    def _finalize():
        cos = cos_ref[...]                       # (tm, d_head) f32
        sin = sin_ref[...]                       # (tm, d_head) f32, sign baked in
        half = d_head // 2
        n_heads_in_tile = acc_ref.shape[1] // d_head
        for g in range(n_heads_in_tile):
            t = acc_ref[:, g * d_head:(g + 1) * d_head]        # (tm, d_head) f32
            rot = pltpu.roll(t, shift=half, axis=1)            # XLU lane rotate
            o_ref[:, g * d_head:(g + 1) * d_head] = (
                t * cos + rot * sin).astype(o_ref.dtype)


def linear_rope(x, w_t, cos, sin_signed, *, d_head, seq_len,
                out_dtype=jnp.bfloat16, tm=512, tn=512, tk=512):
    """Projection fused with rotary embedding applied to every d_head-wide head slice."""
    M, K = x.shape
    K2, N = w_t.shape
    assert K == K2 and N % d_head == 0
    lane_q = (128 * d_head) // math.gcd(128, d_head)   # tn multiple of 128 AND d_head
    tm = _pick_tile(tm, seq_len, 8)                    # rows are (batch*seq), seq minor
    tn = _pick_tile(tn, N, lane_q)
    tk = _pick_tile(tk, K, 128)
    assert M % tm == 0 and N % tn == 0 and K % tk == 0 and seq_len % tm == 0
    n_pos_blocks = seq_len // tm
    grid = (M // tm, N // tn, K // tk)
    kernel = functools.partial(_matmul_rope_kernel, d_head=d_head)
    return pl.pallas_call(
        kernel,
        out_shape=jax.ShapeDtypeStruct((M, N), out_dtype),
        grid_spec=pltpu.PrefetchScalarGridSpec(
            num_scalar_prefetch=0,
            grid=grid,
            in_specs=[
                pl.BlockSpec((tm, tk), lambda i, j, k: (i, k)),
                pl.BlockSpec((tk, tn), lambda i, j, k: (k, j)),
                pl.BlockSpec((tm, d_head), lambda i, j, k: (i % n_pos_blocks, 0)),
                pl.BlockSpec((tm, d_head), lambda i, j, k: (i % n_pos_blocks, 0)),
            ],
            out_specs=pl.BlockSpec((tm, tn), lambda i, j, k: (i, j)),
            scratch_shapes=[pltpu.VMEM((tm, tn), jnp.float32)],
        ),
        compiler_params=pltpu.CompilerParams(
            dimension_semantics=("parallel", "parallel", "arbitrary"),
            vmem_limit_bytes=_vmem_limit_bytes(),
        ),
    )(x, w_t, cos, sin_signed)


# ---------------------------------------------------------------------------
# Kernel 3: flash-style GQA attention (online softmax, causal DMA clamp +
#           block skip, whole GQA group handled per grid step so K/V are reused).
# ---------------------------------------------------------------------------
def _flash_gqa_kernel(q_ref, k_ref, v_ref, o_ref, m_ref, l_ref, acc_ref,
                      *, group, d_head, block_q, block_k):
    qi = pl.program_id(2)
    ki = pl.program_id(3)
    q_start = qi * block_q
    kv_start = ki * block_k

    @pl.when(ki == 0)
    def _init():
        m_ref[...] = jnp.full_like(m_ref, NEG_INF)
        l_ref[...] = jnp.zeros_like(l_ref)
        acc_ref[...] = jnp.zeros_like(acc_ref)

    def _process(masked):
        # one XLU transpose per kv tile, reused by every head in the GQA group
        k_tt = k_ref[0].T                                   # (d_head, block_k) bf16
        v_t = v_ref[0]                                      # (block_k, d_head) bf16

        if masked:   # only the diagonal branch pays for iota / compare / select
            q_pos = q_start + lax.broadcasted_iota(jnp.int32, (block_q, block_k), 0)
            k_pos = kv_start + lax.broadcasted_iota(jnp.int32, (block_q, block_k), 1)
            allowed = k_pos <= q_pos

        # TODO(synk): for large GQA groups (>=4) switch this static unroll to a
        #             bounded lax.fori_loop with pl.ds head slices to cap vreg pressure.
        for g in range(group):
            qg = q_ref[0, :, g * d_head:(g + 1) * d_head]    # (bq, d) bf16, RoPE+scale done
            s = jnp.dot(qg, k_tt, preferred_element_type=jnp.float32)   # (bq, bk) f32
            if masked:
                s = jnp.where(allowed, s, NEG_INF)

            m_prev = m_ref[:, g:g + 1]
            l_prev = l_ref[:, g:g + 1]
            m_new = jnp.maximum(m_prev, jnp.max(s, axis=-1, keepdims=True))
            alpha = jnp.exp(m_prev - m_new)
            p = jnp.exp(s - m_new)
            l_ref[:, g:g + 1] = alpha * l_prev + jnp.sum(p, axis=-1, keepdims=True)
            acc_ref[:, g * d_head:(g + 1) * d_head] = (
                alpha * acc_ref[:, g * d_head:(g + 1) * d_head]
                + jnp.dot(p.astype(v_t.dtype), v_t, preferred_element_type=jnp.float32))
            m_ref[:, g:g + 1] = m_new

    # interior tile: every (q, k) pair in it is causally allowed -> no mask work
    fully_inside = kv_start + block_k - 1 <= q_start
    # diagonal tile: straddles the causal boundary -> masked path
    on_diagonal = jnp.logical_and(kv_start <= q_start + block_q - 1,
                                  jnp.logical_not(fully_inside))
    # (tiles entirely above the diagonal fall through: no compute, and the
    #  clamped K/V index_maps mean they also issued no DMA)

    @pl.when(fully_inside)
    def _interior():
        _process(masked=False)

    @pl.when(on_diagonal)
    def _diagonal():
        _process(masked=True)

    @pl.when(ki == pl.num_programs(3) - 1)
    def _finalize():
        # exact reciprocal: runs once per q tile, negligible cost, tighter parity
        inv_l = pl.reciprocal(l_ref[...], approx=False)
        for g in range(group):
            o_ref[0, :, g * d_head:(g + 1) * d_head] = (
                acc_ref[:, g * d_head:(g + 1) * d_head] * inv_l[:, g:g + 1]
            ).astype(o_ref.dtype)


def flash_gqa_attention(q, k, v, *, n_kv_head, group, d_head, block_q=128, block_k=256):
    """q: (B,S,n_head*d_head), k/v: (B,S,n_kv_head*d_head) -> (B,S,n_head*d_head) (bf16)."""
    B, S, _ = q.shape
    block_q, block_k = min(block_q, S), min(block_k, S)
    assert S % block_q == 0 and S % block_k == 0
    gd = group * d_head
    # TODO(synk): support d_head that is not a multiple of 128 (needs a padded /
    #             packed head layout so K/V head slices stay lane-aligned).
    assert (d_head % 128 == 0) or (n_kv_head == 1)

    def q_map(b, h, qi, ki):
        return (b, qi, h)

    def kv_map(b, h, qi, ki):
        # Clamp above-diagonal kv tiles to the last causally-needed block so the
        # pipeline aliases the already-resident block and issues no DMA for them.
        last_needed = (qi * block_q + block_q - 1) // block_k
        return (b, jnp.minimum(ki, last_needed), h)

    kernel = functools.partial(_flash_gqa_kernel, group=group, d_head=d_head,
                               block_q=block_q, block_k=block_k)
    grid = (B, n_kv_head, S // block_q, S // block_k)
    return pl.pallas_call(
        kernel,
        out_shape=jax.ShapeDtypeStruct((B, S, n_kv_head * gd), jnp.bfloat16),
        grid_spec=pltpu.PrefetchScalarGridSpec(
            num_scalar_prefetch=0,
            grid=grid,
            in_specs=[
                pl.BlockSpec((1, block_q, gd), q_map),
                pl.BlockSpec((1, block_k, d_head), kv_map),
                pl.BlockSpec((1, block_k, d_head), kv_map),
            ],
            out_specs=pl.BlockSpec((1, block_q, gd), q_map),
            scratch_shapes=[
                pltpu.VMEM((block_q, group), jnp.float32),   # running max  m
                pltpu.VMEM((block_q, group), jnp.float32),   # running sum  l
                pltpu.VMEM((block_q, gd), jnp.float32),      # running context
            ],
        ),
        compiler_params=pltpu.CompilerParams(
            dimension_semantics=("parallel", "parallel", "parallel", "arbitrary"),
            vmem_limit_bytes=_vmem_limit_bytes(),
        ),
    )(q, k, v)


# ---------------------------------------------------------------------------
# Module wrapper (parameter setup + glue; reshapes only, no HBM transposes)
# ---------------------------------------------------------------------------
def make_params(key, d_model, n_head, n_kv_head, d_head):
    k1, k2, k3, k4 = jax.random.split(key, 4)
    std = 0.02
    # stored transposed (in, out) so kernels compute x @ W_t (== nn.Linear, no bias)
    return {
        "q": jax.random.normal(k1, (d_model, n_head * d_head), jnp.float32) * std,
        "k": jax.random.normal(k2, (d_model, n_kv_head * d_head), jnp.float32) * std,
        "v": jax.random.normal(k3, (d_model, n_kv_head * d_head), jnp.float32) * std,
        "o": jax.random.normal(k4, (n_head * d_head, d_model), jnp.float32) * std,
    }


def rotary_tables(seq_len, d_head):
    inv_freq = 1.0 / (10000.0 ** (jnp.arange(0, d_head, 2, dtype=jnp.float32) / d_head))
    t = jnp.arange(seq_len, dtype=jnp.float32)
    freqs = jnp.einsum("i,j->ij", t, inv_freq)          # (S, d_head/2)
    emb = jnp.concatenate([freqs, freqs], axis=-1)      # (S, d_head)
    return jnp.cos(emb), jnp.sin(emb)


def grouped_query_attention(params, x, n_head, n_kv_head, d_head):
    # TODO(synk): a user-supplied (non-causal) attention_mask is not supported;
    #             only the module's default causal-mask path is implemented.
    # TODO(synk): the Q/K/V projections could be fused into one pallas_call over a
    #             concatenated weight to read x from HBM once (memory-bound cases).
    B, S, D = x.shape
    assert n_head % n_kv_head == 0
    group = n_head // n_kv_head
    scale = 1.0 / math.sqrt(d_head)
    half = d_head // 2

    cos, sin = rotary_tables(S, d_head)
    # bake rotate_half's sign into sin: rotate_half(t)*sin == roll(t, d/2)*sin_signed
    sign = jnp.concatenate([-jnp.ones((1, half), jnp.float32),
                            jnp.ones((1, half), jnp.float32)], axis=-1)
    sin_signed = sin * sign

    # bf16 inputs for the MXU; all accumulation stays f32 inside the kernels.
    x2d = x.reshape(B * S, D).astype(jnp.bfloat16)
    wq = params["q"].astype(jnp.bfloat16)
    wk = params["k"].astype(jnp.bfloat16)
    wv = params["v"].astype(jnp.bfloat16)
    wo = params["o"].astype(jnp.bfloat16)

    # Q/K projections with fused RoPE; softmax scale folded into Q's cos/sin tables.
    q = linear_rope(x2d, wq, cos * scale, sin_signed * scale,
                    d_head=d_head, seq_len=S, out_dtype=jnp.bfloat16)
    k = linear_rope(x2d, wk, cos, sin_signed,
                    d_head=d_head, seq_len=S, out_dtype=jnp.bfloat16)
    v = linear(x2d, wv, out_dtype=jnp.bfloat16)

    q = q.reshape(B, S, n_head * d_head)
    k = k.reshape(B, S, n_kv_head * d_head)
    v = v.reshape(B, S, n_kv_head * d_head)

    ctx = flash_gqa_attention(q, k, v, n_kv_head=n_kv_head, group=group, d_head=d_head)
    out = linear(ctx.reshape(B * S, n_head * d_head), wo, out_dtype=jnp.float32)
    return out.reshape(B, S, D)


# ---------------------------------------------------------------------------
# Pure-JAX f32 reference (mirrors the PyTorch forward) for correctness checking
# ---------------------------------------------------------------------------
def reference(params, x, n_head, n_kv_head, d_head):
    B, S, D = x.shape
    scale = 1.0 / math.sqrt(d_head)
    q = (x @ params["q"]).reshape(B, S, n_head, d_head).transpose(0, 2, 1, 3)
    k = (x @ params["k"]).reshape(B, S, n_kv_head, d_head).transpose(0, 2, 1, 3)
    v = (x @ params["v"]).reshape(B, S, n_kv_head, d_head).transpose(0, 2, 1, 3)
    cos, sin = rotary_tables(S, d_head)
    cos = cos[None, None]
    sin = sin[None, None]

    def rope(t):
        h = d_head // 2
        rot = jnp.concatenate([-t[..., h:], t[..., :h]], axis=-1)
        return t * cos + rot * sin

    q, k = rope(q), rope(k)
    g = n_head // n_kv_head
    k = jnp.repeat(k, g, axis=1)
    v = jnp.repeat(v, g, axis=1)
    scores = jnp.einsum("bhqd,bhkd->bhqk", q, k) * scale
    mask = jnp.triu(jnp.ones((S, S), bool), k=1)
    scores = jnp.where(mask[None, None], -jnp.inf, scores)
    probs = jax.nn.softmax(scores, axis=-1)
    ctx = jnp.einsum("bhqk,bhkd->bhqd", probs, v)
    ctx = ctx.transpose(0, 2, 1, 3).reshape(B, S, n_head * d_head)
    return ctx @ params["o"]


if __name__ == "__main__":
    # Small but tile-aligned shapes: d_head=128 keeps every lane dim a multiple of
    # 128; seq=512 with block_q=128 / block_k=256 exercises multi-block online
    # softmax, the interior/diagonal branch split, the above-diagonal skip and the
    # causal DMA clamp.
    batch, seq, d_model = 2, 512, 256
    n_head, n_kv_head, d_head = 4, 2, 128

    key = jax.random.PRNGKey(0)
    kx, kp = jax.random.split(key)
    x = jax.random.normal(kx, (batch, seq, d_model), jnp.float32)
    params = make_params(kp, d_model, n_head, n_kv_head, d_head)

    out = grouped_query_attention(params, x, n_head, n_kv_head, d_head)
    out = jax.block_until_ready(out)
    assert out.shape == (batch, seq, d_model)
    assert bool(jnp.all(jnp.isfinite(out)))

    ref = reference(params, x, n_head, n_kv_head, d_head)
    rel_err = float(jnp.max(jnp.abs(out - ref)) / (jnp.max(jnp.abs(ref)) + 1e-6))
    assert rel_err < 3e-2, f"mismatch vs f32 reference: rel_err={rel_err}"

    print("KERNEL_OK")
</pallas_src>

<mosaic_0001>
module attributes {stable_mosaic.version = 11 : i64} {
  func.func @_matmul_rope_kernel(%arg0: i32, %arg1: i32, %arg2: i32, %arg3: memref<512x256xbf16, #tpu.memory_space<vmem>>, %arg4: memref<256x512xbf16, #tpu.memory_space<vmem>>, %arg5: memref<512x128xf32, #tpu.memory_space<vmem>>, %arg6: memref<512x128xf32, #tpu.memory_space<vmem>>, %arg7: memref<512x512xbf16, #tpu.memory_space<vmem>>, %arg8: memref<512x512xf32, #tpu.memory_space<vmem>>) attributes {dimension_semantics = [#tpu.dimension_semantics<parallel>, #tpu.dimension_semantics<parallel>, #tpu.dimension_semantics<arbitrary>], iteration_bounds = array<i64: 2, 1, 1>, scalar_prefetch = 0 : i64, scratch_operands = 1 : i64, tpu.core_type = #tpu.core_type<tc>, window_params = [{transform_indices = @transform_0, window_bounds = array<i64: 512, 256>}, {transform_indices = @transform_1, window_bounds = array<i64: 256, 512>}, {transform_indices = @transform_2, window_bounds = array<i64: 512, 128>}, {transform_indices = @transform_3, window_bounds = array<i64: 512, 128>}, {transform_indices = @transform_4, window_bounds = array<i64: 512, 512>}]} {
    %c0_i32 = arith.constant 0 : i32
    %0 = arith.cmpi eq, %arg2, %c0_i32 : i32
    %1 = arith.extui %0 : i1 to i32
    %c0_i32_0 = arith.constant 0 : i32
    %2 = arith.cmpi ne, %1, %c0_i32_0 : i32
    scf.if %2 {
      %cst_10 = arith.constant 0.000000e+00 : f32
      %12 = vector.broadcast %cst_10 : f32 to vector<512x512xf32>
      %c0_11 = arith.constant 0 : index
      %c0_12 = arith.constant 0 : index
      %13 = vector.load %arg8[%c0_11, %c0_12] : memref<512x512xf32, #tpu.memory_space<vmem>>, vector<512x512xf32>
      tpu.vector_store %arg8[%c0_11, %c0_12], %12 {strides = array<i32>} : memref<512x512xf32, #tpu.memory_space<vmem>>, vector<512x512xf32>,
    } else {
    }
    %c0 = arith.constant 0 : index
    %c0_1 = arith.constant 0 : index
    %3 = vector.load %arg8[%c0, %c0_1] : memref<512x512xf32, #tpu.memory_space<vmem>>, vector<512x512xf32>
    %c0_2 = arith.constant 0 : index
    %c0_3 = arith.constant 0 : index
    %4 = vector.load %arg3[%c0_2, %c0_3] : memref<512x256xbf16, #tpu.memory_space<vmem>>, vector<512x256xbf16>
    %c0_4 = arith.constant 0 : index
    %c0_5 = arith.constant 0 : index
    %5 = vector.load %arg4[%c0_4, %c0_5] : memref<256x512xbf16, #tpu.memory_space<vmem>>, vector<256x512xbf16>
    %cst = arith.constant dense<0.000000e+00> : vector<512x512xf32>
    %6 = tpu.matmul %4, %5, %cst {dimension_numbers = #tpu.dot_dimension_numbers<[1], [0], [0], [1], [0, 0, 1, 1], [], []>} : vector<512x256xbf16>, vector<256x512xbf16>, vector<512x512xf32> -> vector<512x512xf32>
    %7 = arith.addf %3, %6 : vector<512x512xf32>
    %c0_6 = arith.constant 0 : index
    %c0_7 = arith.constant 0 : index
    %8 = vector.load %arg8[%c0_6, %c0_7] : memref<512x512xf32, #tpu.memory_space<vmem>>, vector<512x512xf32>
    tpu.vector_store %arg8[%c0_6, %c0_7], %7 {strides = array<i32>} : memref<512x512xf32, #tpu.memory_space<vmem>>, vector<512x512xf32>,
    %c0_i32_8 = arith.constant 0 : i32
    %9 = arith.cmpi eq, %arg2, %c0_i32_8 : i32
    %10 = arith.extui %9 : i1 to i32
    %c0_i32_9 = arith.constant 0 : i32
    %11 = arith.cmpi ne, %10, %c0_i32_9 : i32
    scf.if %11 {
      %c0_10 = arith.constant 0 : index
      %c0_11 = arith.constant 0 : index
      %12 = vector.load %arg5[%c0_10, %c0_11] : memref<512x128xf32, #tpu.memory_space<vmem>>, vector<512x128xf32>
      %c0_12 = arith.constant 0 : index
      %c0_13 = arith.constant 0 : index
      %13 = vector.load %arg6[%c0_12, %c0_13] : memref<512x128xf32, #tpu.memory_space<vmem>>, vector<512x128xf32>
      %c0_14 = arith.constant 0 : index
      %c0_15 = arith.constant 0 : index
      %14 = vector.load %arg8[%c0_14, %c0_15] : memref<512x512xf32, #tpu.memory_space<vmem>>, vector<512x128xf32>
      %c64_i32 = arith.constant 64 : i32
      %15 = tpu.dynamic_rotate %14 by %c64_i32 dim 1 : vector<512x128xf32>, i32 -> vector<512x128xf32>
      %16 = arith.mulf %14, %12 : vector<512x128xf32>
      %17 = arith.mulf %15, %13 : vector<512x128xf32>
      %18 = arith.addf %16, %17 : vector<512x128xf32>
      %19 = arith.truncf %18 : vector<512x128xf32> to vector<512x128xbf16>
      %c0_16 = arith.constant 0 : index
      %c0_17 = arith.constant 0 : index
      %20 = vector.load %arg7[%c0_16, %c0_17] : memref<512x512xbf16, #tpu.memory_space<vmem>>, vector<512x128xbf16>
      tpu.vector_store %arg7[%c0_16, %c0_17], %19 {strides = array<i32>} : memref<512x512xbf16, #tpu.memory_space<vmem>>, vector<512x128xbf16>,
      %c0_18 = arith.constant 0 : index
      %c128 = arith.constant 128 : index
      %21 = vector.load %arg8[%c0_18, %c128] : memref<512x512xf32, #tpu.memory_space<vmem>>, vector<512x128xf32>
      %c64_i32_19 = arith.constant 64 : i32
      %22 = tpu.dynamic_rotate %21 by %c64_i32_19 dim 1 : vector<512x128xf32>, i32 -> vector<512x128xf32>
      %23 = arith.mulf %21, %12 : vector<512x128xf32>
      %24 = arith.mulf %22, %13 : vector<512x128xf32>
      %25 = arith.addf %23, %24 : vector<512x128xf32>
      %26 = arith.truncf %25 : vector<512x128xf32> to vector<512x128xbf16>
      %c0_20 = arith.constant 0 : index
      %c128_21 = arith.constant 128 : index
      %27 = vector.load %arg7[%c0_20, %c128_21] : memref<512x512xbf16, #tpu.memory_space<vmem>>, vector<512x128xbf16>
      tpu.vector_store %arg7[%c0_20, %c128_21], %26 {strides = array<i32>} : memref<512x512xbf16, #tpu.memory_space<vmem>>, vector<512x128xbf16>,
      %c0_22 = arith.constant 0 : index
      %c256 = arith.constant 256 : index
      %28 = vector.load %arg8[%c0_22, %c256] : memref<512x512xf32, #tpu.memory_space<vmem>>, vector<512x128xf32>
      %c64_i32_23 = arith.constant 64 : i32
      %29 = tpu.dynamic_rotate %28 by %c64_i32_23 dim 1 : vector<512x128xf32>, i32 -> vector<512x128xf32>
      %30 = arith.mulf %28, %12 : vector<512x128xf32>
      %31 = arith.mulf %29, %13 : vector<512x128xf32>
      %32 = arith.addf %30, %31 : vector<512x128xf32>
      %33 = arith.truncf %32 : vector<512x128xf32> to vector<512x128xbf16>
      %c0_24 = arith.constant 0 : index
      %c256_25 = arith.constant 256 : index
      %34 = vector.load %arg7[%c0_24, %c256_25] : memref<512x512xbf16, #tpu.memory_space<vmem>>, vector<512x128xbf16>
      tpu.vector_store %arg7[%c0_24, %c256_25], %33 {strides = array<i32>} : memref<512x512xbf16, #tpu.memory_space<vmem>>, vector<512x128xbf16>,
      %c0_26 = arith.constant 0 : index
      %c384 = arith.constant 384 : index
      %35 = vector.load %arg8[%c0_26, %c384] : memref<512x512xf32, #tpu.memory_space<vmem>>, vector<512x128xf32>
      %c64_i32_27 = arith.constant 64 : i32
      %36 = tpu.dynamic_rotate %35 by %c64_i32_27 dim 1 : vector<512x128xf32>, i32 -> vector<512x128xf32>
      %37 = arith.mulf %35, %12 : vector<512x128xf32>
      %38 = arith.mulf %36, %13 : vector<512x128xf32>
      %39 = arith.addf %37, %38 : vector<512x128xf32>
      %40 = arith.truncf %39 : vector<512x128xf32> to vector<512x128xbf16>
      %c0_28 = arith.constant 0 : index
      %c384_29 = arith.constant 384 : index
      %41 = vector.load %arg7[%c0_28, %c384_29] : memref<512x512xbf16, #tpu.memory_space<vmem>>, vector<512x128xbf16>
      tpu.vector_store %arg7[%c0_28, %c384_29], %40 {strides = array<i32>} : memref<512x512xbf16, #tpu.memory_space<vmem>>, vector<512x128xbf16>,
    } else {
    }
    return
  }
  func.func @transform_0(%arg0: i32, %arg1: i32, %arg2: i32) -> (i32, i32) {
    %c0_i32 = arith.constant 0 : i32
    return %arg0, %arg2 : i32, i32
  }
  func.func @transform_1(%arg0: i32, %arg1: i32, %arg2: i32) -> (i32, i32) {
    %c0_i32 = arith.constant 0 : i32
    return %arg2, %arg1 : i32, i32
  }
  func.func @transform_2(%arg0: i32, %arg1: i32, %arg2: i32) -> (i32, i32) {
    %c1_i32 = arith.constant 1 : i32
    %c0_i32 = arith.constant 0 : i32
    %0 = arith.cmpi eq, %c1_i32, %c0_i32 : i32
    %c1_i32_0 = arith.constant 1 : i32
    %1 = arith.select %0, %c1_i32_0, %c1_i32 : i32
    %2 = arith.remsi %arg0, %1 : i32
    %c0_i32_1 = arith.constant 0 : i32
    %3 = arith.cmpi ne, %2, %c0_i32_1 : i32
    %c0_i32_2 = arith.constant 0 : i32
    %4 = arith.cmpi slt, %2, %c0_i32_2 : i32
    %c0_i32_3 = arith.constant 0 : i32
    %5 = arith.cmpi slt, %1, %c0_i32_3 : i32
    %6 = arith.xori %4, %5 : i1
    %7 = arith.andi %6, %3 : i1
    %8 = arith.addi %2, %1 : i32
    %9 = arith.select %7, %8, %2 : i32
    %c0_i32_4 = arith.constant 0 : i32
    %c0_i32_5 = arith.constant 0 : i32
    return %9, %c0_i32_4 : i32, i32
  }
  func.func @transform_3(%arg0: i32, %arg1: i32, %arg2: i32) -> (i32, i32) {
    %c1_i32 = arith.constant 1 : i32
    %c0_i32 = arith.constant 0 : i32
    %0 = arith.cmpi eq, %c1_i32, %c0_i32 : i32
    %c1_i32_0 = arith.constant 1 : i32
    %1 = arith.select %0, %c1_i32_0, %c1_i32 : i32
    %2 = arith.remsi %arg0, %1 : i32
    %c0_i32_1 = arith.constant 0 : i32
    %3 = arith.cmpi ne, %2, %c0_i32_1 : i32
    %c0_i32_2 = arith.constant 0 : i32
    %4 = arith.cmpi slt, %2, %c0_i32_2 : i32
    %c0_i32_3 = arith.constant 0 : i32
    %5 = arith.cmpi slt, %1, %c0_i32_3 : i32
    %6 = arith.xori %4, %5 : i1
    %7 = arith.andi %6, %3 : i1
    %8 = arith.addi %2, %1 : i32
    %9 = arith.select %7, %8, %2 : i32
    %c0_i32_4 = arith.constant 0 : i32
    %c0_i32_5 = arith.constant 0 : i32
    return %9, %c0_i32_4 : i32, i32
  }
  func.func @transform_4(%arg0: i32, %arg1: i32, %arg2: i32) -> (i32, i32) {
    %c0_i32 = arith.constant 0 : i32
    return %arg0, %arg1 : i32, i32
  }
}

</mosaic_0001>

<llo_original>
// kernel: tpu_custom_call.1
$region0: #{tpu_custom_call.1}
  #allocation0 [shape = 'u32[]', space=smem, size = 0x4, offset = 0x4, fixed_abs, tag = 'smem constant byte address 0x4 - core index']
  #allocation1 [shape = 'u32[144,128]{1,0:T(1,128)}', space=vmem, size = 0x12000, scoped, tag = 'internal scratch']
  #allocation2 [shape = 'f32[512,512]{1,0:T(8,128)}', space=vmem, size = 0x100000, scoped, tag = 'scratch operand']
  %s0 = inlined_call_operand.hbm [shape: bf16[1024,256], index: 0, kind: input, shape index: {}]
  %s1 = inlined_call_operand.hbm [shape: bf16[256,512], index: 1, kind: input, shape index: {}]
  %s2 = inlined_call_operand.hbm [shape: f32[512,128], index: 2, kind: input, shape index: {}]
  %s3 = inlined_call_operand.hbm [shape: f32[512,128], index: 3, kind: input, shape index: {}]
  %s4 = inlined_call_operand.hbm [shape: bf16[1024,512], index: 4, kind: output, shape index: {}]
  %s5 = sld [smem:[#allocation0]]
  $region73: #{tpu_custom_call.1} parent=0
    _
  %s7 = ssub.s32 1, %s5
  %s8 = scalar_select 0, %s7, %s5
  $region1: #{tpu_custom_call.1} parent=0
    #allocation3 [shape = 'u8[524288]{0}', space=vmem, size = 0x80000, scoped, tag = 'input window, operand 0']
    #allocation4 [shape = 's32[2]{0}', space=sflag, size = 0x8, scoped, tag = 'scoped memory for tpu_custom_call.1']
    #allocation5 [shape = 's32[2]{0}', space=sflag, size = 0x8, scoped, tag = 'scoped memory for tpu_custom_call.1']
    #allocation6 [shape = 'u8[262144]{0}', space=vmem, size = 0x40000, scoped, tag = 'input window, operand 1, single buffered']
    #allocation7 [shape = 's32[1]{0}', space=sflag, size = 0x4, scoped, tag = 'scoped memory for tpu_custom_call.1']
    #allocation8 [shape = 'u8[262144]{0}', space=vmem, size = 0x40000, scoped, tag = 'input window, operand 2, single buffered']
    #allocation9 [shape = 'u8[262144]{0}', space=vmem, size = 0x40000, scoped, tag = 'input window, operand 3, single buffered']
    #allocation10 [shape = 's32[1]{0}', space=sflag, size = 0x4, scoped, tag = 'scoped memory for tpu_custom_call.1']
    #allocation11 [shape = 'u8[1048576]{0}', space=vmem, size = 0x100000, scoped, tag = 'output window, operand 0']
    %9 = vsyncpa [#allocation4], 0
    %s10 = scalar_lea.sflag [#allocation4], 1
    %11 = vsyncpa %s10, 0
    %12 = vsyncpa [#allocation7], 0
    %13 = vsyncpa [#allocation10], 0
    %14 = vsyncpa [#allocation5], 0
    %s15 = scalar_lea.sflag [#allocation5], 1
    %16 = vsyncpa %s15, 0
    loop: start=0, step=1, limit=4
    $region2: #{tpu_custom_call.1} parent=1 // loop_pre_header
      _
    $region3: #{tpu_custom_call.1} parent=1 // loop_header
      %s18 = sphi 0, %s22
      %p19 = scmp.ge.s32.totalorder %s18, 4
      %s25 = sphi 0, %s44
      %s26 = sphi 0, %s40
      %s27 = sphi 0, %s36
      %s28 = sphi 0, %s25
      %s29 = sphi 0, %s26
      %s30 = sphi 0, %s27
      %s31 = sphi 0, %s28
      %s32 = sphi 0, %s29
      %s33 = sphi 0, %s30
      %s49 = sphi 0, %s51
      %s52 = sphi 0, %s49
      %s53 = sphi 0, %s52
      %s69 = sphi 0, %s53
      %s77 = sphi 0, %s79
      %s80 = sphi 0, %s77
      %s81 = sphi 0, %s80
      %s97 = sphi 0, %s81
      %s101 = sphi 0, %s101
      %s103 = sphi 0, %s101
      %s104 = sphi 0, %s103
      %s118 = sphi 0, %s104
      %s122 = sphi 0, %s122
      %s124 = sphi 0, %s122
      %s125 = sphi 0, %s124
      %s139 = sphi 0, %s125
      %s147 = sphi 0, %s149
      %s150 = sphi 0, %s147
      %s151 = sphi 0, %s150
      %s167 = sphi 0, %s151
    $region4: #{tpu_custom_call.1} parent=1 // loop_header_branch
      %21 = sbr.rel (%p19) target = $region8
    $region5: #{tpu_custom_call.1} parent=1 // loop_body
      %s23 = ssub.s32 %s18, 1
      %s24 = ssub.s32 %s18, 2
      %s34 = sadd.s32 1, %s27
      %p35 = scmp.ge.s32.totalorder %s34, 1
      %s36 = scalar_select %p35, 0, %s34
      %s37 = sadd.s32 1, %s26
      %s38 = scalar_select %p35, %s37, %s26
      %p39 = scmp.ge.s32.totalorder %s38, 1
      %s40 = scalar_select %p39, 0, %s38
      %s41 = sadd.s32 1, %s25
      %s42 = scalar_select %p39, %s41, %s25
      %p43 = scmp.ge.s32.totalorder %s42, 2
      %s44 = scalar_select %p43, 0, %s42
      %s45 = ssub.s32 %s25, %s44
      %s46 = ssub.s32 %s27, %s36
      %s47 = sor.u32 %s45, %s46
      %p48 = scmp.eq.s32.totalorder %s47, 0
      %s50 = sadd.s32 %s49, 1
      %s51 = scalar_select %p48, %s49, %s50
      %p54 = pneg %p48
      %p55 = scmp.eq.s32.totalorder %s18, 1
      %p56 = por %p54, %p55
      %p57 = scmp.ne.s32.totalorder %s49, %s52
      %p58 = scmp.eq.s32.totalorder %s18, 0
      %p59 = por %p57, %p58
      %p60 = scmp.ne.s32.totalorder %s49, %s52
      %p61 = scmp.eq.s32.totalorder %s23, 1
      %p62 = por %p60, %p61
      %p63 = scmp.ne.s32.totalorder %s52, %s53
      %p64 = scmp.eq.s32.totalorder %s23, 0
      %p65 = por %p63, %p64
      %p66 = scmp.ne.s32.totalorder %s52, %s53
      %p67 = scmp.eq.s32.totalorder %s24, 1
      %p68 = por %p66, %p67
      %p70 = scmp.ne.s32.totalorder %s53, %s69
      %p71 = scmp.eq.s32.totalorder %s24, 0
      %p72 = por %p70, %p71
      %s73 = ssub.s32 %s27, %s36
      %s74 = ssub.s32 %s26, %s40
      %s75 = sor.u32 %s73, %s74
      %p76 = scmp.eq.s32.totalorder %s75, 0
      %s78 = sadd.s32 %s77, 1
      %s79 = scalar_select %p76, %s77, %s78
      %p82 = pneg %p76
      %p83 = scmp.eq.s32.totalorder %s18, 1
      %p84 = por %p82, %p83
      %p85 = scmp.ne.s32.totalorder %s77, %s80
      %p86 = scmp.eq.s32.totalorder %s18, 0
      %p87 = por %p85, %p86
      %p88 = scmp.ne.s32.totalorder %s77, %s80
      %p89 = scmp.eq.s32.totalorder %s23, 1
      %p90 = por %p88, %p89
      %p91 = scmp.ne.s32.totalorder %s80, %s81
      %p92 = scmp.eq.s32.totalorder %s23, 0
      %p93 = por %p91, %p92
      %p94 = scmp.ne.s32.totalorder %s80, %s81
      %p95 = scmp.eq.s32.totalorder %s24, 1
      %p96 = por %p94, %p95
      %p98 = scmp.ne.s32.totalorder %s81, %s97
      %p99 = scmp.eq.s32.totalorder %s24, 0
      %p100 = por %p98, %p99
      %s102 = sadd.s32 %s101, 1
      %p105 = scmp.eq.s32.totalorder %s18, 1
      %p106 = scmp.ne.s32.totalorder %s101, %s103
      %p107 = scmp.eq.s32.totalorder %s18, 0
      %p108 = por %p106, %p107
      %p109 = scmp.ne.s32.totalorder %s101, %s103
      %p110 = scmp.eq.s32.totalorder %s23, 1
      %p111 = por %p109, %p110
      %p112 = scmp.ne.s32.totalorder %s103, %s104
      %p113 = scmp.eq.s32.totalorder %s23, 0
      %p114 = por %p112, %p113
      %p115 = scmp.ne.s32.totalorder %s103, %s104
      %p116 = scmp.eq.s32.totalorder %s24, 1
      %p117 = por %p115, %p116
      %p119 = scmp.ne.s32.totalorder %s104, %s118
      %p120 = scmp.eq.s32.totalorder %s24, 0
      %p121 = por %p119, %p120
      %s123 = sadd.s32 %s122, 1
      %p126 = scmp.eq.s32.totalorder %s18, 1
      %p127 = scmp.ne.s32.totalorder %s122, %s124
      %p128 = scmp.eq.s32.totalorder %s18, 0
      %p129 = por %p127, %p128
      %p130 = scmp.ne.s32.totalorder %s122, %s124
      %p131 = scmp.eq.s32.totalorder %s23, 1
      %p132 = por %p130, %p131
      %p133 = scmp.ne.s32.totalorder %s124, %s125
      %p134 = scmp.eq.s32.totalorder %s23, 0
      %p135 = por %p133, %p134
      %p136 = scmp.ne.s32.totalorder %s124, %s125
      %p137 = scmp.eq.s32.totalorder %s24, 1
      %p138 = por %p136, %p137
      %p140 = scmp.ne.s32.totalorder %s125, %s139
      %p141 = scmp.eq.s32.totalorder %s24, 0
      %p142 = por %p140, %p141
      %s143 = ssub.s32 %s25, %s44
      %s144 = ssub.s32 %s26, %s40
      %s145 = sor.u32 %s143, %s144
      %p146 = scmp.eq.s32.totalorder %s145, 0
      %s148 = sadd.s32 %s147, 1
      %s149 = scalar_select %p146, %s147, %s148
      %p152 = pneg %p146
      %p153 = scmp.eq.s32.totalorder %s18, 1
      %p154 = por %p152, %p153
      %p155 = scmp.ne.s32.totalorder %s147, %s150
      %p156 = scmp.eq.s32.totalorder %s18, 0
      %p157 = por %p155, %p156
      %p158 = scmp.ne.s32.totalorder %s147, %s150
      %p159 = scmp.eq.s32.totalorder %s23, 1
      %p160 = por %p158, %p159
      %p161 = scmp.ne.s32.totalorder %s150, %s151
      %p162 = scmp.eq.s32.totalorder %s23, 0
      %p163 = por %p161, %p162
      %p164 = scmp.ne.s32.totalorder %s150, %s151
      %p165 = scmp.eq.s32.totalorder %s24, 1
      %p166 = por %p164, %p165
      %p168 = scmp.ne.s32.totalorder %s151, %s167
      %p169 = scmp.eq.s32.totalorder %s24, 0
      %p170 = por %p168, %p169
      %p171 = scmp.le.s32.totalorder 1, %s18
      %p172 = scmp.lt.s32.totalorder %s18, 3
      %p173 = pnand %p171, %p172
      %p174 = pneg %p173
      // Predicated region
      $region9: #{tpu_custom_call.1} parent=5 // pred_check
        _
      $region10: #{tpu_custom_call.1} parent=5 // pred_check_branch
        %176 = sbr.rel (%p173) target = $region12
      $region11: #{tpu_custom_call.1} parent=5 // pred_region
        %s177 = ssub.s32 %s18, 1
        // Predicated region
        $region13: #{tpu_custom_call.1} parent=11 // pred_check
          %p178 = pneg %p93
        $region14: #{tpu_custom_call.1} parent=11 // pred_check_branch
          %180 = sbr.rel (%p178) target = $region16
        $region15: #{tpu_custom_call.1} parent=11 // pred_region
          %s181 = smul.u32 32, %s30
          %s182 = smul.u32 4, %s29
          %s184 = ssub.s32 8192, 8192
          %185 = vsyncadd [#allocation7], %s184
          %s186 = smul.addr %s181, 4
          %s187 = sadd.s32 %s182, %s186
          %s188 = smul.addr %s187, 64
          %s189 = scalar_lea.hbm %s1, %s188
          %s190 = sshll.u32 [#allocation6], 4
          %s191 = int_to_ptr.vmem [resolvable:$true] %s190
          %196 = dma.hbm_to_vmem [thread:$0]  %s189, 8192, %s191, [#allocation7], 256, 256, 16
        $region16: #{tpu_custom_call.1} parent=11 // pred_fallthru
          _
        // Predicated region
        $region17: #{tpu_custom_call.1} parent=11 // pred_check
          %p197 = pneg %p114
        $region18: #{tpu_custom_call.1} parent=11 // pred_check_branch
          %199 = sbr.rel (%p197) target = $region20
        $region19: #{tpu_custom_call.1} parent=11 // pred_region
          %s201 = ssub.s32 8192, 8192
          %202 = vsyncadd [#allocation7], %s201
          %s203 = sshll.u32 [#allocation8], 4
          %s204 = int_to_ptr.vmem [resolvable:$true] %s203
          %209 = dma.hbm_to_vmem [thread:$0]  %s2, 8192, %s204, [#allocation7], 128, 128, 8
        $region20: #{tpu_custom_call.1} parent=11 // pred_fallthru
          _
        // Predicated region
        $region21: #{tpu_custom_call.1} parent=11 // pred_check
          %p210 = pneg %p135
        $region22: #{tpu_custom_call.1} parent=11 // pred_check_branch
          %212 = sbr.rel (%p210) target = $region24
        $region23: #{tpu_custom_call.1} parent=11 // pred_region
          %s214 = ssub.s32 8192, 8192
          %215 = vsyncadd [#allocation10], %s214
          %s216 = sshll.u32 [#allocation9], 4
          %s217 = int_to_ptr.vmem [resolvable:$true] %s216
          %222 = dma.hbm_to_vmem [thread:$0]  %s3, 8192, %s217, [#allocation10], 128, 128, 8
        $region24: #{tpu_custom_call.1} parent=11 // pred_fallthru
          _
      $region12: #{tpu_custom_call.1} parent=5 // pred_fallthru
        _
      %p223 = scmp.lt.s32.totalorder %s18, 2
      // Predicated region
      $region25: #{tpu_custom_call.1} parent=5 // pred_check
        %p224 = pneg %p223
      $region26: #{tpu_custom_call.1} parent=5 // pred_check_branch
        %226 = sbr.rel (%p224) target = $region28
      $region27: #{tpu_custom_call.1} parent=5 // pred_region
        // Predicated region
        $region29: #{tpu_custom_call.1} parent=27 // pred_check
          %p227 = pneg %p59
        $region30: #{tpu_custom_call.1} parent=27 // pred_check_branch
          %229 = sbr.rel (%p227) target = $region32
        $region31: #{tpu_custom_call.1} parent=27 // pred_region
          %s230 = sand.u32 %s49, 1
          %s231 = scalar_lea.sflag [#allocation4], %s230
          %s232 = sand.u32 %s49, 1
          %s233 = smul.addr %s232, 512
          %s234 = scalar_lea.vmem [#allocation3], %s233
          %s235 = smul.u32 64, %s25
          %s236 = smul.u32 2, %s27
          %s238 = ssub.s32 8192, 8192
          %239 = vsyncadd %s231, %s238
          %s240 = smul.addr %s235, 2
          %s241 = sadd.s32 %s236, %s240
          %s242 = smul.addr %s241, 64
          %s243 = scalar_lea.hbm %s0, %s242
          %s244 = sshll.u32 %s234, 4
          %s245 = int_to_ptr.vmem [resolvable:$true] %s244
          %250 = dma.hbm_to_vmem [thread:$0]  %s243, 8192, %s245, %s231, 128, 128, 8
        $region32: #{tpu_custom_call.1} parent=27 // pred_fallthru
          _
      $region28: #{tpu_custom_call.1} parent=5 // pred_fallthru
        _
      %p251 = scmp.le.s32.totalorder 1, %s18
      %p252 = scmp.lt.s32.totalorder %s18, 3
      %p253 = pnand %p251, %p252
      %p254 = pneg %p253
      // Predicated region
      $region33: #{tpu_custom_call.1} parent=5 // pred_check
        _
      $region34: #{tpu_custom_call.1} parent=5 // pred_check_branch
        %256 = sbr.rel (%p253) target = $region36
      $region35: #{tpu_custom_call.1} parent=5 // pred_region
        %s257 = ssub.s32 %s18, 1
        %s258 = sand.u32 %s52, 1
        %s259 = scalar_lea.sflag [#allocation4], %s258
        %s260 = sand.u32 %s52, 1
        %s261 = smul.addr %s260, 512
        %s262 = scalar_lea.vmem [#allocation3], %s261
        // Predicated region
        $region37: #{tpu_custom_call.1} parent=35 // pred_check
          %p263 = pneg %p65
        $region38: #{tpu_custom_call.1} parent=35 // pred_check_branch
          %265 = sbr.rel (%p263) target = $region40
        $region39: #{tpu_custom_call.1} parent=35 // pred_region
          %266 = dma.done %s259, 8192
        $region40: #{tpu_custom_call.1} parent=35 // pred_fallthru
          _
        // Predicated region
        $region41: #{tpu_custom_call.1} parent=35 // pred_check
          %p267 = pneg %p93
        $region42: #{tpu_custom_call.1} parent=35 // pred_check_branch
          %269 = sbr.rel (%p267) target = $region44
        $region43: #{tpu_custom_call.1} parent=35 // pred_region
          %270 = dma.done [#allocation7], 8192
        $region44: #{tpu_custom_call.1} parent=35 // pred_fallthru
          _
        // Predicated region
        $region45: #{tpu_custom_call.1} parent=35 // pred_check
          %p271 = pneg %p114
        $region46: #{tpu_custom_call.1} parent=35 // pred_check_branch
          %273 = sbr.rel (%p271) target = $region48
        $region47: #{tpu_custom_call.1} parent=35 // pred_region
          %274 = dma.done [#allocation7], 8192
        $region48: #{tpu_custom_call.1} parent=35 // pred_fallthru
          _
        // Predicated region
        $region49: #{tpu_custom_call.1} parent=35 // pred_check
          %p275 = pneg %p135
        $region50: #{tpu_custom_call.1} parent=35 // pred_check_branch
          %277 = sbr.rel (%p275) target = $region52
        $region51: #{tpu_custom_call.1} parent=35 // pred_region
          %278 = dma.done [#allocation10], 8192
        $region52: #{tpu_custom_call.1} parent=35 // pred_fallthru
          _
        %s279 = sand.u32 %s52, 1
        %s280 = scalar_lea.sflag [#allocation4], %s279
        %s281 = sand.u32 %s52, 1
        %s282 = smul.addr %s281, 512
        %s283 = scalar_lea.vmem [#allocation3], %s282
        %p284 = pneg %p65
        %p285 = pneg %p62
        %p286 = pneg %p93
        %p287 = pneg %p90
        %p288 = pneg %p114
        %p289 = pneg %p111
        %p290 = pneg %p135
        %p291 = pneg %p132
        %p292 = pneg %p163
        %p293 = pneg %p160
        %s294 = sand.u32 %s150, 1
        %s295 = scalar_lea.sflag [#allocation5], %s294
        %s296 = sand.u32 %s150, 1
        %s297 = smul.addr %s296, 1024
        %s298 = scalar_lea.vmem [#allocation11], %s297
        %s299 = smul.u32 64, %s28
        %s300 = smul.u32 2, %s30
        %s301 = smul.u32 32, %s30
        %s302 = smul.u32 4, %s29
        %s303 = smul.u32 64, %s28
        %s304 = smul.u32 4, %s29
        %p305 = scmp.eq.s32.totalorder %s30, 0
        // Predicated region
        $region53: #{tpu_custom_call.1} parent=35 // pred_check
          %p306 = pneg %p305
        $region54: #{tpu_custom_call.1} parent=35 // pred_check_branch
          %308 = sbr.rel (%p306) target = $region56
        $region55: #{tpu_custom_call.1} parent=35 // pred_region
          %309 = vst [vmem:[#allocation2] sm:$0xff] 0.0
          %310 = vst [vmem:[#allocation2 + $0x8] sm:$0xff] 0.0
          %311 = vst [vmem:[#allocation2 + $0x10] sm:$0xff] 0.0
          %312 = vst [vmem:[#allocation2 + $0x18] sm:$0xff] 0.0
          %313 = vst [vmem:[#allocation2 + $0x20] sm:$0xff] 0.0
          %314 = vst [vmem:[#allocation2 + $0x28] sm:$0xff] 0.0
          %315 = vst [vmem:[#allocation2 + $0x30] sm:$0xff] 0.0
          %316 = vst [vmem:[#allocation2 + $0x38] sm:$0xff] 0.0
          %317 = vst [vmem:[#allocation2 + $0x40] sm:$0xff] 0.0
          %318 = vst [vmem:[#allocation2 + $0x48] sm:$0xff] 0.0
          %319 = vst [vmem:[#allocation2 + $0x50] sm:$0xff] 0.0
          %320 = vst [vmem:[#allocation2 + $0x58] sm:$0xff] 0.0
          %321 = vst [vmem:[#allocation2 + $0x60] sm:$0xff] 0.0
          %322 = vst [vmem:[#allocation2 + $0x68] sm:$0xff] 0.0
          %323 = vst [vmem:[#allocation2 + $0x70] sm:$0xff] 0.0
          %324 = vst [vmem:[#allocation2 + $0x78] sm:$0xff] 0.0
          %325 = vst [vmem:[#allocation2 + $0x80] sm:$0xff] 0.0
          %326 = vst [vmem:[#allocation2 + $0x88] sm:$0xff] 0.0
          %327 = vst [vmem:[#allocation2 + $0x90] sm:$0xff] 0.0
          %328 = vst [vmem:[#allocation2 + $0x98] sm:$0xff] 0.0
          %329 = vst [vmem:[#allocation2 + $0xa0] sm:$0xff] 0.0
          %330 = vst [vmem:[#allocation2 + $0xa8] sm:$0xff] 0.0
          %331 = vst [vmem:[#allocation2 + $0xb0] sm:$0xff] 0.0
          %332 = vst [vmem:[#allocation2 + $0xb8] sm:$0xff] 0.0
          %333 = vst [vmem:[#allocation2 + $0xc0] sm:$0xff] 0.0
          %334 = vst [vmem:[#allocation2 + $0xc8] sm:$0xff] 0.0
          %335 = vst [vmem:[#allocation2 + $0xd0] sm:$0xff] 0.0
          %336 = vst [vmem:[#allocation2 + $0xd8] sm:$0xff] 0.0
          %337 = vst [vmem:[#allocation2 + $0xe0] sm:$0xff] 0.0
          %338 = vst [vmem:[#allocation2 + $0xe8] sm:$0xff] 0.0
          %339 = vst [vmem:[#allocation2 + $0xf0] sm:$0xff] 0.0
          %340 = vst [vmem:[#allocation2 + $0xf8] sm:$0xff] 0.0
          %341 = vst [vmem:[#allocation2 + $0x100] sm:$0xff] 0.0
          %342 = vst [vmem:[#allocation2 + $0x108] sm:$0xff] 0.0
          %343 = vst [vmem:[#allocation2 + $0x110] sm:$0xff] 0.0
          %344 = vst [vmem:[#allocation2 + $0x118] sm:$0xff] 0.0
          %345 = vst [vmem:[#allocation2 + $0x120] sm:$0xff] 0.0
          %346 = vst [vmem:[#allocation2 + $0x128] sm:$0xff] 0.0
          %347 = vst [vmem:[#allocation2 + $0x130] sm:$0xff] 0.0
          %348 = vst [vmem:[#allocation2 + $0x138] sm:$0xff] 0.0
          %349 = vst [vmem:[#allocation2 + $0x140] sm:$0xff] 0.0
          %350 = vst [vmem:[#allocation2 + $0x148] sm:$0xff] 0.0
          %351 = vst [vmem:[#allocation2 + $0x150] sm:$0xff] 0.0
          %352 = vst [vmem:[#allocation2 + $0x158] sm:$0xff] 0.0
          %353 = vst [vmem:[#allocation2 + $0x160] sm:$0xff] 0.0
          %354 = vst [vmem:[#allocation2 + $0x168] sm:$0xff] 0.0
          %355 = vst [vmem:[#allocation2 + $0x170] sm:$0xff] 0.0
          %356 = vst [vmem:[#allocation2 + $0x178] sm:$0xff] 0.0
          %357 = vst [vmem:[#allocation2 + $0x180] sm:$0xff] 0.0
          %358 = vst [vmem:[#allocation2 + $0x188] sm:$0xff] 0.0
          %359 = vst [vmem:[#allocation2 + $0x190] sm:$0xff] 0.0
          %360 = vst [vmem:[#allocation2 + $0x198] sm:$0xff] 0.0
          %361 = vst [vmem:[#allocation2 + $0x1a0] sm:$0xff] 0.0
          %362 = vst [vmem:[#allocation2 + $0x1a8] sm:$0xff] 0.0
          %363 = vst [vmem:[#allocation2 + $0x1b0] sm:$0xff] 0.0
          %364 = vst [vmem:[#allocation2 + $0x1b8] sm:$0xff] 0.0
          %365 = vst [vmem:[#allocation2 + $0x1c0] sm:$0xff] 0.0
          %366 = vst [vmem:[#allocation2 + $0x1c8] sm:$0xff] 0.0
          %367 = vst [vmem:[#allocation2 + $0x1d0] sm:$0xff] 0.0
          %368 = vst [vmem:[#allocation2 + $0x1d8] sm:$0xff] 0.0
          %369 = vst [vmem:[#allocation2 + $0x1e0] sm:$0xff] 0.0
          %370 = vst [vmem:[#allocation2 + $0x1e8] sm:$0xff] 0.0
          %371 = vst [vmem:[#allocation2 + $0x1f0] sm:$0xff] 0.0
          %372 = vst [vmem:[#allocation2 + $0x1f8] sm:$0xff] 0.0
          %373 = vst [vmem:[#allocation2 + $0x200] sm:$0xff] 0.0
          %374 = vst [vmem:[#allocation2 + $0x208] sm:$0xff] 0.0
          %375 = vst [vmem:[#allocation2 + $0x210] sm:$0xff] 0.0
          %376 = vst [vmem:[#allocation2 + $0x218] sm:$0xff] 0.0
          %377 = vst [vmem:[#allocation2 + $0x220] sm:$0xff] 0.0
          %378 = vst [vmem:[#allocation2 + $0x228] sm:$0xff] 0.0
          %379 = vst [vmem:[#allocation2 + $0x230] sm:$0xff] 0.0
          %380 = vst [vmem:[#allocation2 + $0x238] sm:$0xff] 0.0
          %381 = vst [vmem:[#allocation2 + $0x240] sm:$0xff] 0.0
          %382 = vst [vmem:[#allocation2 + $0x248] sm:$0xff] 0.0
          %383 = vst [vmem:[#allocation2 + $0x250] sm:$0xff] 0.0
          %384 = vst [vmem:[#allocation2 + $0x258] sm:$0xff] 0.0
          %385 = vst [vmem:[#allocation2 + $0x260] sm:$0xff] 0.0
          %386 = vst [vmem:[#allocation2 + $0x268] sm:$0xff] 0.0
          %387 = vst [vmem:[#allocation2 + $0x270] sm:$0xff] 0.0
          %388 = vst [vmem:[#allocation2 + $0x278] sm:$0xff] 0.0
          %389 = vst [vmem:[#allocation2 + $0x280] sm:$0xff] 0.0
          %390 = vst [vmem:[#allocation2 + $0x288] sm:$0xff] 0.0
          %391 = vst [vmem:[#allocation2 + $0x290] sm:$0xff] 0.0
          %392 = vst [vmem:[#allocation2 + $0x298] sm:$0xff] 0.0
          %393 = vst [vmem:[#allocation2 + $0x2a0] sm:$0xff] 0.0
          %394 = vst [vmem:[#allocation2 + $0x2a8] sm:$0xff] 0.0
          %395 = vst [vmem:[#allocation2 + $0x2b0] sm:$0xff] 0.0
          %396 = vst [vmem:[#allocation2 + $0x2b8] sm:$0xff] 0.0
          %397 = vst [vmem:[#allocation2 + $0x2c0] sm:$0xff] 0.0
          %398 = vst [vmem:[#allocation2 + $0x2c8] sm:$0xff] 0.0
          %399 = vst [vmem:[#allocation2 + $0x2d0] sm:$0xff] 0.0
          %400 = vst [vmem:[#allocation2 + $0x2d8] sm:$0xff] 0.0
          %401 = vst [vmem:[#allocation2 + $0x2e0] sm:$0xff] 0.0
          %402 = vst [vmem:[#allocation2 + $0x2e8] sm:$0xff] 0.0
          %403 = vst [vmem:[#allocation2 + $0x2f0] sm:$0xff] 0.0
          %404 = vst [vmem:[#allocation2 + $0x2f8] sm:$0xff] 0.0
          %405 = vst [vmem:[#allocation2 + $0x300] sm:$0xff] 0.0
          %406 = vst [vmem:[#allocation2 + $0x308] sm:$0xff] 0.0
          %407 = vst [vmem:[#allocation2 + $0x310] sm:$0xff] 0.0
          %408 = vst [vmem:[#allocation2 + $0x318] sm:$0xff] 0.0
          %409 = vst [vmem:[#allocation2 + $0x320] sm:$0xff] 0.0
          %410 = vst [vmem:[#allocation2 + $0x328] sm:$0xff] 0.0
          %411 = vst [vmem:[#allocation2 + $0x330] sm:$0xff] 0.0
          %412 = vst [vmem:[#allocation2 + $0x338] sm:$0xff] 0.0
          %413 = vst [vmem:[#allocation2 + $0x340] sm:$0xff] 0.0
          %414 = vst [vmem:[#allocation2 + $0x348] sm:$0xff] 0.0
          %415 = vst [vmem:[#allocation2 + $0x350] sm:$0xff] 0.0
          %416 = vst [vmem:[#allocation2 + $0x358] sm:$0xff] 0.0
          %417 = vst [vmem:[#allocation2 + $0x360] sm:$0xff] 0.0
          %418 = vst [vmem:[#allocation2 + $0x368] sm:$0xff] 0.0
          %419 = vst [vmem:[#allocation2 + $0x370] sm:$0xff] 0.0
          %420 = vst [vmem:[#allocation2 + $0x378] sm:$0xff] 0.0
          %421 = vst [vmem:[#allocation2 + $0x380] sm:$0xff] 0.0
          %422 = vst [vmem:[#allocation2 + $0x388] sm:$0xff] 0.0
          %423 = vst [vmem:[#allocation2 + $0x390] sm:$0xff] 0.0
          %424 = vst [vmem:[#allocation2 + $0x398] sm:$0xff] 0.0
          %425 = vst [vmem:[#allocation2 + $0x3a0] sm:$0xff] 0.0
          %426 = vst [vmem:[#allocation2 + $0x3a8] sm:$0xff] 0.0
          %427 = vst [vmem:[#allocation2 + $0x3b0] sm:$0xff] 0.0
          %428 = vst [vmem:[#allocation2 + $0x3b8] sm:$0xff] 0.0
          %429 = vst [vmem:[#allocation2 + $0x3c0] sm:$0xff] 0.0
          %430 = vst [vmem:[#allocation2 + $0x3c8] sm:$0xff] 0.0
          %431 = vst [vmem:[#allocation2 + $0x3d0] sm:$0xff] 0.0
          %432 = vst [vmem:[#allocation2 + $0x3d8] sm:$0xff] 0.0
          %433 = vst [vmem:[#allocation2 + $0x3e0] sm:$0xff] 0.0
          %434 = vst [vmem:[#allocation2 + $0x3e8] sm:$0xff] 0.0
          %435 = vst [vmem:[#allocation2 + $0x3f0] sm:$0xff] 0.0
          %436 = vst [vmem:[#allocation2 + $0x3f8] sm:$0xff] 0.0
          %437 = vst [vmem:[#allocation2 + $0x400] sm:$0xff] 0.0
          %438 = vst [vmem:[#allocation2 + $0x408] sm:$0xff] 0.0
          %439 = vst [vmem:[#allocation2 + $0x410] sm:$0xff] 0.0
          %440 = vst [vmem:[#allocation2 + $0x418] sm:$0xff] 0.0
          %441 = vst [vmem:[#allocation2 + $0x420] sm:$0xff] 0.0
          %442 = vst [vmem:[#allocation2 + $0x428] sm:$0xff] 0.0
          %443 = vst [vmem:[#allocation2 + $0x430] sm:$0xff] 0.0
          %444 = vst [vmem:[#allocation2 + $0x438] sm:$0xff] 0.0
          %445 = vst [vmem:[#allocation2 + $0x440] sm:$0xff] 0.0
          %446 = vst [vmem:[#allocation2 + $0x448] sm:$0xff] 0.0
          %447 = vst [vmem:[#allocation2 + $0x450] sm:$0xff] 0.0
          %448 = vst [vmem:[#allocation2 + $0x458] sm:$0xff] 0.0
          %449 = vst [vmem:[#allocation2 + $0x460] sm:$0xff] 0.0
          %450 = vst [vmem:[#allocation2 + $0x468] sm:$0xff] 0.0
          %451 = vst [vmem:[#allocation2 + $0x470] sm:$0xff] 0.0
          %452 = vst [vmem:[#allocation2 + $0x478] sm:$0xff] 0.0
          %453 = vst [vmem:[#allocation2 + $0x480] sm:$0xff] 0.0
          %454 = vst [vmem:[#allocation2 + $0x488] sm:$0xff] 0.0
          %455 = vst [vmem:[#allocation2 + $0x490] sm:$0xff] 0.0
          %456 = vst [vmem:[#allocation2 + $0x498] sm:$0xff] 0.0
          %457 = vst [vmem:[#allocation2 + $0x4a0] sm:$0xff] 0.0
          %458 = vst [vmem:[#allocation2 + $0x4a8] sm:$0xff] 0.0
          %459 = vst [vmem:[#allocation2 + $0x4b0] sm:$0xff] 0.0
          %460 = vst [vmem:[#allocation2 + $0x4b8] sm:$0xff] 0.0
          %461 = vst [vmem:[#allocation2 + $0x4c0] sm:$0xff] 0.0
          %462 = vst [vmem:[#allocation2 + $0x4c8] sm:$0xff] 0.0
          %463 = vst [vmem:[#allocation2 + $0x4d0] sm:$0xff] 0.0
          %464 = vst [vmem:[#allocation2 + $0x4d8] sm:$0xff] 0.0
          %465 = vst [vmem:[#allocation2 + $0x4e0] sm:$0xff] 0.0
          %466 = vst [vmem:[#allocation2 + $0x4e8] sm:$0xff] 0.0
          %467 = vst [vmem:[#allocation2 + $0x4f0] sm:$0xff] 0.0
          %468 = vst [vmem:[#allocation2 + $0x4f8] sm:$0xff] 0.0
          %469 = vst [vmem:[#allocation2 + $0x500] sm:$0xff] 0.0
          %470 = vst [vmem:[#allocation2 + $0x508] sm:$0xff] 0.0
          %471 = vst [vmem:[#allocation2 + $0x510] sm:$0xff] 0.0
          %472 = vst [vmem:[#allocation2 + $0x518] sm:$0xff] 0.0
          %473 = vst [vmem:[#allocation2 + $0x520] sm:$0xff] 0.0
          %474 = vst [vmem:[#allocation2 + $0x528] sm:$0xff] 0.0
          %475 = vst [vmem:[#allocation2 + $0x530] sm:$0xff] 0.0
          %476 = vst [vmem:[#allocation2 + $0x538] sm:$0xff] 0.0
          %477 = vst [vmem:[#allocation2 + $0x540] sm:$0xff] 0.0
          %478 = vst [vmem:[#allocation2 + $0x548] sm:$0xff] 0.0
          %479 = vst [vmem:[#allocation2 + $0x550] sm:$0xff] 0.0
          %480 = vst [vmem:[#allocation2 + $0x558] sm:$0xff] 0.0
          %481 = vst [vmem:[#allocation2 + $0x560] sm:$0xff] 0.0
          %482 = vst [vmem:[#allocation2 + $0x568] sm:$0xff] 0.0
          %483 = vst [vmem:[#allocation2 + $0x570] sm:$0xff] 0.0
          %484 = vst [vmem:[#allocation2 + $0x578] sm:$0xff] 0.0
          %485 = vst [vmem:[#allocation2 + $0x580] sm:$0xff] 0.0
          %486 = vst [vmem:[#allocation2 + $0x588] sm:$0xff] 0.0
          %487 = vst [vmem:[#allocation2 + $0x590] sm:$0xff] 0.0
          %488 = vst [vmem:[#allocation2 + $0x598] sm:$0xff] 0.0
          %489 = vst [vmem:[#allocation2 + $0x5a0] sm:$0xff] 0.0
          %490 = vst [vmem:[#allocation2 + $0x5a8] sm:$0xff] 0.0
          %491 = vst [vmem:[#allocation2 + $0x5b0] sm:$0xff] 0.0
          %492 = vst [vmem:[#allocation2 + $0x5b8] sm:$0xff] 0.0
          %493 = vst [vmem:[#allocation2 + $0x5c0] sm:$0xff] 0.0
          %494 = vst [vmem:[#allocation2 + $0x5c8] sm:$0xff] 0.0
          %495 = vst [vmem:[#allocation2 + $0x5d0] sm:$0xff] 0.0
          %496 = vst [vmem:[#allocation2 + $0x5d8] sm:$0xff] 0.0
          %497 = vst [vmem:[#allocation2 + $0x5e0] sm:$0xff] 0.0
          %498 = vst [vmem:[#allocation2 + $0x5e8] sm:$0xff] 0.0
          %499 = vst [vmem:[#allocation2 + $0x5f0] sm:$0xff] 0.0
          %500 = vst [vmem:[#allocation2 + $0x5f8] sm:$0xff] 0.0
          %501 = vst [vmem:[#allocation2 + $0x600] sm:$0xff] 0.0
          %502 = vst [vmem:[#allocation2 + $0x608] sm:$0xff] 0.0
          %503 = vst [vmem:[#allocation2 + $0x610] sm:$0xff] 0.0
          %504 = vst [vmem:[#allocation2 + $0x618] sm:$0xff] 0.0
          %505 = vst [vmem:[#allocation2 + $0x620] sm:$0xff] 0.0
          %506 = vst [vmem:[#allocation2 + $0x628] sm:$0xff] 0.0
          %507 = vst [vmem:[#allocation2 + $0x630] sm:$0xff] 0.0
          %508 = vst [vmem:[#allocation2 + $0x638] sm:$0xff] 0.0
          %509 = vst [vmem:[#allocation2 + $0x640] sm:$0xff] 0.0
          %510 = vst [vmem:[#allocation2 + $0x648] sm:$0xff] 0.0
          %511 = vst [vmem:[#allocation2 + $0x650] sm:$0xff] 0.0
          %512 = vst [vmem:[#allocation2 + $0x658] sm:$0xff] 0.0
          %513 = vst [vmem:[#allocation2 + $0x660] sm:$0xff] 0.0
          %514 = vst [vmem:[#allocation2 + $0x668] sm:$0xff] 0.0
          %515 = vst [vmem:[#allocation2 + $0x670] sm:$0xff] 0.0
          %516 = vst [vmem:[#allocation2 + $0x678] sm:$0xff] 0.0
          %517 = vst [vmem:[#allocation2 + $0x680] sm:$0xff] 0.0
          %518 = vst [vmem:[#allocation2 + $0x688] sm:$0xff] 0.0
          %519 = vst [vmem:[#allocation2 + $0x690] sm:$0xff] 0.0
          %520 = vst [vmem:[#allocation2 + $0x698] sm:$0xff] 0.0
          %521 = vst [vmem:[#allocation2 + $0x6a0] sm:$0xff] 0.0
          %522 = vst [vmem:[#allocation2 + $0x6a8] sm:$0xff] 0.0
          %523 = vst [vmem:[#allocation2 + $0x6b0] sm:$0xff] 0.0
          %524 = vst [vmem:[#allocation2 + $0x6b8] sm:$0xff] 0.0
          %525 = vst [vmem:[#allocation2 + $0x6c0] sm:$0xff] 0.0
          %526 = vst [vmem:[#allocation2 + $0x6c8] sm:$0xff] 0.0
          %527 = vst [vmem:[#allocation2 + $0x6d0] sm:$0xff] 0.0
          %528 = vst [vmem:[#allocation2 + $0x6d8] sm:$0xff] 0.0
          %529 = vst [vmem:[#allocation2 + $0x6e0] sm:$0xff] 0.0
          %530 = vst [vmem:[#allocation2 + $0x6e8] sm:$0xff] 0.0
          %531 = vst [vmem:[#allocation2 + $0x6f0] sm:$0xff] 0.0
          %532 = vst [vmem:[#allocation2 + $0x6f8] sm:$0xff] 0.0
          %533 = vst [vmem:[#allocation2 + $0x700] sm:$0xff] 0.0
          %534 = vst [vmem:[#allocation2 + $0x708] sm:$0xff] 0.0
          %535 = vst [vmem:[#allocation2 + $0x710] sm:$0xff] 0.0
          %536 = vst [vmem:[#allocation2 + $0x718] sm:$0xff] 0.0
          %537 = vst [vmem:[#allocation2 + $0x720] sm:$0xff] 0.0
          %538 = vst [vmem:[#allocation2 + $0x728] sm:$0xff] 0.0
          %539 = vst [vmem:[#allocation2 + $0x730] sm:$0xff] 0.0
          %540 = vst [vmem:[#allocation2 + $0x738] sm:$0xff] 0.0
          %541 = vst [vmem:[#allocation2 + $0x740] sm:$0xff] 0.0
          %542 = vst [vmem:[#allocation2 + $0x748] sm:$0xff] 0.0
          %543 = vst [vmem:[#allocation2 + $0x750] sm:$0xff] 0.0
          %544 = vst [vmem:[#allocation2 + $0x758] sm:$0xff] 0.0
          %545 = vst [vmem:[#allocation2 + $0x760] sm:$0xff] 0.0
          %546 = vst [vmem:[#allocation2 + $0x768] sm:$0xff] 0.0
          %547 = vst [vmem:[#allocation2 + $0x770] sm:$0xff] 0.0
          %548 = vst [vmem:[#allocation2 + $0x778] sm:$0xff] 0.0
          %549 = vst [vmem:[#allocation2 + $0x780] sm:$0xff] 0.0
          %550 = vst [vmem:[#allocation2 + $0x788] sm:$0xff] 0.0
          %551 = vst [vmem:[#allocation2 + $0x790] sm:$0xff] 0.0
          %552 = vst [vmem:[#allocation2 + $0x798] sm:$0xff] 0.0
          %553 = vst [vmem:[#allocation2 + $0x7a0] sm:$0xff] 0.0
          %554 = vst [vmem:[#allocation2 + $0x7a8] sm:$0xff] 0.0
          %555 = vst [vmem:[#allocation2 + $0x7b0] sm:$0xff] 0.0
          %556 = vst [vmem:[#allocation2 + $0x7b8] sm:$0xff] 0.0
          %557 = vst [vmem:[#allocation2 + $0x7c0] sm:$0xff] 0.0
          %558 = vst [vmem:[#allocation2 + $0x7c8] sm:$0xff] 0.0
          %559 = vst [vmem:[#allocation2 + $0x7d0] sm:$0xff] 0.0
          %560 = vst [vmem:[#allocation2 + $0x7d8] sm:$0xff] 0.0
          %561 = vst [vmem:[#allocation2 + $0x7e0] sm:$0xff] 0.0
          %562 = vst [vmem:[#allocation2 + $0x7e8] sm:$0xff] 0.0
          %563 = vst [vmem:[#allocation2 + $0x7f0] sm:$0xff] 0.0
          %564 = vst [vmem:[#allocation2 + $0x7f8] sm:$0xff] 0.0
        $region56: #{tpu_custom_call.1} parent=35 // pred_fallthru
          _
        %v565 = vld [vmem:[#allocation2] sm:$0xff]
        %v566 = vld [vmem:[#allocation2 + $0x8] sm:$0xff]
        %v567 = vld [vmem:[#allocation2 + $0x10] sm:$0xff]
        %v568 = vld [vmem:[#allocation2 + $0x18] sm:$0xff]
        %v569 = vld [vmem:[#allocation2 + $0x20] sm:$0xff]
        %v570 = vld [vmem:[#allocation2 + $0x28] sm:$0xff]
        %v571 = vld [vmem:[#allocation2 + $0x30] sm:$0xff]
        %v572 = vld [vmem:[#allocation2 + $0x38] sm:$0xff]
        %v573 = vld [vmem:[#allocation2 + $0x40] sm:$0xff]
        %v574 = vld [vmem:[#allocation2 + $0x48] sm:$0xff]
        %v575 = vld [vmem:[#allocation2 + $0x50] sm:$0xff]
        %v576 = vld [vmem:[#allocation2 + $0x58] sm:$0xff]
        %v577 = vld [vmem:[#allocation2 + $0x60] sm:$0xff]
        %v578 = vld [vmem:[#allocation2 + $0x68] sm:$0xff]
        %v579 = vld [vmem:[#allocation2 + $0x70] sm:$0xff]
        %v580 = vld [vmem:[#allocation2 + $0x78] sm:$0xff]
        %v581 = vld [vmem:[#allocation2 + $0x80] sm:$0xff]
        %v582 = vld [vmem:[#allocation2 + $0x88] sm:$0xff]
        %v583 = vld [vmem:[#allocation2 + $0x90] sm:$0xff]
        %v584 = vld [vmem:[#allocation2 + $0x98] sm:$0xff]
        %v585 = vld [vmem:[#allocation2 + $0xa0] sm:$0xff]
        %v586 = vld [vmem:[#allocation2 + $0xa8] sm:$0xff]
        %v587 = vld [vmem:[#allocation2 + $0xb0] sm:$0xff]
        %v588 = vld [vmem:[#allocation2 + $0xb8] sm:$0xff]
        %v589 = vld [vmem:[#allocation2 + $0xc0] sm:$0xff]
        %v590 = vld [vmem:[#allocation2 + $0xc8] sm:$0xff]
        %v591 = vld [vmem:[#allocation2 + $0xd0] sm:$0xff]
        %v592 = vld [vmem:[#allocation2 + $0xd8] sm:$0xff]
        %v593 = vld [vmem:[#allocation2 + $0xe0] sm:$0xff]
        %v594 = vld [vmem:[#allocation2 + $0xe8] sm:$0xff]
        %v595 = vld [vmem:[#allocation2 + $0xf0] sm:$0xff]
        %v596 = vld [vmem:[#allocation2 + $0xf8] sm:$0xff]
        %v597 = vld [vmem:[#allocation2 + $0x100] sm:$0xff]
        %v598 = vld [vmem:[#allocation2 + $0x108] sm:$0xff]
        %v599 = vld [vmem:[#allocation2 + $0x110] sm:$0xff]
        %v600 = vld [vmem:[#allocation2 + $0x118] sm:$0xff]
        %v601 = vld [vmem:[#allocation2 + $0x120] sm:$0xff]
        %v602 = vld [vmem:[#allocation2 + $0x128] sm:$0xff]
        %v603 = vld [vmem:[#allocation2 + $0x130] sm:$0xff]
        %v604 = vld [vmem:[#allocation2 + $0x138] sm:$0xff]
        %v605 = vld [vmem:[#allocation2 + $0x140] sm:$0xff]
        %v606 = vld [vmem:[#allocation2 + $0x148] sm:$0xff]
        %v607 = vld [vmem:[#allocation2 + $0x150] sm:$0xff]
        %v608 = vld [vmem:[#allocation2 + $0x158] sm:$0xff]
        %v609 = vld [vmem:[#allocation2 + $0x160] sm:$0xff]
        %v610 = vld [vmem:[#allocation2 + $0x168] sm:$0xff]
        %v611 = vld [vmem:[#allocation2 + $0x170] sm:$0xff]
        %v612 = vld [vmem:[#allocation2 + $0x178] sm:$0xff]
        %v613 = vld [vmem:[#allocation2 + $0x180] sm:$0xff]
        %v614 = vld [vmem:[#allocation2 + $0x188] sm:$0xff]
        %v615 = vld [vmem:[#allocation2 + $0x190] sm:$0xff]
        %v616 = vld [vmem:[#allocation2 + $0x198] sm:$0xff]
        %v617 = vld [vmem:[#allocation2 + $0x1a0] sm:$0xff]
        %v618 = vld [vmem:[#allocation2 + $0x1a8] sm:$0xff]
        %v619 = vld [vmem:[#allocation2 + $0x1b0] sm:$0xff]
        %v620 = vld [vmem:[#allocation2 + $0x1b8] sm:$0xff]
        %v621 = vld [vmem:[#allocation2 + $0x1c0] sm:$0xff]
        %v622 = vld [vmem:[#allocation2 + $0x1c8] sm:$0xff]
        %v623 = vld [vmem:[#allocation2 + $0x1d0] sm:$0xff]
        %v624 = vld [vmem:[#allocation2 + $0x1d8] sm:$0xff]
        %v625 = vld [vmem:[#allocation2 + $0x1e0] sm:$0xff]
        %v626 = vld [vmem:[#allocation2 + $0x1e8] sm:$0xff]
        %v627 = vld [vmem:[#allocation2 + $0x1f0] sm:$0xff]
        %v628 = vld [vmem:[#allocation2 + $0x1f8] sm:$0xff]
        %v629 = vld [vmem:[#allocation2 + $0x200] sm:$0xff]
        %v630 = vld [vmem:[#allocation2 + $0x208] sm:$0xff]
        %v631 = vld [vmem:[#allocation2 + $0x210] sm:$0xff]
        %v632 = vld [vmem:[#allocation2 + $0x218] sm:$0xff]
        %v633 = vld [vmem:[#allocation2 + $0x220] sm:$0xff]
        %v634 = vld [vmem:[#allocation2 + $0x228] sm:$0xff]
        %v635 = vld [vmem:[#allocation2 + $0x230] sm:$0xff]
        %v636 = vld [vmem:[#allocation2 + $0x238] sm:$0xff]
        %v637 = vld [vmem:[#allocation2 + $0x240] sm:$0xff]
        %v638 = vld [vmem:[#allocation2 + $0x248] sm:$0xff]
        %v639 = vld [vmem:[#allocation2 + $0x250] sm:$0xff]
        %v640 = vld [vmem:[#allocation2 + $0x258] sm:$0xff]
        %v641 = vld [vmem:[#allocation2 + $0x260] sm:$0xff]
        %v642 = vld [vmem:[#allocation2 + $0x268] sm:$0xff]
        %v643 = vld [vmem:[#allocation2 + $0x270] sm:$0xff]
        %v644 = vld [vmem:[#allocation2 + $0x278] sm:$0xff]
        %v645 = vld [vmem:[#allocation2 + $0x280] sm:$0xff]
        %v646 = vld [vmem:[#allocation2 + $0x288] sm:$0xff]
        %v647 = vld [vmem:[#allocation2 + $0x290] sm:$0xff]
        %v648 = vld [vmem:[#allocation2 + $0x298] sm:$0xff]
        %v649 = vld [vmem:[#allocation2 + $0x2a0] sm:$0xff]
        %v650 = vld [vmem:[#allocation2 + $0x2a8] sm:$0xff]
        %v651 = vld [vmem:[#allocation2 + $0x2b0] sm:$0xff]
        %v652 = vld [vmem:[#allocation2 + $0x2b8] sm:$0xff]
        %v653 = vld [vmem:[#allocation2 + $0x2c0] sm:$0xff]
        %v654 = vld [vmem:[#allocation2 + $0x2c8] sm:$0xff]
        %v655 = vld [vmem:[#allocation2 + $0x2d0] sm:$0xff]
        %v656 = vld [vmem:[#allocation2 + $0x2d8] sm:$0xff]
        %v657 = vld [vmem:[#allocation2 + $0x2e0] sm:$0xff]
        %v658 = vld [vmem:[#allocation2 + $0x2e8] sm:$0xff]
        %v659 = vld [vmem:[#allocation2 + $0x2f0] sm:$0xff]
        %v660 = vld [vmem:[#allocation2 + $0x2f8] sm:$0xff]
        %v661 = vld [vmem:[#allocation2 + $0x300] sm:$0xff]
        %v662 = vld [vmem:[#allocation2 + $0x308] sm:$0xff]
        %v663 = vld [vmem:[#allocation2 + $0x310] sm:$0xff]
        %v664 = vld [vmem:[#allocation2 + $0x318] sm:$0xff]
        %v665 = vld [vmem:[#allocation2 + $0x320] sm:$0xff]
        %v666 = vld [vmem:[#allocation2 + $0x328] sm:$0xff]
        %v667 = vld [vmem:[#allocation2 + $0x330] sm:$0xff]
        %v668 = vld [vmem:[#allocation2 + $0x338] sm:$0xff]
        %v669 = vld [vmem:[#allocation2 + $0x340] sm:$0xff]
        %v670 = vld [vmem:[#allocation2 + $0x348] sm:$0xff]
        %v671 = vld [vmem:[#allocation2 + $0x350] sm:$0xff]
        %v672 = vld [vmem:[#allocation2 + $0x358] sm:$0xff]
        %v673 = vld [vmem:[#allocation2 + $0x360] sm:$0xff]
        %v674 = vld [vmem:[#allocation2 + $0x368] sm:$0xff]
        %v675 = vld [vmem:[#allocation2 + $0x370] sm:$0xff]
        %v676 = vld [vmem:[#allocation2 + $0x378] sm:$0xff]
        %v677 = vld [vmem:[#allocation2 + $0x380] sm:$0xff]
        %v678 = vld [vmem:[#allocation2 + $0x388] sm:$0xff]
        %v679 = vld [vmem:[#allocation2 + $0x390] sm:$0xff]
        %v680 = vld [vmem:[#allocation2 + $0x398] sm:$0xff]
        %v681 = vld [vmem:[#allocation2 + $0x3a0] sm:$0xff]
        %v682 = vld [vmem:[#allocation2 + $0x3a8] sm:$0xff]
        %v683 = vld [vmem:[#allocation2 + $0x3b0] sm:$0xff]
        %v684 = vld [vmem:[#allocation2 + $0x3b8] sm:$0xff]
        %v685 = vld [vmem:[#allocation2 + $0x3c0] sm:$0xff]
        %v686 = vld [vmem:[#allocation2 + $0x3c8] sm:$0xff]
        %v687 = vld [vmem:[#allocation2 + $0x3d0] sm:$0xff]
        %v688 = vld [vmem:[#allocation2 + $0x3d8] sm:$0xff]
        %v689 = vld [vmem:[#allocation2 + $0x3e0] sm:$0xff]
        %v690 = vld [vmem:[#allocation2 + $0x3e8] sm:$0xff]
        %v691 = vld [vmem:[#allocation2 + $0x3f0] sm:$0xff]
        %v692 = vld [vmem:[#allocation2 + $0x3f8] sm:$0xff]
        %v693 = vld [vmem:[#allocation2 + $0x400] sm:$0xff]
        %v694 = vld [vmem:[#allocation2 + $0x408] sm:$0xff]
        %v695 = vld [vmem:[#allocation2 + $0x410] sm:$0xff]
        %v696 = vld [vmem:[#allocation2 + $0x418] sm:$0xff]
        %v697 = vld [vmem:[#allocation2 + $0x420] sm:$0xff]
        %v698 = vld [vmem:[#allocation2 + $0x428] sm:$0xff]
        %v699 = vld [vmem:[#allocation2 + $0x430] sm:$0xff]
        %v700 = vld [vmem:[#allocation2 + $0x438] sm:$0xff]
        %v701 = vld [vmem:[#allocation2 + $0x440] sm:$0xff]
        %v702 = vld [vmem:[#allocation2 + $0x448] sm:$0xff]
        %v703 = vld [vmem:[#allocation2 + $0x450] sm:$0xff]
        %v704 = vld [vmem:[#allocation2 + $0x458] sm:$0xff]
        %v705 = vld [vmem:[#allocation2 + $0x460] sm:$0xff]
        %v706 = vld [vmem:[#allocation2 + $0x468] sm:$0xff]
        %v707 = vld [vmem:[#allocation2 + $0x470] sm:$0xff]
        %v708 = vld [vmem:[#allocation2 + $0x478] sm:$0xff]
        %v709 = vld [vmem:[#allocation2 + $0x480] sm:$0xff]
        %v710 = vld [vmem:[#allocation2 + $0x488] sm:$0xff]
        %v711 = vld [vmem:[#allocation2 + $0x490] sm:$0xff]
        %v712 = vld [vmem:[#allocation2 + $0x498] sm:$0xff]
        %v713 = vld [vmem:[#allocation2 + $0x4a0] sm:$0xff]
        %v714 = vld [vmem:[#allocation2 + $0x4a8] sm:$0xff]
        %v715 = vld [vmem:[#allocation2 + $0x4b0] sm:$0xff]
        %v716 = vld [vmem:[#allocation2 + $0x4b8] sm:$0xff]
        %v717 = vld [vmem:[#allocation2 + $0x4c0] sm:$0xff]
        %v718 = vld [vmem:[#allocation2 + $0x4c8] sm:$0xff]
        %v719 = vld [vmem:[#allocation2 + $0x4d0] sm:$0xff]
        %v720 = vld [vmem:[#allocation2 + $0x4d8] sm:$0xff]
        %v721 = vld [vmem:[#allocation2 + $0x4e0] sm:$0xff]
        %v722 = vld [vmem:[#allocation2 + $0x4e8] sm:$0xff]
        %v723 = vld [vmem:[#allocation2 + $0x4f0] sm:$0xff]
        %v724 = vld [vmem:[#allocation2 + $0x4f8] sm:$0xff]
        %v725 = vld [vmem:[#allocation2 + $0x500] sm:$0xff]
        %v726 = vld [vmem:[#allocation2 + $0x508] sm:$0xff]
        %v727 = vld [vmem:[#allocation2 + $0x510] sm:$0xff]
        %v728 = vld [vmem:[#allocation2 + $0x518] sm:$0xff]
        %v729 = vld [vmem:[#allocation2 + $0x520] sm:$0xff]
        %v730 = vld [vmem:[#allocation2 + $0x528] sm:$0xff]
        %v731 = vld [vmem:[#allocation2 + $0x530] sm:$0xff]
        %v732 = vld [vmem:[#allocation2 + $0x538] sm:$0xff]
        %v733 = vld [vmem:[#allocation2 + $0x540] sm:$0xff]
        %v734 = vld [vmem:[#allocation2 + $0x548] sm:$0xff]
        %v735 = vld [vmem:[#allocation2 + $0x550] sm:$0xff]
        %v736 = vld [vmem:[#allocation2 + $0x558] sm:$0xff]
        %v737 = vld [vmem:[#allocation2 + $0x560] sm:$0xff]
        %v738 = vld [vmem:[#allocation2 + $0x568] sm:$0xff]
        %v739 = vld [vmem:[#allocation2 + $0x570] sm:$0xff]
        %v740 = vld [vmem:[#allocation2 + $0x578] sm:$0xff]
        %v741 = vld [vmem:[#allocation2 + $0x580] sm:$0xff]
        %v742 = vld [vmem:[#allocation2 + $0x588] sm:$0xff]
        %v743 = vld [vmem:[#allocation2 + $0x590] sm:$0xff]
        %v744 = vld [vmem:[#allocation2 + $0x598] sm:$0xff]
        %v745 = vld [vmem:[#allocation2 + $0x5a0] sm:$0xff]
        %v746 = vld [vmem:[#allocation2 + $0x5a8] sm:$0xff]
        %v747 = vld [vmem:[#allocation2 + $0x5b0] sm:$0xff]
        %v748 = vld [vmem:[#allocation2 + $0x5b8] sm:$0xff]
        %v749 = vld [vmem:[#allocation2 + $0x5c0] sm:$0xff]
        %v750 = vld [vmem:[#allocation2 + $0x5c8] sm:$0xff]
        %v751 = vld [vmem:[#allocation2 + $0x5d0] sm:$0xff]
        %v752 = vld [vmem:[#allocation2 + $0x5d8] sm:$0xff]
        %v753 = vld [vmem:[#allocation2 + $0x5e0] sm:$0xff]
        %v754 = vld [vmem:[#allocation2 + $0x5e8] sm:$0xff]
        %v755 = vld [vmem:[#allocation2 + $0x5f0] sm:$0xff]
        %v756 = vld [vmem:[#allocation2 + $0x5f8] sm:$0xff]
        %v757 = vld [vmem:[#allocation2 + $0x600] sm:$0xff]
        %v758 = vld [vmem:[#allocation2 + $0x608] sm:$0xff]
        %v759 = vld [vmem:[#allocation2 + $0x610] sm:$0xff]
        %v760 = vld [vmem:[#allocation2 + $0x618] sm:$0xff]
        %v761 = vld [vmem:[#allocation2 + $0x620] sm:$0xff]
        %v762 = vld [vmem:[#allocation2 + $0x628] sm:$0xff]
        %v763 = vld [vmem:[#allocation2 + $0x630] sm:$0xff]
        %v764 = vld [vmem:[#allocation2 + $0x638] sm:$0xff]
        %v765 = vld [vmem:[#allocation2 + $0x640] sm:$0xff]
        %v766 = vld [vmem:[#allocation2 + $0x648] sm:$0xff]
        %v767 = vld [vmem:[#allocation2 + $0x650] sm:$0xff]
        %v768 = vld [vmem:[#allocation2 + $0x658] sm:$0xff]
        %v769 = vld [vmem:[#allocation2 + $0x660] sm:$0xff]
        %v770 = vld [vmem:[#allocation2 + $0x668] sm:$0xff]
        %v771 = vld [vmem:[#allocation2 + $0x670] sm:$0xff]
        %v772 = vld [vmem:[#allocation2 + $0x678] sm:$0xff]
        %v773 = vld [vmem:[#allocation2 + $0x680] sm:$0xff]
        %v774 = vld [vmem:[#allocation2 + $0x688] sm:$0xff]
        %v775 = vld [vmem:[#allocation2 + $0x690] sm:$0xff]
        %v776 = vld [vmem:[#allocation2 + $0x698] sm:$0xff]
        %v777 = vld [vmem:[#allocation2 + $0x6a0] sm:$0xff]
        %v778 = vld [vmem:[#allocation2 + $0x6a8] sm:$0xff]
        %v779 = vld [vmem:[#allocation2 + $0x6b0] sm:$0xff]
        %v780 = vld [vmem:[#allocation2 + $0x6b8] sm:$0xff]
        %v781 = vld [vmem:[#allocation2 + $0x6c0] sm:$0xff]
        %v782 = vld [vmem:[#allocation2 + $0x6c8] sm:$0xff]
        %v783 = vld [vmem:[#allocation2 + $0x6d0] sm:$0xff]
        %v784 = vld [vmem:[#allocation2 + $0x6d8] sm:$0xff]
        %v785 = vld [vmem:[#allocation2 + $0x6e0] sm:$0xff]
        %v786 = vld [vmem:[#allocation2 + $0x6e8] sm:$0xff]
        %v787 = vld [vmem:[#allocation2 + $0x6f0] sm:$0xff]
        %v788 = vld [vmem:[#allocation2 + $0x6f8] sm:$0xff]
        %v789 = vld [vmem:[#allocation2 + $0x700] sm:$0xff]
        %v790 = vld [vmem:[#allocation2 + $0x708] sm:$0xff]
        %v791 = vld [vmem:[#allocation2 + $0x710] sm:$0xff]
        %v792 = vld [vmem:[#allocation2 + $0x718] sm:$0xff]
        %v793 = vld [vmem:[#allocation2 + $0x720] sm:$0xff]
        %v794 = vld [vmem:[#allocation2 + $0x728] sm:$0xff]
        %v795 = vld [vmem:[#allocation2 + $0x730] sm:$0xff]
        %v796 = vld [vmem:[#allocation2 + $0x738] sm:$0xff]
        %v797 = vld [vmem:[#allocation2 + $0x740] sm:$0xff]
        %v798 = vld [vmem:[#allocation2 + $0x748] sm:$0xff]
        %v799 = vld [vmem:[#allocation2 + $0x750] sm:$0xff]
        %v800 = vld [vmem:[#allocation2 + $0x758] sm:$0xff]
        %v801 = vld [vmem:[#allocation2 + $0x760] sm:$0xff]
        %v802 = vld [vmem:[#allocation2 + $0x768] sm:$0xff]
        %v803 = vld [vmem:[#allocation2 + $0x770] sm:$0xff]
        %v804 = vld [vmem:[#allocation2 + $0x778] sm:$0xff]
        %v805 = vld [vmem:[#allocation2 + $0x780] sm:$0xff]
        %v806 = vld [vmem:[#allocation2 + $0x788] sm:$0xff]
        %v807 = vld [vmem:[#allocation2 + $0x790] sm:$0xff]
        %v808 = vld [vmem:[#allocation2 + $0x798] sm:$0xff]
        %v809 = vld [vmem:[#allocation2 + $0x7a0] sm:$0xff]
        %v810 = vld [vmem:[#allocation2 + $0x7a8] sm:$0xff]
        %v811 = vld [vmem:[#allocation2 + $0x7b0] sm:$0xff]
        %v812 = vld [vmem:[#allocation2 + $0x7b8] sm:$0xff]
        %v813 = vld [vmem:[#allocation2 + $0x7c0] sm:$0xff]
        %v814 = vld [vmem:[#allocation2 + $0x7c8] sm:$0xff]
        %v815 = vld [vmem:[#allocation2 + $0x7d0] sm:$0xff]
        %v816 = vld [vmem:[#allocation2 + $0x7d8] sm:$0xff]
        %v817 = vld [vmem:[#allocation2 + $0x7e0] sm:$0xff]
        %v818 = vld [vmem:[#allocation2 + $0x7e8] sm:$0xff]
        %v819 = vld [vmem:[#allocation2 + $0x7f0] sm:$0xff]
        %v820 = vld [vmem:[#allocation2 + $0x7f8] sm:$0xff]
        %v821 = vld [vmem:[%s262] sm:$0xff]
        %v822 = vld [vmem:[%s262 + $0x8] sm:$0xff]
        %v823 = vld [vmem:[%s262 + $0x10] sm:$0xff]
        %v824 = vld [vmem:[%s262 + $0x18] sm:$0xff]
        %v825 = vld [vmem:[%s262 + $0x20] sm:$0xff]
        %v826 = vld [vmem:[%s262 + $0x28] sm:$0xff]
        %v827 = vld [vmem:[%s262 + $0x30] sm:$0xff]
        %v828 = vld [vmem:[%s262 + $0x38] sm:$0xff]
        %v829 = vld [vmem:[%s262 + $0x40] sm:$0xff]
        %v830 = vld [vmem:[%s262 + $0x48] sm:$0xff]
        %v831 = vld [vmem:[%s262 + $0x50] sm:$0xff]
        %v832 = vld [vmem:[%s262 + $0x58] sm:$0xff]
        %v833 = vld [vmem:[%s262 + $0x60] sm:$0xff]
        %v834 = vld [vmem:[%s262 + $0x68] sm:$0xff]
        %v835 = vld [vmem:[%s262 + $0x70] sm:$0xff]
        %v836 = vld [vmem:[%s262 + $0x78] sm:$0xff]
        %v837 = vld [vmem:[%s262 + $0x80] sm:$0xff]
        %v838 = vld [vmem:[%s262 + $0x88] sm:$0xff]
        %v839 = vld [vmem:[%s262 + $0x90] sm:$0xff]
        %v840 = vld [vmem:[%s262 + $0x98] sm:$0xff]
        %v841 = vld [vmem:[%s262 + $0xa0] sm:$0xff]
        %v842 = vld [vmem:[%s262 + $0xa8] sm:$0xff]
        %v843 = vld [vmem:[%s262 + $0xb0] sm:$0xff]
        %v844 = vld [vmem:[%s262 + $0xb8] sm:$0xff]
        %v845 = vld [vmem:[%s262 + $0xc0] sm:$0xff]
        %v846 = vld [vmem:[%s262 + $0xc8] sm:$0xff]
        %v847 = vld [vmem:[%s262 + $0xd0] sm:$0xff]
        %v848 = vld [vmem:[%s262 + $0xd8] sm:$0xff]
        %v849 = vld [vmem:[%s262 + $0xe0] sm:$0xff]
        %v850 = vld [vmem:[%s262 + $0xe8] sm:$0xff]
        %v851 = vld [vmem:[%s262 + $0xf0] sm:$0xff]
        %v852 = vld [vmem:[%s262 + $0xf8] sm:$0xff]
        %v853 = vld [vmem:[%s262 + $0x100] sm:$0xff]
        %v854 = vld [vmem:[%s262 + $0x108] sm:$0xff]
        %v855 = vld [vmem:[%s262 + $0x110] sm:$0xff]
        %v856 = vld [vmem:[%s262 + $0x118] sm:$0xff]
        %v857 = vld [vmem:[%s262 + $0x120] sm:$0xff]
        %v858 = vld [vmem:[%s262 + $0x128] sm:$0xff]
        %v859 = vld [vmem:[%s262 + $0x130] sm:$0xff]
        %v860 = vld [vmem:[%s262 + $0x138] sm:$0xff]
        %v861 = vld [vmem:[%s262 + $0x140] sm:$0xff]
        %v862 = vld [vmem:[%s262 + $0x148] sm:$0xff]
        %v863 = vld [vmem:[%s262 + $0x150] sm:$0xff]
        %v864 = vld [vmem:[%s262 + $0x158] sm:$0xff]
        %v865 = vld [vmem:[%s262 + $0x160] sm:$0xff]
        %v866 = vld [vmem:[%s262 + $0x168] sm:$0xff]
        %v867 = vld [vmem:[%s262 + $0x170] sm:$0xff]
        %v868 = vld [vmem:[%s262 + $0x178] sm:$0xff]
        %v869 = vld [vmem:[%s262 + $0x180] sm:$0xff]
        %v870 = vld [vmem:[%s262 + $0x188] sm:$0xff]
        %v871 = vld [vmem:[%s262 + $0x190] sm:$0xff]
        %v872 = vld [vmem:[%s262 + $0x198] sm:$0xff]
        %v873 = vld [vmem:[%s262 + $0x1a0] sm:$0xff]
        %v874 = vld [vmem:[%s262 + $0x1a8] sm:$0xff]
        %v875 = vld [vmem:[%s262 + $0x1b0] sm:$0xff]
        %v876 = vld [vmem:[%s262 + $0x1b8] sm:$0xff]
        %v877 = vld [vmem:[%s262 + $0x1c0] sm:$0xff]
        %v878 = vld [vmem:[%s262 + $0x1c8] sm:$0xff]
        %v879 = vld [vmem:[%s262 + $0x1d0] sm:$0xff]
        %v880 = vld [vmem:[%s262 + $0x1d8] sm:$0xff]
        %v881 = vld [vmem:[%s262 + $0x1e0] sm:$0xff]
        %v882 = vld [vmem:[%s262 + $0x1e8] sm:$0xff]
        %v883 = vld [vmem:[%s262 + $0x1f0] sm:$0xff]
        %v884 = vld [vmem:[%s262 + $0x1f8] sm:$0xff]
        %v885 = vld [vmem:[#allocation6] sm:$0xff]
        %v886 = vld [vmem:[#allocation6 + $0x8] sm:$0xff]
        %v887 = vld [vmem:[#allocation6 + $0x10] sm:$0xff]
        %v888 = vld [vmem:[#allocation6 + $0x18] sm:$0xff]
        %v889 = vld [vmem:[#allocation6 + $0x20] sm:$0xff]
        %v890 = vld [vmem:[#allocation6 + $0x28] sm:$0xff]
        %v891 = vld [vmem:[#allocation6 + $0x30] sm:$0xff]
        %v892 = vld [vmem:[#allocation6 + $0x38] sm:$0xff]
        %v893 = vld [vmem:[#allocation6 + $0x40] sm:$0xff]
        %v894 = vld [vmem:[#allocation6 + $0x48] sm:$0xff]
        %v895 = vld [vmem:[#allocation6 + $0x50] sm:$0xff]
        %v896 = vld [vmem:[#allocation6 + $0x58] sm:$0xff]
        %v897 = vld [vmem:[#allocation6 + $0x60] sm:$0xff]
        %v898 = vld [vmem:[#allocation6 + $0x68] sm:$0xff]
        %v899 = vld [vmem:[#allocation6 + $0x70] sm:$0xff]
        %v900 = vld [vmem:[#allocation6 + $0x78] sm:$0xff]
        %v901 = vld [vmem:[#allocation6 + $0x80] sm:$0xff]
        %v902 = vld [vmem:[#allocation6 + $0x88] sm:$0xff]
        %v903 = vld [vmem:[#allocation6 + $0x90] sm:$0xff]
        %v904 = vld [vmem:[#allocation6 + $0x98] sm:$0xff]
        %v905 = vld [vmem:[#allocation6 + $0xa0] sm:$0xff]
        %v906 = vld [vmem:[#allocation6 + $0xa8] sm:$0xff]
        %v907 = vld [vmem:[#allocation6 + $0xb0] sm:$0xff]
        %v908 = vld [vmem:[#allocation6 + $0xb8] sm:$0xff]
        %v909 = vld [vmem:[#allocation6 + $0xc0] sm:$0xff]
        %v910 = vld [vmem:[#allocation6 + $0xc8] sm:$0xff]
        %v911 = vld [vmem:[#allocation6 + $0xd0] sm:$0xff]
        %v912 = vld [vmem:[#allocation6 + $0xd8] sm:$0xff]
        %v913 = vld [vmem:[#allocation6 + $0xe0] sm:$0xff]
        %v914 = vld [vmem:[#allocation6 + $0xe8] sm:$0xff]
        %v915 = vld [vmem:[#allocation6 + $0xf0] sm:$0xff]
        %v916 = vld [vmem:[#allocation6 + $0xf8] sm:$0xff]
        %v917 = vld [vmem:[#allocation6 + $0x100] sm:$0xff]
        %v918 = vld [vmem:[#allocation6 + $0x108] sm:$0xff]
        %v919 = vld [vmem:[#allocation6 + $0x110] sm:$0xff]
        %v920 = vld [vmem:[#allocation6 + $0x118] sm:$0xff]
        %v921 = vld [vmem:[#allocation6 + $0x120] sm:$0xff]
        %v922 = vld [vmem:[#allocation6 + $0x128] sm:$0xff]
        %v923 = vld [vmem:[#allocation6 + $0x130] sm:$0xff]
        %v924 = vld [vmem:[#allocation6 + $0x138] sm:$0xff]
        %v925 = vld [vmem:[#allocation6 + $0x140] sm:$0xff]
        %v926 = vld [vmem:[#allocation6 + $0x148] sm:$0xff]
        %v927 = vld [vmem:[#allocation6 + $0x150] sm:$0xff]
        %v928 = vld [vmem:[#allocation6 + $0x158] sm:$0xff]
        %v929 = vld [vmem:[#allocation6 + $0x160] sm:$0xff]
        %v930 = vld [vmem:[#allocation6 + $0x168] sm:$0xff]
        %v931 = vld [vmem:[#allocation6 + $0x170] sm:$0xff]
        %v932 = vld [vmem:[#allocation6 + $0x178] sm:$0xff]
        %v933 = vld [vmem:[#allocation6 + $0x180] sm:$0xff]
        %v934 = vld [vmem:[#allocation6 + $0x188] sm:$0xff]
        %v935 = vld [vmem:[#allocation6 + $0x190] sm:$0xff]
        %v936 = vld [vmem:[#allocation6 + $0x198] sm:$0xff]
        %v937 = vld [vmem:[#allocation6 + $0x1a0] sm:$0xff]
        %v938 = vld [vmem:[#allocation6 + $0x1a8] sm:$0xff]
        %v939 = vld [vmem:[#allocation6 + $0x1b0] sm:$0xff]
        %v940 = vld [vmem:[#allocation6 + $0x1b8] sm:$0xff]
        %v941 = vld [vmem:[#allocation6 + $0x1c0] sm:$0xff]
        %v942 = vld [vmem:[#allocation6 + $0x1c8] sm:$0xff]
        %v943 = vld [vmem:[#allocation6 + $0x1d0] sm:$0xff]
        %v944 = vld [vmem:[#allocation6 + $0x1d8] sm:$0xff]
        %v945 = vld [vmem:[#allocation6 + $0x1e0] sm:$0xff]
        %v946 = vld [vmem:[#allocation6 + $0x1e8] sm:$0xff]
        %v947 = vld [vmem:[#allocation6 + $0x1f0] sm:$0xff]
        %v948 = vld [vmem:[#allocation6 + $0x1f8] sm:$0xff]
        %v1013 = vunpack.c.l.b16 %v821
        %v1014 = vunpack.c.h.b16 %v821
        %v1015 = vunpack.c.l.b16 %v822
        %v1016 = vunpack.c.h.b16 %v822
        %v1017 = vunpack.c.l.b16 %v823
        %v1018 = vunpack.c.h.b16 %v823
        %v1019 = vunpack.c.l.b16 %v824
        %v1020 = vunpack.c.h.b16 %v824
        %v1021 = vunpack.c.l.b16 %v825
        %v1022 = vunpack.c.h.b16 %v825
        %v1023 = vunpack.c.l.b16 %v826
        %v1024 = vunpack.c.h.b16 %v826
        %v1025 = vunpack.c.l.b16 %v827
        %v1026 = vunpack.c.h.b16 %v827
        %v1027 = vunpack.c.l.b16 %v828
        %v1028 = vunpack.c.h.b16 %v828
        %v1029 = vunpack.c.l.b16 %v829
        %v1030 = vunpack.c.h.b16 %v829
        %v1031 = vunpack.c.l.b16 %v830
        %v1032 = vunpack.c.h.b16 %v830
        %v1033 = vunpack.c.l.b16 %v831
        %v1034 = vunpack.c.h.b16 %v831
        %v1035 = vunpack.c.l.b16 %v832
        %v1036 = vunpack.c.h.b16 %v832
        %v1037 = vunpack.c.l.b16 %v833
        %v1038 = vunpack.c.h.b16 %v833
        %v1039 = vunpack.c.l.b16 %v834
        %v1040 = vunpack.c.h.b16 %v834
        %v1041 = vunpack.c.l.b16 %v835
        %v1042 = vunpack.c.h.b16 %v835
        %v1043 = vunpack.c.l.b16 %v836
        %v1044 = vunpack.c.h.b16 %v836
        %v1045 = vunpack.c.l.b16 %v837
        %v1046 = vunpack.c.h.b16 %v837
        %v1047 = vunpack.c.l.b16 %v838
        %v1048 = vunpack.c.h.b16 %v838
        %v1049 = vunpack.c.l.b16 %v839
        %v1050 = vunpack.c.h.b16 %v839
        %v1051 = vunpack.c.l.b16 %v840
        %v1052 = vunpack.c.h.b16 %v840
        %v1053 = vunpack.c.l.b16 %v841
        %v1054 = vunpack.c.h.b16 %v841
        %v1055 = vunpack.c.l.b16 %v842
        %v1056 = vunpack.c.h.b16 %v842
        %v1057 = vunpack.c.l.b16 %v843
        %v1058 = vunpack.c.h.b16 %v843
        %v1059 = vunpack.c.l.b16 %v844
        %v1060 = vunpack.c.h.b16 %v844
        %v1061 = vunpack.c.l.b16 %v845
        %v1062 = vunpack.c.h.b16 %v845
        %v1063 = vunpack.c.l.b16 %v846
        %v1064 = vunpack.c.h.b16 %v846
        %v1065 = vunpack.c.l.b16 %v847
        %v1066 = vunpack.c.h.b16 %v847
        %v1067 = vunpack.c.l.b16 %v848
        %v1068 = vunpack.c.h.b16 %v848
        %v1069 = vunpack.c.l.b16 %v849
        %v1070 = vunpack.c.h.b16 %v849
        %v1071 = vunpack.c.l.b16 %v850
        %v1072 = vunpack.c.h.b16 %v850
        %v1073 = vunpack.c.l.b16 %v851
        %v1074 = vunpack.c.h.b16 %v851
        %v1075 = vunpack.c.l.b16 %v852
        %v1076 = vunpack.c.h.b16 %v852
        %v1077 = vunpack.c.l.b16 %v853
        %v1078 = vunpack.c.h.b16 %v853
        %v1079 = vunpack.c.l.b16 %v854
        %v1080 = vunpack.c.h.b16 %v854
        %v1081 = vunpack.c.l.b16 %v855
        %v1082 = vunpack.c.h.b16 %v855
        %v1083 = vunpack.c.l.b16 %v856
        %v1084 = vunpack.c.h.b16 %v856
        %v1085 = vunpack.c.l.b16 %v857
        %v1086 = vunpack.c.h.b16 %v857
        %v1087 = vunpack.c.l.b16 %v858
        %v1088 = vunpack.c.h.b16 %v858
        %v1089 = vunpack.c.l.b16 %v859
        %v1090 = vunpack.c.h.b16 %v859
        %v1091 = vunpack.c.l.b16 %v860
        %v1092 = vunpack.c.h.b16 %v860
        %v1093 = vunpack.c.l.b16 %v861
        %v1094 = vunpack.c.h.b16 %v861
        %v1095 = vunpack.c.l.b16 %v862
        %v1096 = vunpack.c.h.b16 %v862
        %v1097 = vunpack.c.l.b16 %v863
        %v1098 = vunpack.c.h.b16 %v863
        %v1099 = vunpack.c.l.b16 %v864
        %v1100 = vunpack.c.h.b16 %v864
        %v1101 = vunpack.c.l.b16 %v865
        %v1102 = vunpack.c.h.b16 %v865
        %v1103 = vunpack.c.l.b16 %v866
        %v1104 = vunpack.c.h.b16 %v866
        %v1105 = vunpack.c.l.b16 %v867
        %v1106 = vunpack.c.h.b16 %v867
        %v1107 = vunpack.c.l.b16 %v868
        %v1108 = vunpack.c.h.b16 %v868
        %v1109 = vunpack.c.l.b16 %v869
        %v1110 = vunpack.c.h.b16 %v869
        %v1111 = vunpack.c.l.b16 %v870
        %v1112 = vunpack.c.h.b16 %v870
        %v1113 = vunpack.c.l.b16 %v871
        %v1114 = vunpack.c.h.b16 %v871
        %v1115 = vunpack.c.l.b16 %v872
        %v1116 = vunpack.c.h.b16 %v872
        %v1117 = vunpack.c.l.b16 %v873
        %v1118 = vunpack.c.h.b16 %v873
        %v1119 = vunpack.c.l.b16 %v874
        %v1120 = vunpack.c.h.b16 %v874
        %v1121 = vunpack.c.l.b16 %v875
        %v1122 = vunpack.c.h.b16 %v875
        %v1123 = vunpack.c.l.b16 %v876
        %v1124 = vunpack.c.h.b16 %v876
        %v1125 = vunpack.c.l.b16 %v877
        %v1126 = vunpack.c.h.b16 %v877
        %v1127 = vunpack.c.l.b16 %v878
        %v1128 = vunpack.c.h.b16 %v878
        %v1129 = vunpack.c.l.b16 %v879
        %v1130 = vunpack.c.h.b16 %v879
        %v1131 = vunpack.c.l.b16 %v880
        %v1132 = vunpack.c.h.b16 %v880
        %v1133 = vunpack.c.l.b16 %v881
        %v1134 = vunpack.c.h.b16 %v881
        %v1135 = vunpack.c.l.b16 %v882
        %v1136 = vunpack.c.h.b16 %v882
        %v1137 = vunpack.c.l.b16 %v883
        %v1138 = vunpack.c.h.b16 %v883
        %v1139 = vunpack.c.l.b16 %v884
        %v1140 = vunpack.c.h.b16 %v884
        %v1141 = vpack.c.b16 %v1015, %v1013
        %v1142 = vpack.c.b16 %v1016, %v1014
        %v1143 = vpack.c.b16 %v1019, %v1017
        %v1144 = vpack.c.b16 %v1020, %v1018
        %v1145 = vpack.c.b16 %v1023, %v1021
        %v1146 = vpack.c.b16 %v1024, %v1022
        %v1147 = vpack.c.b16 %v1027, %v1025
        %v1148 = vpack.c.b16 %v1028, %v1026
        %v1149 = vpack.c.b16 %v1031, %v1029
        %v1150 = vpack.c.b16 %v1032, %v1030
        %v1151 = vpack.c.b16 %v1035, %v1033
        %v1152 = vpack.c.b16 %v1036, %v1034
        %v1153 = vpack.c.b16 %v1039, %v1037
        %v1154 = vpack.c.b16 %v1040, %v1038
        %v1155 = vpack.c.b16 %v1043, %v1041
        %v1156 = vpack.c.b16 %v1044, %v1042
        %v1157 = vpack.c.b16 %v1047, %v1045
        %v1158 = vpack.c.b16 %v1048, %v1046
        %v1159 = vpack.c.b16 %v1051, %v1049
        %v1160 = vpack.c.b16 %v1052, %v1050
        %v1161 = vpack.c.b16 %v1055, %v1053
        %v1162 = vpack.c.b16 %v1056, %v1054
        %v1163 = vpack.c.b16 %v1059, %v1057
        %v1164 = vpack.c.b16 %v1060, %v1058
        %v1165 = vpack.c.b16 %v1063, %v1061
        %v1166 = vpack.c.b16 %v1064, %v1062
        %v1167 = vpack.c.b16 %v1067, %v1065
        %v1168 = vpack.c.b16 %v1068, %v1066
        %v1169 = vpack.c.b16 %v1071, %v1069
        %v1170 = vpack.c.b16 %v1072, %v1070
        %v1171 = vpack.c.b16 %v1075, %v1073
        %v1172 = vpack.c.b16 %v1076, %v1074
        %v1173 = vpack.c.b16 %v1079, %v1077
        %v1174 = vpack.c.b16 %v1080, %v1078
        %v1175 = vpack.c.b16 %v1083, %v1081
        %v1176 = vpack.c.b16 %v1084, %v1082
        %v1177 = vpack.c.b16 %v1087, %v1085
        %v1178 = vpack.c.b16 %v1088, %v1086
        %v1179 = vpack.c.b16 %v1091, %v1089
        %v1180 = vpack.c.b16 %v1092, %v1090
        %v1181 = vpack.c.b16 %v1095, %v1093
        %v1182 = vpack.c.b16 %v1096, %v1094
        %v1183 = vpack.c.b16 %v1099, %v1097
        %v1184 = vpack.c.b16 %v1100, %v1098
        %v1185 = vpack.c.b16 %v1103, %v1101
        %v1186 = vpack.c.b16 %v1104, %v1102
        %v1187 = vpack.c.b16 %v1107, %v1105
        %v1188 = vpack.c.b16 %v1108, %v1106
        %v1189 = vpack.c.b16 %v1111, %v1109
        %v1190 = vpack.c.b16 %v1112, %v1110
        %v1191 = vpack.c.b16 %v1115, %v1113
        %v1192 = vpack.c.b16 %v1116, %v1114
        %v1193 = vpack.c.b16 %v1119, %v1117
        %v1194 = vpack.c.b16 %v1120, %v1118
        %v1195 = vpack.c.b16 %v1123, %v1121
        %v1196 = vpack.c.b16 %v1124, %v1122
        %v1197 = vpack.c.b16 %v1127, %v1125
        %v1198 = vpack.c.b16 %v1128, %v1126
        %v1199 = vpack.c.b16 %v1131, %v1129
        %v1200 = vpack.c.b16 %v1132, %v1130
        %v1201 = vpack.c.b16 %v1135, %v1133
        %v1202 = vpack.c.b16 %v1136, %v1134
        %v1203 = vpack.c.b16 %v1139, %v1137
        %v1204 = vpack.c.b16 %v1140, %v1138
        %v1333 = vunpack.c.l.b16 %v885
        %v1334 = vunpack.c.h.b16 %v885
        %v1335 = vunpack.c.l.b16 %v886
        %v1336 = vunpack.c.h.b16 %v886
        %v1337 = vunpack.c.l.b16 %v887
        %v1338 = vunpack.c.h.b16 %v887
        %v1339 = vunpack.c.l.b16 %v888
        %v1340 = vunpack.c.h.b16 %v888
        %v1341 = vunpack.c.l.b16 %v889
        %v1342 = vunpack.c.h.b16 %v889
        %v1343 = vunpack.c.l.b16 %v890
        %v1344 = vunpack.c.h.b16 %v890
        %v1345 = vunpack.c.l.b16 %v891
        %v1346 = vunpack.c.h.b16 %v891
        %v1347 = vunpack.c.l.b16 %v892
        %v1348 = vunpack.c.h.b16 %v892
        %v1349 = vunpack.c.l.b16 %v893
        %v1350 = vunpack.c.h.b16 %v893
        %v1351 = vunpack.c.l.b16 %v894
        %v1352 = vunpack.c.h.b16 %v894
        %v1353 = vunpack.c.l.b16 %v895
        %v1354 = vunpack.c.h.b16 %v895
        %v1355 = vunpack.c.l.b16 %v896
        %v1356 = vunpack.c.h.b16 %v896
        %v1357 = vunpack.c.l.b16 %v897
        %v1358 = vunpack.c.h.b16 %v897
        %v1359 = vunpack.c.l.b16 %v898
        %v1360 = vunpack.c.h.b16 %v898
        %v1361 = vunpack.c.l.b16 %v899
        %v1362 = vunpack.c.h.b16 %v899
        %v1363 = vunpack.c.l.b16 %v900
        %v1364 = vunpack.c.h.b16 %v900
        %v1365 = vunpack.c.l.b16 %v901
        %v1366 = vunpack.c.h.b16 %v901
        %v1367 = vunpack.c.l.b16 %v902
        %v1368 = vunpack.c.h.b16 %v902
        %v1369 = vunpack.c.l.b16 %v903
        %v1370 = vunpack.c.h.b16 %v903
        %v1371 = vunpack.c.l.b16 %v904
        %v1372 = vunpack.c.h.b16 %v904
        %v1373 = vunpack.c.l.b16 %v905
        %v1374 = vunpack.c.h.b16 %v905
        %v1375 = vunpack.c.l.b16 %v906
        %v1376 = vunpack.c.h.b16 %v906
        %v1377 = vunpack.c.l.b16 %v907
        %v1378 = vunpack.c.h.b16 %v907
        %v1379 = vunpack.c.l.b16 %v908
        %v1380 = vunpack.c.h.b16 %v908
        %v1381 = vunpack.c.l.b16 %v909
        %v1382 = vunpack.c.h.b16 %v909
        %v1383 = vunpack.c.l.b16 %v910
        %v1384 = vunpack.c.h.b16 %v910
        %v1385 = vunpack.c.l.b16 %v911
        %v1386 = vunpack.c.h.b16 %v911
        %v1387 = vunpack.c.l.b16 %v912
        %v1388 = vunpack.c.h.b16 %v912
        %v1389 = vunpack.c.l.b16 %v913
        %v1390 = vunpack.c.h.b16 %v913
        %v1391 = vunpack.c.l.b16 %v914
        %v1392 = vunpack.c.h.b16 %v914
        %v1393 = vunpack.c.l.b16 %v915
        %v1394 = vunpack.c.h.b16 %v915
        %v1395 = vunpack.c.l.b16 %v916
        %v1396 = vunpack.c.h.b16 %v916
        %v1397 = vunpack.c.l.b16 %v917
        %v1398 = vunpack.c.h.b16 %v917
        %v1399 = vunpack.c.l.b16 %v918
        %v1400 = vunpack.c.h.b16 %v918
        %v1401 = vunpack.c.l.b16 %v919
        %v1402 = vunpack.c.h.b16 %v919
        %v1403 = vunpack.c.l.b16 %v920
        %v1404 = vunpack.c.h.b16 %v920
        %v1405 = vunpack.c.l.b16 %v921
        %v1406 = vunpack.c.h.b16 %v921
        %v1407 = vunpack.c.l.b16 %v922
        %v1408 = vunpack.c.h.b16 %v922
        %v1409 = vunpack.c.l.b16 %v923
        %v1410 = vunpack.c.h.b16 %v923
        %v1411 = vunpack.c.l.b16 %v924
        %v1412 = vunpack.c.h.b16 %v924
        %v1413 = vunpack.c.l.b16 %v925
        %v1414 = vunpack.c.h.b16 %v925
        %v1415 = vunpack.c.l.b16 %v926
        %v1416 = vunpack.c.h.b16 %v926
        %v1417 = vunpack.c.l.b16 %v927
        %v1418 = vunpack.c.h.b16 %v927
        %v1419 = vunpack.c.l.b16 %v928
        %v1420 = vunpack.c.h.b16 %v928
        %v1421 = vunpack.c.l.b16 %v929
        %v1422 = vunpack.c.h.b16 %v929
        %v1423 = vunpack.c.l.b16 %v930
        %v1424 = vunpack.c.h.b16 %v930
        %v1425 = vunpack.c.l.b16 %v931
        %v1426 = vunpack.c.h.b16 %v931
        %v1427 = vunpack.c.l.b16 %v932
        %v1428 = vunpack.c.h.b16 %v932
        %v1429 = vunpack.c.l.b16 %v933
        %v1430 = vunpack.c.h.b16 %v933
        %v1431 = vunpack.c.l.b16 %v934
        %v1432 = vunpack.c.h.b16 %v934
        %v1433 = vunpack.c.l.b16 %v935
        %v1434 = vunpack.c.h.b16 %v935
        %v1435 = vunpack.c.l.b16 %v936
        %v1436 = vunpack.c.h.b16 %v936
        %v1437 = vunpack.c.l.b16 %v937
        %v1438 = vunpack.c.h.b16 %v937
        %v1439 = vunpack.c.l.b16 %v938
        %v1440 = vunpack.c.h.b16 %v938
        %v1441 = vunpack.c.l.b16 %v939
        %v1442 = vunpack.c.h.b16 %v939
        %v1443 = vunpack.c.l.b16 %v940
        %v1444 = vunpack.c.h.b16 %v940
        %v1445 = vunpack.c.l.b16 %v941
        %v1446 = vunpack.c.h.b16 %v941
        %v1447 = vunpack.c.l.b16 %v942
        %v1448 = vunpack.c.h.b16 %v942
        %v1449 = vunpack.c.l.b16 %v943
        %v1450 = vunpack.c.h.b16 %v943
        %v1451 = vunpack.c.l.b16 %v944
        %v1452 = vunpack.c.h.b16 %v944
        %v1453 = vunpack.c.l.b16 %v945
        %v1454 = vunpack.c.h.b16 %v945
        %v1455 = vunpack.c.l.b16 %v946
        %v1456 = vunpack.c.h.b16 %v946
        %v1457 = vunpack.c.l.b16 %v947
        %v1458 = vunpack.c.h.b16 %v947
        %v1459 = vunpack.c.l.b16 %v948
        %v1460 = vunpack.c.h.b16 %v948
        %v1461 = vpack.c.b16 %v1337, %v1333
        %v1462 = vpack.c.b16 %v1338, %v1334
        %v1463 = vpack.c.b16 %v1339, %v1335
        %v1464 = vpack.c.b16 %v1340, %v1336
        %v1465 = vpack.c.b16 %v1345, %v1341
        %v1466 = vpack.c.b16 %v1346, %v1342
        %v1467 = vpack.c.b16 %v1347, %v1343
        %v1468 = vpack.c.b16 %v1348, %v1344
        %v1469 = vpack.c.b16 %v1353, %v1349
        %v1470 = vpack.c.b16 %v1354, %v1350
        %v1471 = vpack.c.b16 %v1355, %v1351
        %v1472 = vpack.c.b16 %v1356, %v1352
        %v1473 = vpack.c.b16 %v1361, %v1357
        %v1474 = vpack.c.b16 %v1362, %v1358
        %v1475 = vpack.c.b16 %v1363, %v1359
        %v1476 = vpack.c.b16 %v1364, %v1360
        %v1477 = vpack.c.b16 %v1369, %v1365
        %v1478 = vpack.c.b16 %v1370, %v1366
        %v1479 = vpack.c.b16 %v1371, %v1367
        %v1480 = vpack.c.b16 %v1372, %v1368
        %v1481 = vpack.c.b16 %v1377, %v1373
        %v1482 = vpack.c.b16 %v1378, %v1374
        %v1483 = vpack.c.b16 %v1379, %v1375
        %v1484 = vpack.c.b16 %v1380, %v1376
        %v1485 = vpack.c.b16 %v1385, %v1381
        %v1486 = vpack.c.b16 %v1386, %v1382
        %v1487 = vpack.c.b16 %v1387, %v1383
        %v1488 = vpack.c.b16 %v1388, %v1384
        %v1489 = vpack.c.b16 %v1393, %v1389
        %v1490 = vpack.c.b16 %v1394, %v1390
        %v1491 = vpack.c.b16 %v1395, %v1391
        %v1492 = vpack.c.b16 %v1396, %v1392
        %v1493 = vpack.c.b16 %v1401, %v1397
        %v1494 = vpack.c.b16 %v1402, %v1398
        %v1495 = vpack.c.b16 %v1403, %v1399
        %v1496 = vpack.c.b16 %v1404, %v1400
        %v1497 = vpack.c.b16 %v1409, %v1405
        %v1498 = vpack.c.b16 %v1410, %v1406
        %v1499 = vpack.c.b16 %v1411, %v1407
        %v1500 = vpack.c.b16 %v1412, %v1408
        %v1501 = vpack.c.b16 %v1417, %v1413
        %v1502 = vpack.c.b16 %v1418, %v1414
        %v1503 = vpack.c.b16 %v1419, %v1415
        %v1504 = vpack.c.b16 %v1420, %v1416
        %v1505 = vpack.c.b16 %v1425, %v1421
        %v1506 = vpack.c.b16 %v1426, %v1422
        %v1507 = vpack.c.b16 %v1427, %v1423
        %v1508 = vpack.c.b16 %v1428, %v1424
        %v1509 = vpack.c.b16 %v1433, %v1429
        %v1510 = vpack.c.b16 %v1434, %v1430
        %v1511 = vpack.c.b16 %v1435, %v1431
        %v1512 = vpack.c.b16 %v1436, %v1432
        %v1513 = vpack.c.b16 %v1441, %v1437
        %v1514 = vpack.c.b16 %v1442, %v1438
        %v1515 = vpack.c.b16 %v1443, %v1439
        %v1516 = vpack.c.b16 %v1444, %v1440
        %v1517 = vpack.c.b16 %v1449, %v1445
        %v1518 = vpack.c.b16 %v1450, %v1446
        %v1519 = vpack.c.b16 %v1451, %v1447
        %v1520 = vpack.c.b16 %v1452, %v1448
        %v1521 = vpack.c.b16 %v1457, %v1453
        %v1522 = vpack.c.b16 %v1458, %v1454
        %v1523 = vpack.c.b16 %v1459, %v1455
        %v1524 = vpack.c.b16 %v1460, %v1456
        %1589 = vmatprep.subr.bf16.mxu0 %v1462
        %1590 = vmatpush1.bf16.msra.mxu0 %v1461
        %1591 = vmatprep.subr.bf16.mxu0 %v1466
        %1592 = vmatpush1.bf16.msra.mxu0 %v1465
        %1593 = vmatprep.subr.bf16.mxu0 %v1470
        %1594 = vmatpush1.bf16.msra.mxu0 %v1469
        %1595 = vmatprep.subr.bf16.mxu0 %v1474
        %1596 = vmatpush1.bf16.msra.mxu0 %v1473
        %1597 = vmatprep.subr.bf16.mxu0 %v1478
        %1598 = vmatpush1.bf16.msra.mxu0 %v1477
        %1599 = vmatprep.subr.bf16.mxu0 %v1482
        %1600 = vmatpush1.bf16.msra.mxu0 %v1481
        %1601 = vmatprep.subr.bf16.mxu0 %v1486
        %1602 = vmatpush1.bf16.msra.mxu0 %v1485
        %1603 = vmatprep.subr.bf16.mxu0 %v1490
        %1604 = vmatpush1.bf16.msra.mxu0 %v1489
        %1605 = vmatprep.subr.bf16.mxu0 %v1494
        %1606 = vmatpush1.bf16.msra.mxu0 %v1493
        %1607 = vmatprep.subr.bf16.mxu0 %v1498
        %1608 = vmatpush1.bf16.msra.mxu0 %v1497
        %1609 = vmatprep.subr.bf16.mxu0 %v1502
        %1610 = vmatpush1.bf16.msra.mxu0 %v1501
        %1611 = vmatprep.subr.bf16.mxu0 %v1506
        %1612 = vmatpush1.bf16.msra.mxu0 %v1505
        %1613 = vmatprep.subr.bf16.mxu0 %v1510
        %1614 = vmatpush1.bf16.msra.mxu0 %v1509
        %1615 = vmatprep.subr.bf16.mxu0 %v1514
        %1616 = vmatpush1.bf16.msra.mxu0 %v1513
        %1617 = vmatprep.subr.bf16.mxu0 %v1518
        %1618 = vmatpush1.bf16.msra.mxu0 %v1517
        %1619 = vmatprep.subr.bf16.mxu0 %v1522
        %1620 = vmatpush1.bf16.msra.mxu0 %v1521
        %1621 = vmatprep.mubr.bf16.mxu0 %v1142
        %1622 = vmatmul.mubr.bf16.gmra.mrb[0].mxu0 %v1141
        %v1623 = vpop.f32.mrb[0].mxu0
        %v1624 = vadd.f32 0.0, %v1623
        %v1625 = vpop.f32.mrb[0].mxu0
        %v1626 = vadd.f32 0.0, %v1625
        %v1627 = vpop.f32.mrb[0].mxu0
        %v1628 = vadd.f32 0.0, %v1627
        %v1629 = vpop.f32.mrb[0].mxu0
        %v1630 = vadd.f32 0.0, %v1629
        %1631 = vmatprep.mubr.bf16.mxu0 %v1144
        %1632 = vmatmul.mubr.bf16.gmra.mrb[0].mxu0 %v1143
        %v1633 = vpop.f32.mrb[0].mxu0
        %v1634 = vadd.f32 0.0, %v1633
        %v1635 = vpop.f32.mrb[0].mxu0
        %v1636 = vadd.f32 0.0, %v1635
        %v1637 = vpop.f32.mrb[0].mxu0
        %v1638 = vadd.f32 0.0, %v1637
        %v1639 = vpop.f32.mrb[0].mxu0
        %v1640 = vadd.f32 0.0, %v1639
        %1641 = vmatprep.mubr.bf16.mxu0 %v1146
        %1642 = vmatmul.mubr.bf16.gmra.mrb[0].mxu0 %v1145
        %v1643 = vpop.f32.mrb[0].mxu0
        %v1644 = vadd.f32 0.0, %v1643
        %v1645 = vpop.f32.mrb[0].mxu0
        %v1646 = vadd.f32 0.0, %v1645
        %v1647 = vpop.f32.mrb[0].mxu0
        %v1648 = vadd.f32 0.0, %v1647
        %v1649 = vpop.f32.mrb[0].mxu0
        %v1650 = vadd.f32 0.0, %v1649
        %1651 = vmatprep.mubr.bf16.mxu0 %v1148
        %1652 = vmatmul.mubr.bf16.gmra.mrb[0].mxu0 %v1147
        %v1653 = vpop.f32.mrb[0].mxu0
        %v1654 = vadd.f32 0.0, %v1653
        %v1655 = vpop.f32.mrb[0].mxu0
        %v1656 = vadd.f32 0.0, %v1655
        %v1657 = vpop.f32.mrb[0].mxu0
        %v1658 = vadd.f32 0.0, %v1657
        %v1659 = vpop.f32.mrb[0].mxu0
        %v1660 = vadd.f32 0.0, %v1659
        %1661 = vmatprep.mubr.bf16.mxu0 %v1150
        %1662 = vmatmul.mubr.bf16.gmra.mrb[0].mxu0 %v1149
        %v1663 = vpop.f32.mrb[0].mxu0
        %v1664 = vadd.f32 0.0, %v1663
        %v1665 = vpop.f32.mrb[0].mxu0
        %v1666 = vadd.f32 0.0, %v1665
        %v1667 = vpop.f32.mrb[0].mxu0
        %v1668 = vadd.f32 0.0, %v1667
        %v1669 = vpop.f32.mrb[0].mxu0
        %v1670 = vadd.f32 0.0, %v1669
        %1671 = vmatprep.mubr.bf16.mxu0 %v1152
        %1672 = vmatmul.mubr.bf16.gmra.mrb[0].mxu0 %v1151
        %v1673 = vpop.f32.mrb[0].mxu0
        %v1674 = vadd.f32 0.0, %v1673
        %v1675 = vpop.f32.mrb[0].mxu0
        %v1676 = vadd.f32 0.0, %v1675
        %v1677 = vpop.f32.mrb[0].mxu0
        %v1678 = vadd.f32 0.0, %v1677
        %v1679 = vpop.f32.mrb[0].mxu0
        %v1680 = vadd.f32 0.0, %v1679
        %1681 = vmatprep.mubr.bf16.mxu0 %v1154
        %1682 = vmatmul.mubr.bf16.gmra.mrb[0].mxu0 %v1153
        %v1683 = vpop.f32.mrb[0].mxu0
        %v1684 = vadd.f32 0.0, %v1683
        %v1685 = vpop.f32.mrb[0].mxu0
        %v1686 = vadd.f32 0.0, %v1685
        %v1687 = vpop.f32.mrb[0].mxu0
        %v1688 = vadd.f32 0.0, %v1687
        %v1689 = vpop.f32.mrb[0].mxu0
        %v1690 = vadd.f32 0.0, %v1689
        %1691 = vmatprep.mubr.bf16.mxu0 %v1156
        %1692 = vmatmul.mubr.bf16.gmra.mrb[0].mxu0 %v1155
        %v1693 = vpop.f32.mrb[0].mxu0
        %v1694 = vadd.f32 0.0, %v1693
        %v1695 = vpop.f32.mrb[0].mxu0
        %v1696 = vadd.f32 0.0, %v1695
        %v1697 = vpop.f32.mrb[0].mxu0
        %v1698 = vadd.f32 0.0, %v1697
        %v1699 = vpop.f32.mrb[0].mxu0
        %v1700 = vadd.f32 0.0, %v1699
        %1701 = vmatprep.mubr.bf16.mxu0 %v1158
        %1702 = vmatmul.mubr.bf16.gmra.mrb[0].mxu0 %v1157
        %v1703 = vpop.f32.mrb[0].mxu0
        %v1704 = vadd.f32 0.0, %v1703
        %v1705 = vpop.f32.mrb[0].mxu0
        %v1706 = vadd.f32 0.0, %v1705
        %v1707 = vpop.f32.mrb[0].mxu0
        %v1708 = vadd.f32 0.0, %v1707
        %v1709 = vpop.f32.mrb[0].mxu0
        %v1710 = vadd.f32 0.0, %v1709
        %1711 = vmatprep.mubr.bf16.mxu0 %v1160
        %1712 = vmatmul.mubr.bf16.gmra.mrb[0].mxu0 %v1159
        %v1713 = vpop.f32.mrb[0].mxu0
        %v1714 = vadd.f32 0.0, %v1713
        %v1715 = vpop.f32.mrb[0].mxu0
        %v1716 = vadd.f32 0.0, %v1715
        %v1717 = vpop.f32.mrb[0].mxu0
        %v1718 = vadd.f32 0.0, %v1717
        %v1719 = vpop.f32.mrb[0].mxu0
        %v1720 = vadd.f32 0.0, %v1719
        %1721 = vmatprep.mubr.bf16.mxu0 %v1162
        %1722 = vmatmul.mubr.bf16.gmra.mrb[0].mxu0 %v1161
        %v1723 = vpop.f32.mrb[0].mxu0
        %v1724 = vadd.f32 0.0, %v1723
        %v1725 = vpop.f32.mrb[0].mxu0
        %v1726 = vadd.f32 0.0, %v1725
        %v1727 = vpop.f32.mrb[0].mxu0
        %v1728 = vadd.f32 0.0, %v1727
        %v1729 = vpop.f32.mrb[0].mxu0
        %v1730 = vadd.f32 0.0, %v1729
        %1731 = vmatprep.mubr.bf16.mxu0 %v1164
        %1732 = vmatmul.mubr.bf16.gmra.mrb[0].mxu0 %v1163
        %v1733 = vpop.f32.mrb[0].mxu0
        %v1734 = vadd.f32 0.0, %v1733
        %v1735 = vpop.f32.mrb[0].mxu0
        %v1736 = vadd.f32 0.0, %v1735
        %v1737 = vpop.f32.mrb[0].mxu0
        %v1738 = vadd.f32 0.0, %v1737
        %v1739 = vpop.f32.mrb[0].mxu0
        %v1740 = vadd.f32 0.0, %v1739
        %1741 = vmatprep.mubr.bf16.mxu0 %v1166
        %1742 = vmatmul.mubr.bf16.gmra.mrb[0].mxu0 %v1165
        %v1743 = vpop.f32.mrb[0].mxu0
        %v1744 = vadd.f32 0.0, %v1743
        %v1745 = vpop.f32.mrb[0].mxu0
        %v1746 = vadd.f32 0.0, %v1745
        %v1747 = vpop.f32.mrb[0].mxu0
        %v1748 = vadd.f32 0.0, %v1747
        %v1749 = vpop.f32.mrb[0].mxu0
        %v1750 = vadd.f32 0.0, %v1749
        %1751 = vmatprep.mubr.bf16.mxu0 %v1168
        %1752 = vmatmul.mubr.bf16.gmra.mrb[0].mxu0 %v1167
        %v1753 = vpop.f32.mrb[0].mxu0
        %v1754 = vadd.f32 0.0, %v1753
        %v1755 = vpop.f32.mrb[0].mxu0
        %v1756 = vadd.f32 0.0, %v1755
        %v1757 = vpop.f32.mrb[0].mxu0
        %v1758 = vadd.f32 0.0, %v1757
        %v1759 = vpop.f32.mrb[0].mxu0
        %v1760 = vadd.f32 0.0, %v1759
        %1761 = vmatprep.mubr.bf16.mxu0 %v1170
        %1762 = vmatmul.mubr.bf16.gmra.mrb[0].mxu0 %v1169
        %v1763 = vpop.f32.mrb[0].mxu0
        %v1764 = vadd.f32 0.0, %v1763
        %v1765 = vpop.f32.mrb[0].mxu0
        %v1766 = vadd.f32 0.0, %v1765
        %v1767 = vpop.f32.mrb[0].mxu0
        %v1768 = vadd.f32 0.0, %v1767
        %v1769 = vpop.f32.mrb[0].mxu0
        %v1770 = vadd.f32 0.0, %v1769
        %1771 = vmatprep.mubr.bf16.mxu0 %v1172
        %1772 = vmatmul.mubr.bf16.gmra.mrb[0].mxu0 %v1171
        %v1773 = vpop.f32.mrb[0].mxu0
        %v1774 = vadd.f32 0.0, %v1773
        %v1775 = vpop.f32.mrb[0].mxu0
        %v1776 = vadd.f32 0.0, %v1775
        %v1777 = vpop.f32.mrb[0].mxu0
        %v1778 = vadd.f32 0.0, %v1777
        %v1779 = vpop.f32.mrb[0].mxu0
        %v1780 = vadd.f32 0.0, %v1779
        %1781 = vmatprep.mubr.bf16.mxu0 %v1174
        %1782 = vmatmul.mubr.bf16.gmra.mrb[0].mxu0 %v1173
        %v1783 = vpop.f32.mrb[0].mxu0
        %v1784 = vadd.f32 0.0, %v1783
        %v1785 = vpop.f32.mrb[0].mxu0
        %v1786 = vadd.f32 0.0, %v1785
        %v1787 = vpop.f32.mrb[0].mxu0
        %v1788 = vadd.f32 0.0, %v1787
        %v1789 = vpop.f32.mrb[0].mxu0
        %v1790 = vadd.f32 0.0, %v1789
        %1791 = vmatprep.mubr.bf16.mxu0 %v1176
        %1792 = vmatmul.mubr.bf16.gmra.mrb[0].mxu0 %v1175
        %v1793 = vpop.f32.mrb[0].mxu0
        %v1794 = vadd.f32 0.0, %v1793
        %v1795 = vpop.f32.mrb[0].mxu0
        %v1796 = vadd.f32 0.0, %v1795
        %v1797 = vpop.f32.mrb[0].mxu0
        %v1798 = vadd.f32 0.0, %v1797
        %v1799 = vpop.f32.mrb[0].mxu0
        %v1800 = vadd.f32 0.0, %v1799
        %1801 = vmatprep.mubr.bf16.mxu0 %v1178
        %1802 = vmatmul.mubr.bf16.gmra.mrb[0].mxu0 %v1177
        %v1803 = vpop.f32.mrb[0].mxu0
        %v1804 = vadd.f32 0.0, %v1803
        %v1805 = vpop.f32.mrb[0].mxu0
        %v1806 = vadd.f32 0.0, %v1805
        %v1807 = vpop.f32.mrb[0].mxu0
        %v1808 = vadd.f32 0.0, %v1807
        %v1809 = vpop.f32.mrb[0].mxu0
        %v1810 = vadd.f32 0.0, %v1809
        %1811 = vmatprep.mubr.bf16.mxu0 %v1180
        %1812 = vmatmul.mubr.bf16.gmra.mrb[0].mxu0 %v1179
        %v1813 = vpop.f32.mrb[0].mxu0
        %v1814 = vadd.f32 0.0, %v1813
        %v1815 = vpop.f32.mrb[0].mxu0
        %v1816 = vadd.f32 0.0, %v1815
        %v1817 = vpop.f32.mrb[0].mxu0
        %v1818 = vadd.f32 0.0, %v1817
        %v1819 = vpop.f32.mrb[0].mxu0
        %v1820 = vadd.f32 0.0, %v1819
        %1821 = vmatprep.mubr.bf16.mxu0 %v1182
        %1822 = vmatmul.mubr.bf16.gmra.mrb[0].mxu0 %v1181
        %v1823 = vpop.f32.mrb[0].mxu0
        %v1824 = vadd.f32 0.0, %v1823
        %v1825 = vpop.f32.mrb[0].mxu0
        %v1826 = vadd.f32 0.0, %v1825
        %v1827 = vpop.f32.mrb[0].mxu0
        %v1828 = vadd.f32 0.0, %v1827
        %v1829 = vpop.f32.mrb[0].mxu0
        %v1830 = vadd.f32 0.0, %v1829
        %1831 = vmatprep.mubr.bf16.mxu0 %v1184
        %1832 = vmatmul.mubr.bf16.gmra.mrb[0].mxu0 %v1183
        %v1833 = vpop.f32.mrb[0].mxu0
        %v1834 = vadd.f32 0.0, %v1833
        %v1835 = vpop.f32.mrb[0].mxu0
        %v1836 = vadd.f32 0.0, %v1835
        %v1837 = vpop.f32.mrb[0].mxu0
        %v1838 = vadd.f32 0.0, %v1837
        %v1839 = vpop.f32.mrb[0].mxu0
        %v1840 = vadd.f32 0.0, %v1839
        %1841 = vmatprep.mubr.bf16.mxu0 %v1186
        %1842 = vmatmul.mubr.bf16.gmra.mrb[0].mxu0 %v1185
        %v1843 = vpop.f32.mrb[0].mxu0
        %v1844 = vadd.f32 0.0, %v1843
        %v1845 = vpop.f32.mrb[0].mxu0
        %v1846 = vadd.f32 0.0, %v1845
        %v1847 = vpop.f32.mrb[0].mxu0
        %v1848 = vadd.f32 0.0, %v1847
        %v1849 = vpop.f32.mrb[0].mxu0
        %v1850 = vadd.f32 0.0, %v1849
        %1851 = vmatprep.mubr.bf16.mxu0 %v1188
        %1852 = vmatmul.mubr.bf16.gmra.mrb[0].mxu0 %v1187
        %v1853 = vpop.f32.mrb[0].mxu0
        %v1854 = vadd.f32 0.0, %v1853
        %v1855 = vpop.f32.mrb[0].mxu0
        %v1856 = vadd.f32 0.0, %v1855
        %v1857 = vpop.f32.mrb[0].mxu0
        %v1858 = vadd.f32 0.0, %v1857
        %v1859 = vpop.f32.mrb[0].mxu0
        %v1860 = vadd.f32 0.0, %v1859
        %1861 = vmatprep.mubr.bf16.mxu0 %v1190
        %1862 = vmatmul.mubr.bf16.gmra.mrb[0].mxu0 %v1189
        %v1863 = vpop.f32.mrb[0].mxu0
        %v1864 = vadd.f32 0.0, %v1863
        %v1865 = vpop.f32.mrb[0].mxu0
        %v1866 = vadd.f32 0.0, %v1865
        %v1867 = vpop.f32.mrb[0].mxu0
        %v1868 = vadd.f32 0.0, %v1867
        %v1869 = vpop.f32.mrb[0].mxu0
        %v1870 = vadd.f32 0.0, %v1869
        %1871 = vmatprep.mubr.bf16.mxu0 %v1192
        %1872 = vmatmul.mubr.bf16.gmra.mrb[0].mxu0 %v1191
        %v1873 = vpop.f32.mrb[0].mxu0
        %v1874 = vadd.f32 0.0, %v1873
        %v1875 = vpop.f32.mrb[0].mxu0
        %v1876 = vadd.f32 0.0, %v1875
        %v1877 = vpop.f32.mrb[0].mxu0
        %v1878 = vadd.f32 0.0, %v1877
        %v1879 = vpop.f32.mrb[0].mxu0
        %v1880 = vadd.f32 0.0, %v1879
        %1881 = vmatprep.mubr.bf16.mxu0 %v1194
        %1882 = vmatmul.mubr.bf16.gmra.mrb[0].mxu0 %v1193
        %v1883 = vpop.f32.mrb[0].mxu0
        %v1884 = vadd.f32 0.0, %v1883
        %v1885 = vpop.f32.mrb[0].mxu0
        %v1886 = vadd.f32 0.0, %v1885
        %v1887 = vpop.f32.mrb[0].mxu0
        %v1888 = vadd.f32 0.0, %v1887
        %v1889 = vpop.f32.mrb[0].mxu0
        %v1890 = vadd.f32 0.0, %v1889
        %1891 = vmatprep.mubr.bf16.mxu0 %v1196
        %1892 = vmatmul.mubr.bf16.gmra.mrb[0].mxu0 %v1195
        %v1893 = vpop.f32.mrb[0].mxu0
        %v1894 = vadd.f32 0.0, %v1893
        %v1895 = vpop.f32.mrb[0].mxu0
        %v1896 = vadd.f32 0.0, %v1895
        %v1897 = vpop.f32.mrb[0].mxu0
        %v1898 = vadd.f32 0.0, %v1897
        %v1899 = vpop.f32.mrb[0].mxu0
        %v1900 = vadd.f32 0.0, %v1899
        %1901 = vmatprep.mubr.bf16.mxu0 %v1198
        %1902 = vmatmul.mubr.bf16.gmra.mrb[0].mxu0 %v1197
        %v1903 = vpop.f32.mrb[0].mxu0
        %v1904 = vadd.f32 0.0, %v1903
        %v1905 = vpop.f32.mrb[0].mxu0
        %v1906 = vadd.f32 0.0, %v1905
        %v1907 = vpop.f32.mrb[0].mxu0
        %v1908 = vadd.f32 0.0, %v1907
        %v1909 = vpop.f32.mrb[0].mxu0
        %v1910 = vadd.f32 0.0, %v1909
        %1911 = vmatprep.mubr.bf16.mxu0 %v1200
        %1912 = vmatmul.mubr.bf16.gmra.mrb[0].mxu0 %v1199
        %v1913 = vpop.f32.mrb[0].mxu0
        %v1914 = vadd.f32 0.0, %v1913
        %v1915 = vpop.f32.mrb[0].mxu0
        %v1916 = vadd.f32 0.0, %v1915
        %v1917 = vpop.f32.mrb[0].mxu0
        %v1918 = vadd.f32 0.0, %v1917
        %v1919 = vpop.f32.mrb[0].mxu0
        %v1920 = vadd.f32 0.0, %v1919
        %1921 = vmatprep.mubr.bf16.mxu0 %v1202
        %1922 = vmatmul.mubr.bf16.gmra.mrb[0].mxu0 %v1201
        %v1923 = vpop.f32.mrb[0].mxu0
        %v1924 = vadd.f32 0.0, %v1923
        %v1925 = vpop.f32.mrb[0].mxu0
        %v1926 = vadd.f32 0.0, %v1925
        %v1927 = vpop.f32.mrb[0].mxu0
        %v1928 = vadd.f32 0.0, %v1927
        %v1929 = vpop.f32.mrb[0].mxu0
        %v1930 = vadd.f32 0.0, %v1929
        %1931 = vmatprep.mubr.bf16.mxu0 %v1204
        %1932 = vmatmul.mubr.bf16.gmra.mrb[0].mxu0 %v1203
        %v1933 = vpop.f32.mrb[0].mxu0
        %v1934 = vadd.f32 0.0, %v1933
        %v1935 = vpop.f32.mrb[0].mxu0
        %v1936 = vadd.f32 0.0, %v1935
        %v1937 = vpop.f32.mrb[0].mxu0
        %v1938 = vadd.f32 0.0, %v1937
        %v1939 = vpop.f32.mrb[0].mxu0
        %v1940 = vadd.f32 0.0, %v1939
        %1941 = vdwg.mxu0
        %1942 = vmatprep.subr.bf16.mxu0 %v1464
        %1943 = vmatpush1.bf16.msra.mxu0 %v1463
        %1944 = vmatprep.subr.bf16.mxu0 %v1468
        %1945 = vmatpush1.bf16.msra.mxu0 %v1467
        %1946 = vmatprep.subr.bf16.mxu0 %v1472
        %1947 = vmatpush1.bf16.msra.mxu0 %v1471
        %1948 = vmatprep.subr.bf16.mxu0 %v1476
        %1949 = vmatpush1.bf16.msra.mxu0 %v1475
        %1950 = vmatprep.subr.bf16.mxu0 %v1480
        %1951 = vmatpush1.bf16.msra.mxu0 %v1479
        %1952 = vmatprep.subr.bf16.mxu0 %v1484
        %1953 = vmatpush1.bf16.msra.mxu0 %v1483
        %1954 = vmatprep.subr.bf16.mxu0 %v1488
        %1955 = vmatpush1.bf16.msra.mxu0 %v1487
        %1956 = vmatprep.subr.bf16.mxu0 %v1492
        %1957 = vmatpush1.bf16.msra.mxu0 %v1491
        %1958 = vmatprep.subr.bf16.mxu0 %v1496
        %1959 = vmatpush1.bf16.msra.mxu0 %v1495
        %1960 = vmatprep.subr.bf16.mxu0 %v1500
        %1961 = vmatpush1.bf16.msra.mxu0 %v1499
        %1962 = vmatprep.subr.bf16.mxu0 %v1504
        %1963 = vmatpush1.bf16.msra.mxu0 %v1503
        %1964 = vmatprep.subr.bf16.mxu0 %v1508
        %1965 = vmatpush1.bf16.msra.mxu0 %v1507
        %1966 = vmatprep.subr.bf16.mxu0 %v1512
        %1967 = vmatpush1.bf16.msra.mxu0 %v1511
        %1968 = vmatprep.subr.bf16.mxu0 %v1516
        %1969 = vmatpush1.bf16.msra.mxu0 %v1515
        %1970 = vmatprep.subr.bf16.mxu0 %v1520
        %1971 = vmatpush1.bf16.msra.mxu0 %v1519
        %1972 = vmatprep.subr.bf16.mxu0 %v1524
        %1973 = vmatpush1.bf16.msra.mxu0 %v1523
        %1974 = vmatprep.mubr.bf16.mxu0 %v1142
        %1975 = vmatmul.mubr.bf16.gmra.mrb[0].mxu0 %v1141
        %v1976 = vpop.f32.mrb[0].mxu0
        %v1977 = vadd.f32 0.0, %v1976
        %v1978 = vpop.f32.mrb[0].mxu0
        %v1979 = vadd.f32 0.0, %v1978
        %v1980 = vpop.f32.mrb[0].mxu0
        %v1981 = vadd.f32 0.0, %v1980
        %v1982 = vpop.f32.mrb[0].mxu0
        %v1983 = vadd.f32 0.0, %v1982
        %1984 = vmatprep.mubr.bf16.mxu0 %v1144
        %1985 = vmatmul.mubr.bf16.gmra.mrb[0].mxu0 %v1143
        %v1986 = vpop.f32.mrb[0].mxu0
        %v1987 = vadd.f32 0.0, %v1986
        %v1988 = vpop.f32.mrb[0].mxu0
        %v1989 = vadd.f32 0.0, %v1988
        %v1990 = vpop.f32.mrb[0].mxu0
        %v1991 = vadd.f32 0.0, %v1990
        %v1992 = vpop.f32.mrb[0].mxu0
        %v1993 = vadd.f32 0.0, %v1992
        %1994 = vmatprep.mubr.bf16.mxu0 %v1146
        %1995 = vmatmul.mubr.bf16.gmra.mrb[0].mxu0 %v1145
        %v1996 = vpop.f32.mrb[0].mxu0
        %v1997 = vadd.f32 0.0, %v1996
        %v1998 = vpop.f32.mrb[0].mxu0
        %v1999 = vadd.f32 0.0, %v1998
        %v2000 = vpop.f32.mrb[0].mxu0
        %v2001 = vadd.f32 0.0, %v2000
        %v2002 = vpop.f32.mrb[0].mxu0
        %v2003 = vadd.f32 0.0, %v2002
        %2004 = vmatprep.mubr.bf16.mxu0 %v1148
        %2005 = vmatmul.mubr.bf16.gmra.mrb[0].mxu0 %v1147
        %v2006 = vpop.f32.mrb[0].mxu0
        %v2007 = vadd.f32 0.0, %v2006
        %v2008 = vpop.f32.mrb[0].mxu0
        %v2009 = vadd.f32 0.0, %v2008
        %v2010 = vpop.f32.mrb[0].mxu0
        %v2011 = vadd.f32 0.0, %v2010
        %v2012 = vpop.f32.mrb[0].mxu0
        %v2013 = vadd.f32 0.0, %v2012
        %2014 = vmatprep.mubr.bf16.mxu0 %v1150
        %2015 = vmatmul.mubr.bf16.gmra.mrb[0].mxu0 %v1149
        %v2016 = vpop.f32.mrb[0].mxu0
        %v2017 = vadd.f32 0.0, %v2016
        %v2018 = vpop.f32.mrb[0].mxu0
        %v2019 = vadd.f32 0.0, %v2018
        %v2020 = vpop.f32.mrb[0].mxu0
        %v2021 = vadd.f32 0.0, %v2020
        %v2022 = vpop.f32.mrb[0].mxu0
        %v2023 = vadd.f32 0.0, %v2022
        %2024 = vmatprep.mubr.bf16.mxu0 %v1152
        %2025 = vmatmul.mubr.bf16.gmra.mrb[0].mxu0 %v1151
        %v2026 = vpop.f32.mrb[0].mxu0
        %v2027 = vadd.f32 0.0, %v2026
        %v2028 = vpop.f32.mrb[0].mxu0
        %v2029 = vadd.f32 0.0, %v2028
        %v2030 = vpop.f32.mrb[0].mxu0
        %v2031 = vadd.f32 0.0, %v2030
        %v2032 = vpop.f32.mrb[0].mxu0
        %v2033 = vadd.f32 0.0, %v2032
        %2034 = vmatprep.mubr.bf16.mxu0 %v1154
        %2035 = vmatmul.mubr.bf16.gmra.mrb[0].mxu0 %v1153
        %v2036 = vpop.f32.mrb[0].mxu0
        %v2037 = vadd.f32 0.0, %v2036
        %v2038 = vpop.f32.mrb[0].mxu0
        %v2039 = vadd.f32 0.0, %v2038
        %v2040 = vpop.f32.mrb[0].mxu0
        %v2041 = vadd.f32 0.0, %v2040
        %v2042 = vpop.f32.mrb[0].mxu0
        %v2043 = vadd.f32 0.0, %v2042
        %2044 = vmatprep.mubr.bf16.mxu0 %v1156
        %2045 = vmatmul.mubr.bf16.gmra.mrb[0].mxu0 %v1155
        %v2046 = vpop.f32.mrb[0].mxu0
        %v2047 = vadd.f32 0.0, %v2046
        %v2048 = vpop.f32.mrb[0].mxu0
        %v2049 = vadd.f32 0.0, %v2048
        %v2050 = vpop.f32.mrb[0].mxu0
        %v2051 = vadd.f32 0.0, %v2050
        %v2052 = vpop.f32.mrb[0].mxu0
        %v2053 = vadd.f32 0.0, %v2052
        %2054 = vmatprep.mubr.bf16.mxu0 %v1158
        %2055 = vmatmul.mubr.bf16.gmra.mrb[0].mxu0 %v1157
        %v2056 = vpop.f32.mrb[0].mxu0
        %v2057 = vadd.f32 0.0, %v2056
        %v2058 = vpop.f32.mrb[0].mxu0
        %v2059 = vadd.f32 0.0, %v2058
        %v2060 = vpop.f32.mrb[0].mxu0
        %v2061 = vadd.f32 0.0, %v2060
        %v2062 = vpop.f32.mrb[0].mxu0
        %v2063 = vadd.f32 0.0, %v2062
        %2064 = vmatprep.mubr.bf16.mxu0 %v1160
        %2065 = vmatmul.mubr.bf16.gmra.mrb[0].mxu0 %v1159
        %v2066 = vpop.f32.mrb[0].mxu0
        %v2067 = vadd.f32 0.0, %v2066
        %v2068 = vpop.f32.mrb[0].mxu0
        %v2069 = vadd.f32 0.0, %v2068
        %v2070 = vpop.f32.mrb[0].mxu0
        %v2071 = vadd.f32 0.0, %v2070
        %v2072 = vpop.f32.mrb[0].mxu0
        %v2073 = vadd.f32 0.0, %v2072
        %2074 = vmatprep.mubr.bf16.mxu0 %v1162
        %2075 = vmatmul.mubr.bf16.gmra.mrb[0].mxu0 %v1161
        %v2076 = vpop.f32.mrb[0].mxu0
        %v2077 = vadd.f32 0.0, %v2076
        %v2078 = vpop.f32.mrb[0].mxu0
        %v2079 = vadd.f32 0.0, %v2078
        %v2080 = vpop.f32.mrb[0].mxu0
        %v2081 = vadd.f32 0.0, %v2080
        %v2082 = vpop.f32.mrb[0].mxu0
        %v2083 = vadd.f32 0.0, %v2082
        %2084 = vmatprep.mubr.bf16.mxu0 %v1164
        %2085 = vmatmul.mubr.bf16.gmra.mrb[0].mxu0 %v1163
        %v2086 = vpop.f32.mrb[0].mxu0
        %v2087 = vadd.f32 0.0, %v2086
        %v2088 = vpop.f32.mrb[0].mxu0
        %v2089 = vadd.f32 0.0, %v2088
        %v2090 = vpop.f32.mrb[0].mxu0
        %v2091 = vadd.f32 0.0, %v2090
        %v2092 = vpop.f32.mrb[0].mxu0
        %v2093 = vadd.f32 0.0, %v2092
        %2094 = vmatprep.mubr.bf16.mxu0 %v1166
        %2095 = vmatmul.mubr.bf16.gmra.mrb[0].mxu0 %v1165
        %v2096 = vpop.f32.mrb[0].mxu0
        %v2097 = vadd.f32 0.0, %v2096
        %v2098 = vpop.f32.mrb[0].mxu0
        %v2099 = vadd.f32 0.0, %v2098
        %v2100 = vpop.f32.mrb[0].mxu0
        %v2101 = vadd.f32 0.0, %v2100
        %v2102 = vpop.f32.mrb[0].mxu0
        %v2103 = vadd.f32 0.0, %v2102
        %2104 = vmatprep.mubr.bf16.mxu0 %v1168
        %2105 = vmatmul.mubr.bf16.gmra.mrb[0].mxu0 %v1167
        %v2106 = vpop.f32.mrb[0].mxu0
        %v2107 = vadd.f32 0.0, %v2106
        %v2108 = vpop.f32.mrb[0].mxu0
        %v2109 = vadd.f32 0.0, %v2108
        %v2110 = vpop.f32.mrb[0].mxu0
        %v2111 = vadd.f32 0.0, %v2110
        %v2112 = vpop.f32.mrb[0].mxu0
        %v2113 = vadd.f32 0.0, %v2112
        %2114 = vmatprep.mubr.bf16.mxu0 %v1170
        %2115 = vmatmul.mubr.bf16.gmra.mrb[0].mxu0 %v1169
        %v2116 = vpop.f32.mrb[0].mxu0
        %v2117 = vadd.f32 0.0, %v2116
        %v2118 = vpop.f32.mrb[0].mxu0
        %v2119 = vadd.f32 0.0, %v2118
        %v2120 = vpop.f32.mrb[0].mxu0
        %v2121 = vadd.f32 0.0, %v2120
        %v2122 = vpop.f32.mrb[0].mxu0
        %v2123 = vadd.f32 0.0, %v2122
        %2124 = vmatprep.mubr.bf16.mxu0 %v1172
        %2125 = vmatmul.mubr.bf16.gmra.mrb[0].mxu0 %v1171
        %v2126 = vpop.f32.mrb[0].mxu0
        %v2127 = vadd.f32 0.0, %v2126
        %v2128 = vpop.f32.mrb[0].mxu0
        %v2129 = vadd.f32 0.0, %v2128
        %v2130 = vpop.f32.mrb[0].mxu0
        %v2131 = vadd.f32 0.0, %v2130
        %v2132 = vpop.f32.mrb[0].mxu0
        %v2133 = vadd.f32 0.0, %v2132
        %2134 = vmatprep.mubr.bf16.mxu0 %v1174
        %2135 = vmatmul.mubr.bf16.gmra.mrb[0].mxu0 %v1173
        %v2136 = vpop.f32.mrb[0].mxu0
        %v2137 = vadd.f32 0.0, %v2136
        %v2138 = vpop.f32.mrb[0].mxu0
        %v2139 = vadd.f32 0.0, %v2138
        %v2140 = vpop.f32.mrb[0].mxu0
        %v2141 = vadd.f32 0.0, %v2140
        %v2142 = vpop.f32.mrb[0].mxu0
        %v2143 = vadd.f32 0.0, %v2142
        %2144 = vmatprep.mubr.bf16.mxu0 %v1176
        %2145 = vmatmul.mubr.bf16.gmra.mrb[0].mxu0 %v1175
        %v2146 = vpop.f32.mrb[0].mxu0
        %v2147 = vadd.f32 0.0, %v2146
        %v2148 = vpop.f32.mrb[0].mxu0
        %v2149 = vadd.f32 0.0, %v2148
        %v2150 = vpop.f32.mrb[0].mxu0
        %v2151 = vadd.f32 0.0, %v2150
        %v2152 = vpop.f32.mrb[0].mxu0
        %v2153 = vadd.f32 0.0, %v2152
        %2154 = vmatprep.mubr.bf16.mxu0 %v1178
        %2155 = vmatmul.mubr.bf16.gmra.mrb[0].mxu0 %v1177
        %v2156 = vpop.f32.mrb[0].mxu0
        %v2157 = vadd.f32 0.0, %v2156
        %v2158 = vpop.f32.mrb[0].mxu0
        %v2159 = vadd.f32 0.0, %v2158
        %v2160 = vpop.f32.mrb[0].mxu0
        %v2161 = vadd.f32 0.0, %v2160
        %v2162 = vpop.f32.mrb[0].mxu0
        %v2163 = vadd.f32 0.0, %v2162
        %2164 = vmatprep.mubr.bf16.mxu0 %v1180
        %2165 = vmatmul.mubr.bf16.gmra.mrb[0].mxu0 %v1179
        %v2166 = vpop.f32.mrb[0].mxu0
        %v2167 = vadd.f32 0.0, %v2166
        %v2168 = vpop.f32.mrb[0].mxu0
        %v2169 = vadd.f32 0.0, %v2168
        %v2170 = vpop.f32.mrb[0].mxu0
        %v2171 = vadd.f32 0.0, %v2170
        %v2172 = vpop.f32.mrb[0].mxu0
        %v2173 = vadd.f32 0.0, %v2172
        %2174 = vmatprep.mubr.bf16.mxu0 %v1182
        %2175 = vmatmul.mubr.bf16.gmra.mrb[0].mxu0 %v1181
        %v2176 = vpop.f32.mrb[0].mxu0
        %v2177 = vadd.f32 0.0, %v2176
        %v2178 = vpop.f32.mrb[0].mxu0
        %v2179 = vadd.f32 0.0, %v2178
        %v2180 = vpop.f32.mrb[0].mxu0
        %v2181 = vadd.f32 0.0, %v2180
        %v2182 = vpop.f32.mrb[0].mxu0
        %v2183 = vadd.f32 0.0, %v2182
        %2184 = vmatprep.mubr.bf16.mxu0 %v1184
        %2185 = vmatmul.mubr.bf16.gmra.mrb[0].mxu0 %v1183
        %v2186 = vpop.f32.mrb[0].mxu0
        %v2187 = vadd.f32 0.0, %v2186
        %v2188 = vpop.f32.mrb[0].mxu0
        %v2189 = vadd.f32 0.0, %v2188
        %v2190 = vpop.f32.mrb[0].mxu0
        %v2191 = vadd.f32 0.0, %v2190
        %v2192 = vpop.f32.mrb[0].mxu0
        %v2193 = vadd.f32 0.0, %v2192
        %2194 = vmatprep.mubr.bf16.mxu0 %v1186
        %2195 = vmatmul.mubr.bf16.gmra.mrb[0].mxu0 %v1185
        %v2196 = vpop.f32.mrb[0].mxu0
        %v2197 = vadd.f32 0.0, %v2196
        %v2198 = vpop.f32.mrb[0].mxu0
        %v2199 = vadd.f32 0.0, %v2198
        %v2200 = vpop.f32.mrb[0].mxu0
        %v2201 = vadd.f32 0.0, %v2200
        %v2202 = vpop.f32.mrb[0].mxu0
        %v2203 = vadd.f32 0.0, %v2202
        %2204 = vmatprep.mubr.bf16.mxu0 %v1188
        %2205 = vmatmul.mubr.bf16.gmra.mrb[0].mxu0 %v1187
        %v2206 = vpop.f32.mrb[0].mxu0
        %v2207 = vadd.f32 0.0, %v2206
        %v2208 = vpop.f32.mrb[0].mxu0
        %v2209 = vadd.f32 0.0, %v2208
        %v2210 = vpop.f32.mrb[0].mxu0
        %v2211 = vadd.f32 0.0, %v2210
        %v2212 = vpop.f32.mrb[0].mxu0
        %v2213 = vadd.f32 0.0, %v2212
        %2214 = vmatprep.mubr.bf16.mxu0 %v1190
        %2215 = vmatmul.mubr.bf16.gmra.mrb[0].mxu0 %v1189
        %v2216 = vpop.f32.mrb[0].mxu0
        %v2217 = vadd.f32 0.0, %v2216
        %v2218 = vpop.f32.mrb[0].mxu0
        %v2219 = vadd.f32 0.0, %v2218
        %v2220 = vpop.f32.mrb[0].mxu0
        %v2221 = vadd.f32 0.0, %v2220
        %v2222 = vpop.f32.mrb[0].mxu0
        %v2223 = vadd.f32 0.0, %v2222
        %2224 = vmatprep.mubr.bf16.mxu0 %v1192
        %2225 = vmatmul.mubr.bf16.gmra.mrb[0].mxu0 %v1191
        %v2226 = vpop.f32.mrb[0].mxu0
        %v2227 = vadd.f32 0.0, %v2226
        %v2228 = vpop.f32.mrb[0].mxu0
        %v2229 = vadd.f32 0.0, %v2228
        %v2230 = vpop.f32.mrb[0].mxu0
        %v2231 = vadd.f32 0.0, %v2230
        %v2232 = vpop.f32.mrb[0].mxu0
        %v2233 = vadd.f32 0.0, %v2232
        %2234 = vmatprep.mubr.bf16.mxu0 %v1194
        %2235 = vmatmul.mubr.bf16.gmra.mrb[0].mxu0 %v1193
        %v2236 = vpop.f32.mrb[0].mxu0
        %v2237 = vadd.f32 0.0, %v2236
        %v2238 = vpop.f32.mrb[0].mxu0
        %v2239 = vadd.f32 0.0, %v2238
        %v2240 = vpop.f32.mrb[0].mxu0
        %v2241 = vadd.f32 0.0, %v2240
        %v2242 = vpop.f32.mrb[0].mxu0
        %v2243 = vadd.f32 0.0, %v2242
        %2244 = vmatprep.mubr.bf16.mxu0 %v1196
        %2245 = vmatmul.mubr.bf16.gmra.mrb[0].mxu0 %v1195
        %v2246 = vpop.f32.mrb[0].mxu0
        %v2247 = vadd.f32 0.0, %v2246
        %v2248 = vpop.f32.mrb[0].mxu0
        %v2249 = vadd.f32 0.0, %v2248
        %v2250 = vpop.f32.mrb[0].mxu0
        %v2251 = vadd.f32 0.0, %v2250
        %v2252 = vpop.f32.mrb[0].mxu0
        %v2253 = vadd.f32 0.0, %v2252
        %2254 = vmatprep.mubr.bf16.mxu0 %v1198
        %2255 = vmatmul.mubr.bf16.gmra.mrb[0].mxu0 %v1197
        %v2256 = vpop.f32.mrb[0].mxu0
        %v2257 = vadd.f32 0.0, %v2256
        %v2258 = vpop.f32.mrb[0].mxu0
        %v2259 = vadd.f32 0.0, %v2258
        %v2260 = vpop.f32.mrb[0].mxu0
        %v2261 = vadd.f32 0.0, %v2260
        %v2262 = vpop.f32.mrb[0].mxu0
        %v2263 = vadd.f32 0.0, %v2262
        %2264 = vmatprep.mubr.bf16.mxu0 %v1200
        %2265 = vmatmul.mubr.bf16.gmra.mrb[0].mxu0 %v1199
        %v2266 = vpop.f32.mrb[0].mxu0
        %v2267 = vadd.f32 0.0, %v2266
        %v2268 = vpop.f32.mrb[0].mxu0
        %v2269 = vadd.f32 0.0, %v2268
        %v2270 = vpop.f32.mrb[0].mxu0
        %v2271 = vadd.f32 0.0, %v2270
        %v2272 = vpop.f32.mrb[0].mxu0
        %v2273 = vadd.f32 0.0, %v2272
        %2274 = vmatprep.mubr.bf16.mxu0 %v1202
        %2275 = vmatmul.mubr.bf16.gmra.mrb[0].mxu0 %v1201
        %v2276 = vpop.f32.mrb[0].mxu0
        %v2277 = vadd.f32 0.0, %v2276
        %v2278 = vpop.f32.mrb[0].mxu0
        %v2279 = vadd.f32 0.0, %v2278
        %v2280 = vpop.f32.mrb[0].mxu0
        %v2281 = vadd.f32 0.0, %v2280
        %v2282 = vpop.f32.mrb[0].mxu0
        %v2283 = vadd.f32 0.0, %v2282
        %2284 = vmatprep.mubr.bf16.mxu0 %v1204
        %2285 = vmatmul.mubr.bf16.gmra.mrb[0].mxu0 %v1203
        %v2286 = vpop.f32.mrb[0].mxu0
        %v2287 = vadd.f32 0.0, %v2286
        %v2288 = vpop.f32.mrb[0].mxu0
        %v2289 = vadd.f32 0.0, %v2288
        %v2290 = vpop.f32.mrb[0].mxu0
        %v2291 = vadd.f32 0.0, %v2290
        %v2292 = vpop.f32.mrb[0].mxu0
        %v2293 = vadd.f32 0.0, %v2292
        %2294 = vdwg.mxu0
        %v2295 = vadd.f32 %v565, %v1624
        %v2296 = vadd.f32 %v566, %v1626
        %v2297 = vadd.f32 %v567, %v1977
        %v2298 = vadd.f32 %v568, %v1979
        %v2299 = vadd.f32 %v569, %v1628
        %v2300 = vadd.f32 %v570, %v1630
        %v2301 = vadd.f32 %v571, %v1981
        %v2302 = vadd.f32 %v572, %v1983
        %v2303 = vadd.f32 %v573, %v1634
        %v2304 = vadd.f32 %v574, %v1636
        %v2305 = vadd.f32 %v575, %v1987
        %v2306 = vadd.f32 %v576, %v1989
        %v2307 = vadd.f32 %v577, %v1638
        %v2308 = vadd.f32 %v578, %v1640
        %v2309 = vadd.f32 %v579, %v1991
        %v2310 = vadd.f32 %v580, %v1993
        %v2311 = vadd.f32 %v581, %v1644
        %v2312 = vadd.f32 %v582, %v1646
        %v2313 = vadd.f32 %v583, %v1997
        %v2314 = vadd.f32 %v584, %v1999
        %v2315 = vadd.f32 %v585, %v1648
        %v2316 = vadd.f32 %v586, %v1650
        %v2317 = vadd.f32 %v587, %v2001
        %v2318 = vadd.f32 %v588, %v2003
        %v2319 = vadd.f32 %v589, %v1654
        %v2320 = vadd.f32 %v590, %v1656
        %v2321 = vadd.f32 %v591, %v2007
        %v2322 = vadd.f32 %v592, %v2009
        %v2323 = vadd.f32 %v593, %v1658
        %v2324 = vadd.f32 %v594, %v1660
        %v2325 = vadd.f32 %v595, %v2011
        %v2326 = vadd.f32 %v596, %v2013
        %v2327 = vadd.f32 %v597, %v1664
        %v2328 = vadd.f32 %v598, %v1666
        %v2329 = vadd.f32 %v599, %v2017
        %v2330 = vadd.f32 %v600, %v2019
        %v2331 = vadd.f32 %v601, %v1668
        %v2332 = vadd.f32 %v602, %v1670
        %v2333 = vadd.f32 %v603, %v2021
        %v2334 = vadd.f32 %v604, %v2023
        %v2335 = vadd.f32 %v605, %v1674
        %v2336 = vadd.f32 %v606, %v1676
        %v2337 = vadd.f32 %v607, %v2027
        %v2338 = vadd.f32 %v608, %v2029
        %v2339 = vadd.f32 %v609, %v1678
        %v2340 = vadd.f32 %v610, %v1680
        %v2341 = vadd.f32 %v611, %v2031
        %v2342 = vadd.f32 %v612, %v2033
        %v2343 = vadd.f32 %v613, %v1684
        %v2344 = vadd.f32 %v614, %v1686
        %v2345 = vadd.f32 %v615, %v2037
        %v2346 = vadd.f32 %v616, %v2039
        %v2347 = vadd.f32 %v617, %v1688
        %v2348 = vadd.f32 %v618, %v1690
        %v2349 = vadd.f32 %v619, %v2041
        %v2350 = vadd.f32 %v620, %v2043
        %v2351 = vadd.f32 %v621, %v1694
        %v2352 = vadd.f32 %v622, %v1696
        %v2353 = vadd.f32 %v623, %v2047
        %v2354 = vadd.f32 %v624, %v2049
        %v2355 = vadd.f32 %v625, %v1698
        %v2356 = vadd.f32 %v626, %v1700
        %v2357 = vadd.f32 %v627, %v2051
        %v2358 = vadd.f32 %v628, %v2053
        %v2359 = vadd.f32 %v629, %v1704
        %v2360 = vadd.f32 %v630, %v1706
        %v2361 = vadd.f32 %v631, %v2057
        %v2362 = vadd.f32 %v632, %v2059
        %v2363 = vadd.f32 %v633, %v1708
        %v2364 = vadd.f32 %v634, %v1710
        %v2365 = vadd.f32 %v635, %v2061
        %v2366 = vadd.f32 %v636, %v2063
        %v2367 = vadd.f32 %v637, %v1714
        %v2368 = vadd.f32 %v638, %v1716
        %v2369 = vadd.f32 %v639, %v2067
        %v2370 = vadd.f32 %v640, %v2069
        %v2371 = vadd.f32 %v641, %v1718
        %v2372 = vadd.f32 %v642, %v1720
        %v2373 = vadd.f32 %v643, %v2071
        %v2374 = vadd.f32 %v644, %v2073
        %v2375 = vadd.f32 %v645, %v1724
        %v2376 = vadd.f32 %v646, %v1726
        %v2377 = vadd.f32 %v647, %v2077
        %v2378 = vadd.f32 %v648, %v2079
        %v2379 = vadd.f32 %v649, %v1728
        %v2380 = vadd.f32 %v650, %v1730
        %v2381 = vadd.f32 %v651, %v2081
        %v2382 = vadd.f32 %v652, %v2083
        %v2383 = vadd.f32 %v653, %v1734
        %v2384 = vadd.f32 %v654, %v1736
        %v2385 = vadd.f32 %v655, %v2087
        %v2386 = vadd.f32 %v656, %v2089
        %v2387 = vadd.f32 %v657, %v1738
        %v2388 = vadd.f32 %v658, %v1740
        %v2389 = vadd.f32 %v659, %v2091
        %v2390 = vadd.f32 %v660, %v2093
        %v2391 = vadd.f32 %v661, %v1744
        %v2392 = vadd.f32 %v662, %v1746
        %v2393 = vadd.f32 %v663, %v2097
        %v2394 = vadd.f32 %v664, %v2099
        %v2395 = vadd.f32 %v665, %v1748
        %v2396 = vadd.f32 %v666, %v1750
        %v2397 = vadd.f32 %v667, %v2101
        %v2398 = vadd.f32 %v668, %v2103
        %v2399 = vadd.f32 %v669, %v1754
        %v2400 = vadd.f32 %v670, %v1756
        %v2401 = vadd.f32 %v671, %v2107
        %v2402 = vadd.f32 %v672, %v2109
        %v2403 = vadd.f32 %v673, %v1758
        %v2404 = vadd.f32 %v674, %v1760
        %v2405 = vadd.f32 %v675, %v2111
        %v2406 = vadd.f32 %v676, %v2113
        %v2407 = vadd.f32 %v677, %v1764
        %v2408 = vadd.f32 %v678, %v1766
        %v2409 = vadd.f32 %v679, %v2117
        %v2410 = vadd.f32 %v680, %v2119
        %v2411 = vadd.f32 %v681, %v1768
        %v2412 = vadd.f32 %v682, %v1770
        %v2413 = vadd.f32 %v683, %v2121
        %v2414 = vadd.f32 %v684, %v2123
        %v2415 = vadd.f32 %v685, %v1774
        %v2416 = vadd.f32 %v686, %v1776
        %v2417 = vadd.f32 %v687, %v2127
        %v2418 = vadd.f32 %v688, %v2129
        %v2419 = vadd.f32 %v689, %v1778
        %v2420 = vadd.f32 %v690, %v1780
        %v2421 = vadd.f32 %v691, %v2131
        %v2422 = vadd.f32 %v692, %v2133
        %v2423 = vadd.f32 %v693, %v1784
        %v2424 = vadd.f32 %v694, %v1786
        %v2425 = vadd.f32 %v695, %v2137
        %v2426 = vadd.f32 %v696, %v2139
        %v2427 = vadd.f32 %v697, %v1788
        %v2428 = vadd.f32 %v698, %v1790
        %v2429 = vadd.f32 %v699, %v2141
        %v2430 = vadd.f32 %v700, %v2143
        %v2431 = vadd.f32 %v701, %v1794
        %v2432 = vadd.f32 %v702, %v1796
        %v2433 = vadd.f32 %v703, %v2147
        %v2434 = vadd.f32 %v704, %v2149
        %v2435 = vadd.f32 %v705, %v1798
        %v2436 = vadd.f32 %v706, %v1800
        %v2437 = vadd.f32 %v707, %v2151
        %v2438 = vadd.f32 %v708, %v2153
        %v2439 = vadd.f32 %v709, %v1804
        %v2440 = vadd.f32 %v710, %v1806
        %v2441 = vadd.f32 %v711, %v2157
        %v2442 = vadd.f32 %v712, %v2159
        %v2443 = vadd.f32 %v713, %v1808
        %v2444 = vadd.f32 %v714, %v1810
        %v2445 = vadd.f32 %v715, %v2161
        %v2446 = vadd.f32 %v716, %v2163
        %v2447 = vadd.f32 %v717, %v1814
        %v2448 = vadd.f32 %v718, %v1816
        %v2449 = vadd.f32 %v719, %v2167
        %v2450 = vadd.f32 %v720, %v2169
        %v2451 = vadd.f32 %v721, %v1818
        %v2452 = vadd.f32 %v722, %v1820
        %v2453 = vadd.f32 %v723, %v2171
        %v2454 = vadd.f32 %v724, %v2173
        %v2455 = vadd.f32 %v725, %v1824
        %v2456 = vadd.f32 %v726, %v1826
        %v2457 = vadd.f32 %v727, %v2177
        %v2458 = vadd.f32 %v728, %v2179
        %v2459 = vadd.f32 %v729, %v1828
        %v2460 = vadd.f32 %v730, %v1830
        %v2461 = vadd.f32 %v731, %v2181
        %v2462 = vadd.f32 %v732, %v2183
        %v2463 = vadd.f32 %v733, %v1834
        %v2464 = vadd.f32 %v734, %v1836
        %v2465 = vadd.f32 %v735, %v2187
        %v2466 = vadd.f32 %v736, %v2189
        %v2467 = vadd.f32 %v737, %v1838
        %v2468 = vadd.f32 %v738, %v1840
        %v2469 = vadd.f32 %v739, %v2191
        %v2470 = vadd.f32 %v740, %v2193
        %v2471 = vadd.f32 %v741, %v1844
        %v2472 = vadd.f32 %v742, %v1846
        %v2473 = vadd.f32 %v743, %v2197
        %v2474 = vadd.f32 %v744, %v2199
        %v2475 = vadd.f32 %v745, %v1848
        %v2476 = vadd.f32 %v746, %v1850
        %v2477 = vadd.f32 %v747, %v2201
        %v2478 = vadd.f32 %v748, %v2203
        %v2479 = vadd.f32 %v749, %v1854
        %v2480 = vadd.f32 %v750, %v1856
        %v2481 = vadd.f32 %v751, %v2207
        %v2482 = vadd.f32 %v752, %v2209
        %v2483 = vadd.f32 %v753, %v1858
        %v2484 = vadd.f32 %v754, %v1860
        %v2485 = vadd.f32 %v755, %v2211
        %v2486 = vadd.f32 %v756, %v2213
        %v2487 = vadd.f32 %v757, %v1864
        %v2488 = vadd.f32 %v758, %v1866
        %v2489 = vadd.f32 %v759, %v2217
        %v2490 = vadd.f32 %v760, %v2219
        %v2491 = vadd.f32 %v761, %v1868
        %v2492 = vadd.f32 %v762, %v1870
        %v2493 = vadd.f32 %v763, %v2221
        %v2494 = vadd.f32 %v764, %v2223
        %v2495 = vadd.f32 %v765, %v1874
        %v2496 = vadd.f32 %v766, %v1876
        %v2497 = vadd.f32 %v767, %v2227
        %v2498 = vadd.f32 %v768, %v2229
        %v2499 = vadd.f32 %v769, %v1878
        %v2500 = vadd.f32 %v770, %v1880
        %v2501 = vadd.f32 %v771, %v2231
        %v2502 = vadd.f32 %v772, %v2233
        %v2503 = vadd.f32 %v773, %v1884
        %v2504 = vadd.f32 %v774, %v1886
        %v2505 = vadd.f32 %v775, %v2237
        %v2506 = vadd.f32 %v776, %v2239
        %v2507 = vadd.f32 %v777, %v1888
        %v2508 = vadd.f32 %v778, %v1890
        %v2509 = vadd.f32 %v779, %v2241
        %v2510 = vadd.f32 %v780, %v2243
        %v2511 = vadd.f32 %v781, %v1894
        %v2512 = vadd.f32 %v782, %v1896
        %v2513 = vadd.f32 %v783, %v2247
        %v2514 = vadd.f32 %v784, %v2249
        %v2515 = vadd.f32 %v785, %v1898
        %v2516 = vadd.f32 %v786, %v1900
        %v2517 = vadd.f32 %v787, %v2251
        %v2518 = vadd.f32 %v788, %v2253
        %v2519 = vadd.f32 %v789, %v1904
        %v2520 = vadd.f32 %v790, %v1906
        %v2521 = vadd.f32 %v791, %v2257
        %v2522 = vadd.f32 %v792, %v2259
        %v2523 = vadd.f32 %v793, %v1908
        %v2524 = vadd.f32 %v794, %v1910
        %v2525 = vadd.f32 %v795, %v2261
        %v2526 = vadd.f32 %v796, %v2263
        %v2527 = vadd.f32 %v797, %v1914
        %v2528 = vadd.f32 %v798, %v1916
        %v2529 = vadd.f32 %v799, %v2267
        %v2530 = vadd.f32 %v800, %v2269
        %v2531 = vadd.f32 %v801, %v1918
        %v2532 = vadd.f32 %v802, %v1920
        %v2533 = vadd.f32 %v803, %v2271
        %v2534 = vadd.f32 %v804, %v2273
        %v2535 = vadd.f32 %v805, %v1924
        %v2536 = vadd.f32 %v806, %v1926
        %v2537 = vadd.f32 %v807, %v2277
        %v2538 = vadd.f32 %v808, %v2279
        %v2539 = vadd.f32 %v809, %v1928
        %v2540 = vadd.f32 %v810, %v1930
        %v2541 = vadd.f32 %v811, %v2281
        %v2542 = vadd.f32 %v812, %v2283
        %v2543 = vadd.f32 %v813, %v1934
        %v2544 = vadd.f32 %v814, %v1936
        %v2545 = vadd.f32 %v815, %v2287
        %v2546 = vadd.f32 %v816, %v2289
        %v2547 = vadd.f32 %v817, %v1938
        %v2548 = vadd.f32 %v818, %v1940
        %v2549 = vadd.f32 %v819, %v2291
        %v2550 = vadd.f32 %v820, %v2293
        %2551 = vst [vmem:[#allocation2] sm:$0xff] %v2295
        %2552 = vst [vmem:[#allocation2 + $0x8] sm:$0xff] %v2296
        %2553 = vst [vmem:[#allocation2 + $0x10] sm:$0xff] %v2297
        %2554 = vst [vmem:[#allocation2 + $0x18] sm:$0xff] %v2298
        %2555 = vst [vmem:[#allocation2 + $0x20] sm:$0xff] %v2299
        %2556 = vst [vmem:[#allocation2 + $0x28] sm:$0xff] %v2300
        %2557 = vst [vmem:[#allocation2 + $0x30] sm:$0xff] %v2301
        %2558 = vst [vmem:[#allocation2 + $0x38] sm:$0xff] %v2302
        %2559 = vst [vmem:[#allocation2 + $0x40] sm:$0xff] %v2303
        %2560 = vst [vmem:[#allocation2 + $0x48] sm:$0xff] %v2304
        %2561 = vst [vmem:[#allocation2 + $0x50] sm:$0xff] %v2305
        %2562 = vst [vmem:[#allocation2 + $0x58] sm:$0xff] %v2306
        %2563 = vst [vmem:[#allocation2 + $0x60] sm:$0xff] %v2307
        %2564 = vst [vmem:[#allocation2 + $0x68] sm:$0xff] %v2308
        %2565 = vst [vmem:[#allocation2 + $0x70] sm:$0xff] %v2309
        %2566 = vst [vmem:[#allocation2 + $0x78] sm:$0xff] %v2310
        %2567 = vst [vmem:[#allocation2 + $0x80] sm:$0xff] %v2311
        %2568 = vst [vmem:[#allocation2 + $0x88] sm:$0xff] %v2312
        %2569 = vst [vmem:[#allocation2 + $0x90] sm:$0xff] %v2313
        %2570 = vst [vmem:[#allocation2 + $0x98] sm:$0xff] %v2314
        %2571 = vst [vmem:[#allocation2 + $0xa0] sm:$0xff] %v2315
        %2572 = vst [vmem:[#allocation2 + $0xa8] sm:$0xff] %v2316
        %2573 = vst [vmem:[#allocation2 + $0xb0] sm:$0xff] %v2317
        %2574 = vst [vmem:[#allocation2 + $0xb8] sm:$0xff] %v2318
        %2575 = vst [vmem:[#allocation2 + $0xc0] sm:$0xff] %v2319
        %2576 = vst [vmem:[#allocation2 + $0xc8] sm:$0xff] %v2320
        %2577 = vst [vmem:[#allocation2 + $0xd0] sm:$0xff] %v2321
        %2578 = vst [vmem:[#allocation2 + $0xd8] sm:$0xff] %v2322
        %2579 = vst [vmem:[#allocation2 + $0xe0] sm:$0xff] %v2323
        %2580 = vst [vmem:[#allocation2 + $0xe8] sm:$0xff] %v2324
        %2581 = vst [vmem:[#allocation2 + $0xf0] sm:$0xff] %v2325
        %2582 = vst [vmem:[#allocation2 + $0xf8] sm:$0xff] %v2326
        %2583 = vst [vmem:[#allocation2 + $0x100] sm:$0xff] %v2327
        %2584 = vst [vmem:[#allocation2 + $0x108] sm:$0xff] %v2328
        %2585 = vst [vmem:[#allocation2 + $0x110] sm:$0xff] %v2329
        %2586 = vst [vmem:[#allocation2 + $0x118] sm:$0xff] %v2330
        %2587 = vst [vmem:[#allocation2 + $0x120] sm:$0xff] %v2331
        %2588 = vst [vmem:[#allocation2 + $0x128] sm:$0xff] %v2332
        %2589 = vst [vmem:[#allocation2 + $0x130] sm:$0xff] %v2333
        %2590 = vst [vmem:[#allocation2 + $0x138] sm:$0xff] %v2334
        %2591 = vst [vmem:[#allocation2 + $0x140] sm:$0xff] %v2335
        %2592 = vst [vmem:[#allocation2 + $0x148] sm:$0xff] %v2336
        %2593 = vst [vmem:[#allocation2 + $0x150] sm:$0xff] %v2337
        %2594 = vst [vmem:[#allocation2 + $0x158] sm:$0xff] %v2338
        %2595 = vst [vmem:[#allocation2 + $0x160] sm:$0xff] %v2339
        %2596 = vst [vmem:[#allocation2 + $0x168] sm:$0xff] %v2340
        %2597 = vst [vmem:[#allocation2 + $0x170] sm:$0xff] %v2341
        %2598 = vst [vmem:[#allocation2 + $0x178] sm:$0xff] %v2342
        %2599 = vst [vmem:[#allocation2 + $0x180] sm:$0xff] %v2343
        %2600 = vst [vmem:[#allocation2 + $0x188] sm:$0xff] %v2344
        %2601 = vst [vmem:[#allocation2 + $0x190] sm:$0xff] %v2345
        %2602 = vst [vmem:[#allocation2 + $0x198] sm:$0xff] %v2346
        %2603 = vst [vmem:[#allocation2 + $0x1a0] sm:$0xff] %v2347
        %2604 = vst [vmem:[#allocation2 + $0x1a8] sm:$0xff] %v2348
        %2605 = vst [vmem:[#allocation2 + $0x1b0] sm:$0xff] %v2349
        %2606 = vst [vmem:[#allocation2 + $0x1b8] sm:$0xff] %v2350
        %2607 = vst [vmem:[#allocation2 + $0x1c0] sm:$0xff] %v2351
        %2608 = vst [vmem:[#allocation2 + $0x1c8] sm:$0xff] %v2352
        %2609 = vst [vmem:[#allocation2 + $0x1d0] sm:$0xff] %v2353
        %2610 = vst [vmem:[#allocation2 + $0x1d8] sm:$0xff] %v2354
        %2611 = vst [vmem:[#allocation2 + $0x1e0] sm:$0xff] %v2355
        %2612 = vst [vmem:[#allocation2 + $0x1e8] sm:$0xff] %v2356
        %2613 = vst [vmem:[#allocation2 + $0x1f0] sm:$0xff] %v2357
        %2614 = vst [vmem:[#allocation2 + $0x1f8] sm:$0xff] %v2358
        %2615 = vst [vmem:[#allocation2 + $0x200] sm:$0xff] %v2359
        %2616 = vst [vmem:[#allocation2 + $0x208] sm:$0xff] %v2360
        %2617 = vst [vmem:[#allocation2 + $0x210] sm:$0xff] %v2361
        %2618 = vst [vmem:[#allocation2 + $0x218] sm:$0xff] %v2362
        %2619 = vst [vmem:[#allocation2 + $0x220] sm:$0xff] %v2363
        %2620 = vst [vmem:[#allocation2 + $0x228] sm:$0xff] %v2364
        %2621 = vst [vmem:[#allocation2 + $0x230] sm:$0xff] %v2365
        %2622 = vst [vmem:[#allocation2 + $0x238] sm:$0xff] %v2366
        %2623 = vst [vmem:[#allocation2 + $0x240] sm:$0xff] %v2367
        %2624 = vst [vmem:[#allocation2 + $0x248] sm:$0xff] %v2368
        %2625 = vst [vmem:[#allocation2 + $0x250] sm:$0xff] %v2369
        %2626 = vst [vmem:[#allocation2 + $0x258] sm:$0xff] %v2370
        %2627 = vst [vmem:[#allocation2 + $0x260] sm:$0xff] %v2371
        %2628 = vst [vmem:[#allocation2 + $0x268] sm:$0xff] %v2372
        %2629 = vst [vmem:[#allocation2 + $0x270] sm:$0xff] %v2373
        %2630 = vst [vmem:[#allocation2 + $0x278] sm:$0xff] %v2374
        %2631 = vst [vmem:[#allocation2 + $0x280] sm:$0xff] %v2375
        %2632 = vst [vmem:[#allocation2 + $0x288] sm:$0xff] %v2376
        %2633 = vst [vmem:[#allocation2 + $0x290] sm:$0xff] %v2377
        %2634 = vst [vmem:[#allocation2 + $0x298] sm:$0xff] %v2378
        %2635 = vst [vmem:[#allocation2 + $0x2a0] sm:$0xff] %v2379
        %2636 = vst [vmem:[#allocation2 + $0x2a8] sm:$0xff] %v2380
        %2637 = vst [vmem:[#allocation2 + $0x2b0] sm:$0xff] %v2381
        %2638 = vst [vmem:[#allocation2 + $0x2b8] sm:$0xff] %v2382
        %2639 = vst [vmem:[#allocation2 + $0x2c0] sm:$0xff] %v2383
        %2640 = vst [vmem:[#allocation2 + $0x2c8] sm:$0xff] %v2384
        %2641 = vst [vmem:[#allocation2 + $0x2d0] sm:$0xff] %v2385
        %2642 = vst [vmem:[#allocation2 + $0x2d8] sm:$0xff] %v2386
        %2643 = vst [vmem:[#allocation2 + $0x2e0] sm:$0xff] %v2387
        %2644 = vst [vmem:[#allocation2 + $0x2e8] sm:$0xff] %v2388
        %2645 = vst [vmem:[#allocation2 + $0x2f0] sm:$0xff] %v2389
        %2646 = vst [vmem:[#allocation2 + $0x2f8] sm:$0xff] %v2390
        %2647 = vst [vmem:[#allocation2 + $0x300] sm:$0xff] %v2391
        %2648 = vst [vmem:[#allocation2 + $0x308] sm:$0xff] %v2392
        %2649 = vst [vmem:[#allocation2 + $0x310] sm:$0xff] %v2393
        %2650 = vst [vmem:[#allocation2 + $0x318] sm:$0xff] %v2394
        %2651 = vst [vmem:[#allocation2 + $0x320] sm:$0xff] %v2395
        %2652 = vst [vmem:[#allocation2 + $0x328] sm:$0xff] %v2396
        %2653 = vst [vmem:[#allocation2 + $0x330] sm:$0xff] %v2397
        %2654 = vst [vmem:[#allocation2 + $0x338] sm:$0xff] %v2398
        %2655 = vst [vmem:[#allocation2 + $0x340] sm:$0xff] %v2399
        %2656 = vst [vmem:[#allocation2 + $0x348] sm:$0xff] %v2400
        %2657 = vst [vmem:[#allocation2 + $0x350] sm:$0xff] %v2401
        %2658 = vst [vmem:[#allocation2 + $0x358] sm:$0xff] %v2402
        %2659 = vst [vmem:[#allocation2 + $0x360] sm:$0xff] %v2403
        %2660 = vst [vmem:[#allocation2 + $0x368] sm:$0xff] %v2404
        %2661 = vst [vmem:[#allocation2 + $0x370] sm:$0xff] %v2405
        %2662 = vst [vmem:[#allocation2 + $0x378] sm:$0xff] %v2406
        %2663 = vst [vmem:[#allocation2 + $0x380] sm:$0xff] %v2407
        %2664 = vst [vmem:[#allocation2 + $0x388] sm:$0xff] %v2408
        %2665 = vst [vmem:[#allocation2 + $0x390] sm:$0xff] %v2409
        %2666 = vst [vmem:[#allocation2 + $0x398] sm:$0xff] %v2410
        %2667 = vst [vmem:[#allocation2 + $0x3a0] sm:$0xff] %v2411
        %2668 = vst [vmem:[#allocation2 + $0x3a8] sm:$0xff] %v2412
        %2669 = vst [vmem:[#allocation2 + $0x3b0] sm:$0xff] %v2413
        %2670 = vst [vmem:[#allocation2 + $0x3b8] sm:$0xff] %v2414
        %2671 = vst [vmem:[#allocation2 + $0x3c0] sm:$0xff] %v2415
        %2672 = vst [vmem:[#allocation2 + $0x3c8] sm:$0xff] %v2416
        %2673 = vst [vmem:[#allocation2 + $0x3d0] sm:$0xff] %v2417
        %2674 = vst [vmem:[#allocation2 + $0x3d8] sm:$0xff] %v2418
        %2675 = vst [vmem:[#allocation2 + $0x3e0] sm:$0xff] %v2419
        %2676 = vst [vmem:[#allocation2 + $0x3e8] sm:$0xff] %v2420
        %2677 = vst [vmem:[#allocation2 + $0x3f0] sm:$0xff] %v2421
        %2678 = vst [vmem:[#allocation2 + $0x3f8] sm:$0xff] %v2422
        %2679 = vst [vmem:[#allocation2 + $0x400] sm:$0xff] %v2423
        %2680 = vst [vmem:[#allocation2 + $0x408] sm:$0xff] %v2424
        %2681 = vst [vmem:[#allocation2 + $0x410] sm:$0xff] %v2425
        %2682 = vst [vmem:[#allocation2 + $0x418] sm:$0xff] %v2426
        %2683 = vst [vmem:[#allocation2 + $0x420] sm:$0xff] %v2427
        %2684 = vst [vmem:[#allocation2 + $0x428] sm:$0xff] %v2428
        %2685 = vst [vmem:[#allocation2 + $0x430] sm:$0xff] %v2429
        %2686 = vst [vmem:[#allocation2 + $0x438] sm:$0xff] %v2430
        %2687 = vst [vmem:[#allocation2 + $0x440] sm:$0xff] %v2431
        %2688 = vst [vmem:[#allocation2 + $0x448] sm:$0xff] %v2432
        %2689 = vst [vmem:[#allocation2 + $0x450] sm:$0xff] %v2433
        %2690 = vst [vmem:[#allocation2 + $0x458] sm:$0xff] %v2434
        %2691 = vst [vmem:[#allocation2 + $0x460] sm:$0xff] %v2435
        %2692 = vst [vmem:[#allocation2 + $0x468] sm:$0xff] %v2436
        %2693 = vst [vmem:[#allocation2 + $0x470] sm:$0xff] %v2437
        %2694 = vst [vmem:[#allocation2 + $0x478] sm:$0xff] %v2438
        %2695 = vst [vmem:[#allocation2 + $0x480] sm:$0xff] %v2439
        %2696 = vst [vmem:[#allocation2 + $0x488] sm:$0xff] %v2440
        %2697 = vst [vmem:[#allocation2 + $0x490] sm:$0xff] %v2441
        %2698 = vst [vmem:[#allocation2 + $0x498] sm:$0xff] %v2442
        %2699 = vst [vmem:[#allocation2 + $0x4a0] sm:$0xff] %v2443
        %2700 = vst [vmem:[#allocation2 + $0x4a8] sm:$0xff] %v2444
        %2701 = vst [vmem:[#allocation2 + $0x4b0] sm:$0xff] %v2445
        %2702 = vst [vmem:[#allocation2 + $0x4b8] sm:$0xff] %v2446
        %2703 = vst [vmem:[#allocation2 + $0x4c0] sm:$0xff] %v2447
        %2704 = vst [vmem:[#allocation2 + $0x4c8] sm:$0xff] %v2448
        %2705 = vst [vmem:[#allocation2 + $0x4d0] sm:$0xff] %v2449
        %2706 = vst [vmem:[#allocation2 + $0x4d8] sm:$0xff] %v2450
        %2707 = vst [vmem:[#allocation2 + $0x4e0] sm:$0xff] %v2451
        %2708 = vst [vmem:[#allocation2 + $0x4e8] sm:$0xff] %v2452
        %2709 = vst [vmem:[#allocation2 + $0x4f0] sm:$0xff] %v2453
        %2710 = vst [vmem:[#allocation2 + $0x4f8] sm:$0xff] %v2454
        %2711 = vst [vmem:[#allocation2 + $0x500] sm:$0xff] %v2455
        %2712 = vst [vmem:[#allocation2 + $0x508] sm:$0xff] %v2456
        %2713 = vst [vmem:[#allocation2 + $0x510] sm:$0xff] %v2457
        %2714 = vst [vmem:[#allocation2 + $0x518] sm:$0xff] %v2458
        %2715 = vst [vmem:[#allocation2 + $0x520] sm:$0xff] %v2459
        %2716 = vst [vmem:[#allocation2 + $0x528] sm:$0xff] %v2460
        %2717 = vst [vmem:[#allocation2 + $0x530] sm:$0xff] %v2461
        %2718 = vst [vmem:[#allocation2 + $0x538] sm:$0xff] %v2462
        %2719 = vst [vmem:[#allocation2 + $0x540] sm:$0xff] %v2463
        %2720 = vst [vmem:[#allocation2 + $0x548] sm:$0xff] %v2464
        %2721 = vst [vmem:[#allocation2 + $0x550] sm:$0xff] %v2465
        %2722 = vst [vmem:[#allocation2 + $0x558] sm:$0xff] %v2466
        %2723 = vst [vmem:[#allocation2 + $0x560] sm:$0xff] %v2467
        %2724 = vst [vmem:[#allocation2 + $0x568] sm:$0xff] %v2468
        %2725 = vst [vmem:[#allocation2 + $0x570] sm:$0xff] %v2469
        %2726 = vst [vmem:[#allocation2 + $0x578] sm:$0xff] %v2470
        %2727 = vst [vmem:[#allocation2 + $0x580] sm:$0xff] %v2471
        %2728 = vst [vmem:[#allocation2 + $0x588] sm:$0xff] %v2472
        %2729 = vst [vmem:[#allocation2 + $0x590] sm:$0xff] %v2473
        %2730 = vst [vmem:[#allocation2 + $0x598] sm:$0xff] %v2474
        %2731 = vst [vmem:[#allocation2 + $0x5a0] sm:$0xff] %v2475
        %2732 = vst [vmem:[#allocation2 + $0x5a8] sm:$0xff] %v2476
        %2733 = vst [vmem:[#allocation2 + $0x5b0] sm:$0xff] %v2477
        %2734 = vst [vmem:[#allocation2 + $0x5b8] sm:$0xff] %v2478
        %2735 = vst [vmem:[#allocation2 + $0x5c0] sm:$0xff] %v2479
        %2736 = vst [vmem:[#allocation2 + $0x5c8] sm:$0xff] %v2480
        %2737 = vst [vmem:[#allocation2 + $0x5d0] sm:$0xff] %v2481
        %2738 = vst [vmem:[#allocation2 + $0x5d8] sm:$0xff] %v2482
        %2739 = vst [vmem:[#allocation2 + $0x5e0] sm:$0xff] %v2483
        %2740 = vst [vmem:[#allocation2 + $0x5e8] sm:$0xff] %v2484
        %2741 = vst [vmem:[#allocation2 + $0x5f0] sm:$0xff] %v2485
        %2742 = vst [vmem:[#allocation2 + $0x5f8] sm:$0xff] %v2486
        %2743 = vst [vmem:[#allocation2 + $0x600] sm:$0xff] %v2487
        %2744 = vst [vmem:[#allocation2 + $0x608] sm:$0xff] %v2488
        %2745 = vst [vmem:[#allocation2 + $0x610] sm:$0xff] %v2489
        %2746 = vst [vmem:[#allocation2 + $0x618] sm:$0xff] %v2490
        %2747 = vst [vmem:[#allocation2 + $0x620] sm:$0xff] %v2491
        %2748 = vst [vmem:[#allocation2 + $0x628] sm:$0xff] %v2492
        %2749 = vst [vmem:[#allocation2 + $0x630] sm:$0xff] %v2493
        %2750 = vst [vmem:[#allocation2 + $0x638] sm:$0xff] %v2494
        %2751 = vst [vmem:[#allocation2 + $0x640] sm:$0xff] %v2495
        %2752 = vst [vmem:[#allocation2 + $0x648] sm:$0xff] %v2496
        %2753 = vst [vmem:[#allocation2 + $0x650] sm:$0xff] %v2497
        %2754 = vst [vmem:[#allocation2 + $0x658] sm:$0xff] %v2498
        %2755 = vst [vmem:[#allocation2 + $0x660] sm:$0xff] %v2499
        %2756 = vst [vmem:[#allocation2 + $0x668] sm:$0xff] %v2500
        %2757 = vst [vmem:[#allocation2 + $0x670] sm:$0xff] %v2501
        %2758 = vst [vmem:[#allocation2 + $0x678] sm:$0xff] %v2502
        %2759 = vst [vmem:[#allocation2 + $0x680] sm:$0xff] %v2503
        %2760 = vst [vmem:[#allocation2 + $0x688] sm:$0xff] %v2504
        %2761 = vst [vmem:[#allocation2 + $0x690] sm:$0xff] %v2505
        %2762 = vst [vmem:[#allocation2 + $0x698] sm:$0xff] %v2506
        %2763 = vst [vmem:[#allocation2 + $0x6a0] sm:$0xff] %v2507
        %2764 = vst [vmem:[#allocation2 + $0x6a8] sm:$0xff] %v2508
        %2765 = vst [vmem:[#allocation2 + $0x6b0] sm:$0xff] %v2509
        %2766 = vst [vmem:[#allocation2 + $0x6b8] sm:$0xff] %v2510
        %2767 = vst [vmem:[#allocation2 + $0x6c0] sm:$0xff] %v2511
        %2768 = vst [vmem:[#allocation2 + $0x6c8] sm:$0xff] %v2512
        %2769 = vst [vmem:[#allocation2 + $0x6d0] sm:$0xff] %v2513
        %2770 = vst [vmem:[#allocation2 + $0x6d8] sm:$0xff] %v2514
        %2771 = vst [vmem:[#allocation2 + $0x6e0] sm:$0xff] %v2515
        %2772 = vst [vmem:[#allocation2 + $0x6e8] sm:$0xff] %v2516
        %2773 = vst [vmem:[#allocation2 + $0x6f0] sm:$0xff] %v2517
        %2774 = vst [vmem:[#allocation2 + $0x6f8] sm:$0xff] %v2518
        %2775 = vst [vmem:[#allocation2 + $0x700] sm:$0xff] %v2519
        %2776 = vst [vmem:[#allocation2 + $0x708] sm:$0xff] %v2520
        %2777 = vst [vmem:[#allocation2 + $0x710] sm:$0xff] %v2521
        %2778 = vst [vmem:[#allocation2 + $0x718] sm:$0xff] %v2522
        %2779 = vst [vmem:[#allocation2 + $0x720] sm:$0xff] %v2523
        %2780 = vst [vmem:[#allocation2 + $0x728] sm:$0xff] %v2524
        %2781 = vst [vmem:[#allocation2 + $0x730] sm:$0xff] %v2525
        %2782 = vst [vmem:[#allocation2 + $0x738] sm:$0xff] %v2526
        %2783 = vst [vmem:[#allocation2 + $0x740] sm:$0xff] %v2527
        %2784 = vst [vmem:[#allocation2 + $0x748] sm:$0xff] %v2528
        %2785 = vst [vmem:[#allocation2 + $0x750] sm:$0xff] %v2529
        %2786 = vst [vmem:[#allocation2 + $0x758] sm:$0xff] %v2530
        %2787 = vst [vmem:[#allocation2 + $0x760] sm:$0xff] %v2531
        %2788 = vst [vmem:[#allocation2 + $0x768] sm:$0xff] %v2532
        %2789 = vst [vmem:[#allocation2 + $0x770] sm:$0xff] %v2533
        %2790 = vst [vmem:[#allocation2 + $0x778] sm:$0xff] %v2534
        %2791 = vst [vmem:[#allocation2 + $0x780] sm:$0xff] %v2535
        %2792 = vst [vmem:[#allocation2 + $0x788] sm:$0xff] %v2536
        %2793 = vst [vmem:[#allocation2 + $0x790] sm:$0xff] %v2537
        %2794 = vst [vmem:[#allocation2 + $0x798] sm:$0xff] %v2538
        %2795 = vst [vmem:[#allocation2 + $0x7a0] sm:$0xff] %v2539
        %2796 = vst [vmem:[#allocation2 + $0x7a8] sm:$0xff] %v2540
        %2797 = vst [vmem:[#allocation2 + $0x7b0] sm:$0xff] %v2541
        %2798 = vst [vmem:[#allocation2 + $0x7b8] sm:$0xff] %v2542
        %2799 = vst [vmem:[#allocation2 + $0x7c0] sm:$0xff] %v2543
        %2800 = vst [vmem:[#allocation2 + $0x7c8] sm:$0xff] %v2544
        %2801 = vst [vmem:[#allocation2 + $0x7d0] sm:$0xff] %v2545
        %2802 = vst [vmem:[#allocation2 + $0x7d8] sm:$0xff] %v2546
        %2803 = vst [vmem:[#allocation2 + $0x7e0] sm:$0xff] %v2547
        %2804 = vst [vmem:[#allocation2 + $0x7e8] sm:$0xff] %v2548
        %2805 = vst [vmem:[#allocation2 + $0x7f0] sm:$0xff] %v2549
        %2806 = vst [vmem:[#allocation2 + $0x7f8] sm:$0xff] %v2550
        // Predicated region
        $region57: #{tpu_custom_call.1} parent=35 // pred_check
          %p2807 = pneg %p305
        $region58: #{tpu_custom_call.1} parent=35 // pred_check_branch
          %2809 = sbr.rel (%p2807) target = $region60
        $region59: #{tpu_custom_call.1} parent=35 // pred_region
          %v2810 = vld [vmem:[#allocation8] sm:$0xff]
          %v2811 = vld [vmem:[#allocation8 + $0x8] sm:$0xff]
          %v2812 = vld [vmem:[#allocation8 + $0x10] sm:$0xff]
          %v2813 = vld [vmem:[#allocation8 + $0x18] sm:$0xff]
          %v2814 = vld [vmem:[#allocation8 + $0x20] sm:$0xff]
          %v2815 = vld [vmem:[#allocation8 + $0x28] sm:$0xff]
          %v2816 = vld [vmem:[#allocation8 + $0x30] sm:$0xff]
          %v2817 = vld [vmem:[#allocation8 + $0x38] sm:$0xff]
          %v2818 = vld [vmem:[#allocation8 + $0x40] sm:$0xff]
          %v2819 = vld [vmem:[#allocation8 + $0x48] sm:$0xff]
          %v2820 = vld [vmem:[#allocation8 + $0x50] sm:$0xff]
          %v2821 = vld [vmem:[#allocation8 + $0x58] sm:$0xff]
          %v2822 = vld [vmem:[#allocation8 + $0x60] sm:$0xff]
          %v2823 = vld [vmem:[#allocation8 + $0x68] sm:$0xff]
          %v2824 = vld [vmem:[#allocation8 + $0x70] sm:$0xff]
          %v2825 = vld [vmem:[#allocation8 + $0x78] sm:$0xff]
          %v2826 = vld [vmem:[#allocation8 + $0x80] sm:$0xff]
          %v2827 = vld [vmem:[#allocation8 + $0x88] sm:$0xff]
          %v2828 = vld [vmem:[#allocation8 + $0x90] sm:$0xff]
          %v2829 = vld [vmem:[#allocation8 + $0x98] sm:$0xff]
          %v2830 = vld [vmem:[#allocation8 + $0xa0] sm:$0xff]
          %v2831 = vld [vmem:[#allocation8 + $0xa8] sm:$0xff]
          %v2832 = vld [vmem:[#allocation8 + $0xb0] sm:$0xff]
          %v2833 = vld [vmem:[#allocation8 + $0xb8] sm:$0xff]
          %v2834 = vld [vmem:[#allocation8 + $0xc0] sm:$0xff]
          %v2835 = vld [vmem:[#allocation8 + $0xc8] sm:$0xff]
          %v2836 = vld [vmem:[#allocation8 + $0xd0] sm:$0xff]
          %v2837 = vld [vmem:[#allocation8 + $0xd8] sm:$0xff]
          %v2838 = vld [vmem:[#allocation8 + $0xe0] sm:$0xff]
          %v2839 = vld [vmem:[#allocation8 + $0xe8] sm:$0xff]
          %v2840 = vld [vmem:[#allocation8 + $0xf0] sm:$0xff]
          %v2841 = vld [vmem:[#allocation8 + $0xf8] sm:$0xff]
          %v2842 = vld [vmem:[#allocation8 + $0x100] sm:$0xff]
          %v2843 = vld [vmem:[#allocation8 + $0x108] sm:$0xff]
          %v2844 = vld [vmem:[#allocation8 + $0x110] sm:$0xff]
          %v2845 = vld [vmem:[#allocation8 + $0x118] sm:$0xff]
          %v2846 = vld [vmem:[#allocation8 + $0x120] sm:$0xff]
          %v2847 = vld [vmem:[#allocation8 + $0x128] sm:$0xff]
          %v2848 = vld [vmem:[#allocation8 + $0x130] sm:$0xff]
          %v2849 = vld [vmem:[#allocation8 + $0x138] sm:$0xff]
          %v2850 = vld [vmem:[#allocation8 + $0x140] sm:$0xff]
          %v2851 = vld [vmem:[#allocation8 + $0x148] sm:$0xff]
          %v2852 = vld [vmem:[#allocation8 + $0x150] sm:$0xff]
          %v2853 = vld [vmem:[#allocation8 + $0x158] sm:$0xff]
          %v2854 = vld [vmem:[#allocation8 + $0x160] sm:$0xff]
          %v2855 = vld [vmem:[#allocation8 + $0x168] sm:$0xff]
          %v2856 = vld [vmem:[#allocation8 + $0x170] sm:$0xff]
          %v2857 = vld [vmem:[#allocation8 + $0x178] sm:$0xff]
          %v2858 = vld [vmem:[#allocation8 + $0x180] sm:$0xff]
          %v2859 = vld [vmem:[#allocation8 + $0x188] sm:$0xff]
          %v2860 = vld [vmem:[#allocation8 + $0x190] sm:$0xff]
          %v2861 = vld [vmem:[#allocation8 + $0x198] sm:$0xff]
          %v2862 = vld [vmem:[#allocation8 + $0x1a0] sm:$0xff]
          %v2863 = vld [vmem:[#allocation8 + $0x1a8] sm:$0xff]
          %v2864 = vld [vmem:[#allocation8 + $0x1b0] sm:$0xff]
          %v2865 = vld [vmem:[#allocation8 + $0x1b8] sm:$0xff]
          %v2866 = vld [vmem:[#allocation8 + $0x1c0] sm:$0xff]
          %v2867 = vld [vmem:[#allocation8 + $0x1c8] sm:$0xff]
          %v2868 = vld [vmem:[#allocation8 + $0x1d0] sm:$0xff]
          %v2869 = vld [vmem:[#allocation8 + $0x1d8] sm:$0xff]
          %v2870 = vld [vmem:[#allocation8 + $0x1e0] sm:$0xff]
          %v2871 = vld [vmem:[#allocation8 + $0x1e8] sm:$0xff]
          %v2872 = vld [vmem:[#allocation8 + $0x1f0] sm:$0xff]
          %v2873 = vld [vmem:[#allocation8 + $0x1f8] sm:$0xff]
          %v2874 = vld [vmem:[#allocation9] sm:$0xff]
          %v2875 = vld [vmem:[#allocation9 + $0x8] sm:$0xff]
          %v2876 = vld [vmem:[#allocation9 + $0x10] sm:$0xff]
          %v2877 = vld [vmem:[#allocation9 + $0x18] sm:$0xff]
          %v2878 = vld [vmem:[#allocation9 + $0x20] sm:$0xff]
          %v2879 = vld [vmem:[#allocation9 + $0x28] sm:$0xff]
          %v2880 = vld [vmem:[#allocation9 + $0x30] sm:$0xff]
          %v2881 = vld [vmem:[#allocation9 + $0x38] sm:$0xff]
          %v2882 = vld [vmem:[#allocation9 + $0x40] sm:$0xff]
          %v2883 = vld [vmem:[#allocation9 + $0x48] sm:$0xff]
          %v2884 = vld [vmem:[#allocation9 + $0x50] sm:$0xff]
          %v2885 = vld [vmem:[#allocation9 + $0x58] sm:$0xff]
          %v2886 = vld [vmem:[#allocation9 + $0x60] sm:$0xff]
          %v2887 = vld [vmem:[#allocation9 + $0x68] sm:$0xff]
          %v2888 = vld [vmem:[#allocation9 + $0x70] sm:$0xff]
          %v2889 = vld [vmem:[#allocation9 + $0x78] sm:$0xff]
          %v2890 = vld [vmem:[#allocation9 + $0x80] sm:$0xff]
          %v2891 = vld [vmem:[#allocation9 + $0x88] sm:$0xff]
          %v2892 = vld [vmem:[#allocation9 + $0x90] sm:$0xff]
          %v2893 = vld [vmem:[#allocation9 + $0x98] sm:$0xff]
          %v2894 = vld [vmem:[#allocation9 + $0xa0] sm:$0xff]
          %v2895 = vld [vmem:[#allocation9 + $0xa8] sm:$0xff]
          %v2896 = vld [vmem:[#allocation9 + $0xb0] sm:$0xff]
          %v2897 = vld [vmem:[#allocation9 + $0xb8] sm:$0xff]
          %v2898 = vld [vmem:[#allocation9 + $0xc0] sm:$0xff]
          %v2899 = vld [vmem:[#allocation9 + $0xc8] sm:$0xff]
          %v2900 = vld [vmem:[#allocation9 + $0xd0] sm:$0xff]
          %v2901 = vld [vmem:[#allocation9 + $0xd8] sm:$0xff]
          %v2902 = vld [vmem:[#allocation9 + $0xe0] sm:$0xff]
          %v2903 = vld [vmem:[#allocation9 + $0xe8] sm:$0xff]
          %v2904 = vld [vmem:[#allocation9 + $0xf0] sm:$0xff]
          %v2905 = vld [vmem:[#allocation9 + $0xf8] sm:$0xff]
          %v2906 = vld [vmem:[#allocation9 + $0x100] sm:$0xff]
          %v2907 = vld [vmem:[#allocation9 + $0x108] sm:$0xff]
          %v2908 = vld [vmem:[#allocation9 + $0x110] sm:$0xff]
          %v2909 = vld [vmem:[#allocation9 + $0x118] sm:$0xff]
          %v2910 = vld [vmem:[#allocation9 + $0x120] sm:$0xff]
          %v2911 = vld [vmem:[#allocation9 + $0x128] sm:$0xff]
          %v2912 = vld [vmem:[#allocation9 + $0x130] sm:$0xff]
          %v2913 = vld [vmem:[#allocation9 + $0x138] sm:$0xff]
          %v2914 = vld [vmem:[#allocation9 + $0x140] sm:$0xff]
          %v2915 = vld [vmem:[#allocation9 + $0x148] sm:$0xff]
          %v2916 = vld [vmem:[#allocation9 + $0x150] sm:$0xff]
          %v2917 = vld [vmem:[#allocation9 + $0x158] sm:$0xff]
          %v2918 = vld [vmem:[#allocation9 + $0x160] sm:$0xff]
          %v2919 = vld [vmem:[#allocation9 + $0x168] sm:$0xff]
          %v2920 = vld [vmem:[#allocation9 + $0x170] sm:$0xff]
          %v2921 = vld [vmem:[#allocation9 + $0x178] sm:$0xff]
          %v2922 = vld [vmem:[#allocation9 + $0x180] sm:$0xff]
          %v2923 = vld [vmem:[#allocation9 + $0x188] sm:$0xff]
          %v2924 = vld [vmem:[#allocation9 + $0x190] sm:$0xff]
          %v2925 = vld [vmem:[#allocation9 + $0x198] sm:$0xff]
          %v2926 = vld [vmem:[#allocation9 + $0x1a0] sm:$0xff]
          %v2927 = vld [vmem:[#allocation9 + $0x1a8] sm:$0xff]
          %v2928 = vld [vmem:[#allocation9 + $0x1b0] sm:$0xff]
          %v2929 = vld [vmem:[#allocation9 + $0x1b8] sm:$0xff]
          %v2930 = vld [vmem:[#allocation9 + $0x1c0] sm:$0xff]
          %v2931 = vld [vmem:[#allocation9 + $0x1c8] sm:$0xff]
          %v2932 = vld [vmem:[#allocation9 + $0x1d0] sm:$0xff]
          %v2933 = vld [vmem:[#allocation9 + $0x1d8] sm:$0xff]
          %v2934 = vld [vmem:[#allocation9 + $0x1e0] sm:$0xff]
          %v2935 = vld [vmem:[#allocation9 + $0x1e8] sm:$0xff]
          %v2936 = vld [vmem:[#allocation9 + $0x1f0] sm:$0xff]
          %v2937 = vld [vmem:[#allocation9 + $0x1f8] sm:$0xff]
          %v2938 = vld [vmem:[#allocation2] sm:$0xff]
          %v2939 = vld [vmem:[#allocation2 + $0x20] sm:$0xff]
          %v2940 = vld [vmem:[#allocation2 + $0x40] sm:$0xff]
          %v2941 = vld [vmem:[#allocation2 + $0x60] sm:$0xff]
          %v2942 = vld [vmem:[#allocation2 + $0x80] sm:$0xff]
          %v2943 = vld [vmem:[#allocation2 + $0xa0] sm:$0xff]
          %v2944 = vld [vmem:[#allocation2 + $0xc0] sm:$0xff]
          %v2945 = vld [vmem:[#allocation2 + $0xe0] sm:$0xff]
          %v2946 = vld [vmem:[#allocation2 + $0x100] sm:$0xff]
          %v2947 = vld [vmem:[#allocation2 + $0x120] sm:$0xff]
          %v2948 = vld [vmem:[#allocation2 + $0x140] sm:$0xff]
          %v2949 = vld [vmem:[#allocation2 + $0x160] sm:$0xff]
          %v2950 = vld [vmem:[#allocation2 + $0x180] sm:$0xff]
          %v2951 = vld [vmem:[#allocation2 + $0x1a0] sm:$0xff]
          %v2952 = vld [vmem:[#allocation2 + $0x1c0] sm:$0xff]
          %v2953 = vld [vmem:[#allocation2 + $0x1e0] sm:$0xff]
          %v2954 = vld [vmem:[#allocation2 + $0x200] sm:$0xff]
          %v2955 = vld [vmem:[#allocation2 + $0x220] sm:$0xff]
          %v2956 = vld [vmem:[#allocation2 + $0x240] sm:$0xff]
          %v2957 = vld [vmem:[#allocation2 + $0x260] sm:$0xff]
          %v2958 = vld [vmem:[#allocation2 + $0x280] sm:$0xff]
          %v2959 = vld [vmem:[#allocation2 + $0x2a0] sm:$0xff]
          %v2960 = vld [vmem:[#allocation2 + $0x2c0] sm:$0xff]
          %v2961 = vld [vmem:[#allocation2 + $0x2e0] sm:$0xff]
          %v2962 = vld [vmem:[#allocation2 + $0x300] sm:$0xff]
          %v2963 = vld [vmem:[#allocation2 + $0x320] sm:$0xff]
          %v2964 = vld [vmem:[#allocation2 + $0x340] sm:$0xff]
          %v2965 = vld [vmem:[#allocation2 + $0x360] sm:$0xff]
          %v2966 = vld [vmem:[#allocation2 + $0x380] sm:$0xff]
          %v2967 = vld [vmem:[#allocation2 + $0x3a0] sm:$0xff]
          %v2968 = vld [vmem:[#allocation2 + $0x3c0] sm:$0xff]
          %v2969 = vld [vmem:[#allocation2 + $0x3e0] sm:$0xff]
          %v2970 = vld [vmem:[#allocation2 + $0x400] sm:$0xff]
          %v2971 = vld [vmem:[#allocation2 + $0x420] sm:$0xff]
          %v2972 = vld [vmem:[#allocation2 + $0x440] sm:$0xff]
          %v2973 = vld [vmem:[#allocation2 + $0x460] sm:$0xff]
          %v2974 = vld [vmem:[#allocation2 + $0x480] sm:$0xff]
          %v2975 = vld [vmem:[#allocation2 + $0x4a0] sm:$0xff]
          %v2976 = vld [vmem:[#allocation2 + $0x4c0] sm:$0xff]
          %v2977 = vld [vmem:[#allocation2 + $0x4e0] sm:$0xff]
          %v2978 = vld [vmem:[#allocation2 + $0x500] sm:$0xff]
          %v2979 = vld [vmem:[#allocation2 + $0x520] sm:$0xff]
          %v2980 = vld [vmem:[#allocation2 + $0x540] sm:$0xff]
          %v2981 = vld [vmem:[#allocation2 + $0x560] sm:$0xff]
          %v2982 = vld [vmem:[#allocation2 + $0x580] sm:$0xff]
          %v2983 = vld [vmem:[#allocation2 + $0x5a0] sm:$0xff]
          %v2984 = vld [vmem:[#allocation2 + $0x5c0] sm:$0xff]
          %v2985 = vld [vmem:[#allocation2 + $0x5e0] sm:$0xff]
          %v2986 = vld [vmem:[#allocation2 + $0x600] sm:$0xff]
          %v2987 = vld [vmem:[#allocation2 + $0x620] sm:$0xff]
          %v2988 = vld [vmem:[#allocation2 + $0x640] sm:$0xff]
          %v2989 = vld [vmem:[#allocation2 + $0x660] sm:$0xff]
          %v2990 = vld [vmem:[#allocation2 + $0x680] sm:$0xff]
          %v2991 = vld [vmem:[#allocation2 + $0x6a0] sm:$0xff]
          %v2992 = vld [vmem:[#allocation2 + $0x6c0] sm:$0xff]
          %v2993 = vld [vmem:[#allocation2 + $0x6e0] sm:$0xff]
          %v2994 = vld [vmem:[#allocation2 + $0x700] sm:$0xff]
          %v2995 = vld [vmem:[#allocation2 + $0x720] sm:$0xff]
          %v2996 = vld [vmem:[#allocation2 + $0x740] sm:$0xff]
          %v2997 = vld [vmem:[#allocation2 + $0x760] sm:$0xff]
          %v2998 = vld [vmem:[#allocation2 + $0x780] sm:$0xff]
          %v2999 = vld [vmem:[#allocation2 + $0x7a0] sm:$0xff]
          %v3000 = vld [vmem:[#allocation2 + $0x7c0] sm:$0xff]
          %v3001 = vld [vmem:[#allocation2 + $0x7e0] sm:$0xff]
          %3002 = vrot.lane.b32.xlu0 %v2938, 64
          %v3003 = vpop.permute.xlu0 %3002
          %3004 = vrot.lane.b32.xlu0 %v2939, 64
          %v3005 = vpop.permute.xlu0 %3004
          %3006 = vrot.lane.b32.xlu0 %v2940, 64
          %v3007 = vpop.permute.xlu0 %3006
          %3008 = vrot.lane.b32.xlu0 %v2941, 64
          %v3009 = vpop.permute.xlu0 %3008
          %3010 = vrot.lane.b32.xlu0 %v2942, 64
          %v3011 = vpop.permute.xlu0 %3010
          %3012 = vrot.lane.b32.xlu0 %v2943, 64
          %v3013 = vpop.permute.xlu0 %3012
          %3014 = vrot.lane.b32.xlu0 %v2944, 64
          %v3015 = vpop.permute.xlu0 %3014
          %3016 = vrot.lane.b32.xlu0 %v2945, 64
          %v3017 = vpop.permute.xlu0 %3016
          %3018 = vrot.lane.b32.xlu0 %v2946, 64
          %v3019 = vpop.permute.xlu0 %3018
          %3020 = vrot.lane.b32.xlu0 %v2947, 64
          %v3021 = vpop.permute.xlu0 %3020
          %3022 = vrot.lane.b32.xlu0 %v2948, 64
          %v3023 = vpop.permute.xlu0 %3022
          %3024 = vrot.lane.b32.xlu0 %v2949, 64
          %v3025 = vpop.permute.xlu0 %3024
          %3026 = vrot.lane.b32.xlu0 %v2950, 64
          %v3027 = vpop.permute.xlu0 %3026
          %3028 = vrot.lane.b32.xlu0 %v2951, 64
          %v3029 = vpop.permute.xlu0 %3028
          %3030 = vrot.lane.b32.xlu0 %v2952, 64
          %v3031 = vpop.permute.xlu0 %3030
          %3032 = vrot.lane.b32.xlu0 %v2953, 64
          %v3033 = vpop.permute.xlu0 %3032
          %3034 = vrot.lane.b32.xlu0 %v2954, 64
          %v3035 = vpop.permute.xlu0 %3034
          %3036 = vrot.lane.b32.xlu0 %v2955, 64
          %v3037 = vpop.permute.xlu0 %3036
          %3038 = vrot.lane.b32.xlu0 %v2956, 64
          %v3039 = vpop.permute.xlu0 %3038
          %3040 = vrot.lane.b32.xlu0 %v2957, 64
          %v3041 = vpop.permute.xlu0 %3040
          %3042 = vrot.lane.b32.xlu0 %v2958, 64
          %v3043 = vpop.permute.xlu0 %3042
          %3044 = vrot.lane.b32.xlu0 %v2959, 64
          %v3045 = vpop.permute.xlu0 %3044
          %3046 = vrot.lane.b32.xlu0 %v2960, 64
          %v3047 = vpop.permute.xlu0 %3046
          %3048 = vrot.lane.b32.xlu0 %v2961, 64
          %v3049 = vpop.permute.xlu0 %3048
          %3050 = vrot.lane.b32.xlu0 %v2962, 64
          %v3051 = vpop.permute.xlu0 %3050
          %3052 = vrot.lane.b32.xlu0 %v2963, 64
          %v3053 = vpop.permute.xlu0 %3052
          %3054 = vrot.lane.b32.xlu0 %v2964, 64
          %v3055 = vpop.permute.xlu0 %3054
          %3056 = vrot.lane.b32.xlu0 %v2965, 64
          %v3057 = vpop.permute.xlu0 %3056
          %3058 = vrot.lane.b32.xlu0 %v2966, 64
          %v3059 = vpop.permute.xlu0 %3058
          %3060 = vrot.lane.b32.xlu0 %v2967, 64
          %v3061 = vpop.permute.xlu0 %3060
          %3062 = vrot.lane.b32.xlu0 %v2968, 64
          %v3063 = vpop.permute.xlu0 %3062
          %3064 = vrot.lane.b32.xlu0 %v2969, 64
          %v3065 = vpop.permute.xlu0 %3064
          %3066 = vrot.lane.b32.xlu0 %v2970, 64
          %v3067 = vpop.permute.xlu0 %3066
          %3068 = vrot.lane.b32.xlu0 %v2971, 64
          %v3069 = vpop.permute.xlu0 %3068
          %3070 = vrot.lane.b32.xlu0 %v2972, 64
          %v3071 = vpop.permute.xlu0 %3070
          %3072 = vrot.lane.b32.xlu0 %v2973, 64
          %v3073 = vpop.permute.xlu0 %3072
          %3074 = vrot.lane.b32.xlu0 %v2974, 64
          %v3075 = vpop.permute.xlu0 %3074
          %3076 = vrot.lane.b32.xlu0 %v2975, 64
          %v3077 = vpop.permute.xlu0 %3076
          %3078 = vrot.lane.b32.xlu0 %v2976, 64
          %v3079 = vpop.permute.xlu0 %3078
          %3080 = vrot.lane.b32.xlu0 %v2977, 64
          %v3081 = vpop.permute.xlu0 %3080
          %3082 = vrot.lane.b32.xlu0 %v2978, 64
          %v3083 = vpop.permute.xlu0 %3082
          %3084 = vrot.lane.b32.xlu0 %v2979, 64
          %v3085 = vpop.permute.xlu0 %3084
          %3086 = vrot.lane.b32.xlu0 %v2980, 64
          %v3087 = vpop.permute.xlu0 %3086
          %3088 = vrot.lane.b32.xlu0 %v2981, 64
          %v3089 = vpop.permute.xlu0 %3088
          %3090 = vrot.lane.b32.xlu0 %v2982, 64
          %v3091 = vpop.permute.xlu0 %3090
          %3092 = vrot.lane.b32.xlu0 %v2983, 64
          %v3093 = vpop.permute.xlu0 %3092
          %3094 = vrot.lane.b32.xlu0 %v2984, 64
          %v3095 = vpop.permute.xlu0 %3094
          %3096 = vrot.lane.b32.xlu0 %v2985, 64
          %v3097 = vpop.permute.xlu0 %3096
          %3098 = vrot.lane.b32.xlu0 %v2986, 64
          %v3099 = vpop.permute.xlu0 %3098
          %3100 = vrot.lane.b32.xlu0 %v2987, 64
          %v3101 = vpop.permute.xlu0 %3100
          %3102 = vrot.lane.b32.xlu0 %v2988, 64
          %v3103 = vpop.permute.xlu0 %3102
          %3104 = vrot.lane.b32.xlu0 %v2989, 64
          %v3105 = vpop.permute.xlu0 %3104
          %3106 = vrot.lane.b32.xlu0 %v2990, 64
          %v3107 = vpop.permute.xlu0 %3106
          %3108 = vrot.lane.b32.xlu0 %v2991, 64
          %v3109 = vpop.permute.xlu0 %3108
          %3110 = vrot.lane.b32.xlu0 %v2992, 64
          %v3111 = vpop.permute.xlu0 %3110
          %3112 = vrot.lane.b32.xlu0 %v2993, 64
          %v3113 = vpop.permute.xlu0 %3112
          %3114 = vrot.lane.b32.xlu0 %v2994, 64
          %v3115 = vpop.permute.xlu0 %3114
          %3116 = vrot.lane.b32.xlu0 %v2995, 64
          %v3117 = vpop.permute.xlu0 %3116
          %3118 = vrot.lane.b32.xlu0 %v2996, 64
          %v3119 = vpop.permute.xlu0 %3118
          %3120 = vrot.lane.b32.xlu0 %v2997, 64
          %v3121 = vpop.permute.xlu0 %3120
          %3122 = vrot.lane.b32.xlu0 %v2998, 64
          %v3123 = vpop.permute.xlu0 %3122
          %3124 = vrot.lane.b32.xlu0 %v2999, 64
          %v3125 = vpop.permute.xlu0 %3124
          %3126 = vrot.lane.b32.xlu0 %v3000, 64
          %v3127 = vpop.permute.xlu0 %3126
          %3128 = vrot.lane.b32.xlu0 %v3001, 64
          %v3129 = vpop.permute.xlu0 %3128
          %v3130 = vmul.f32 %v2938, %v2810
          %v3131 = vmul.f32 %v2939, %v2811
          %v3132 = vmul.f32 %v2940, %v2812
          %v3133 = vmul.f32 %v2941, %v2813
          %v3134 = vmul.f32 %v2942, %v2814
          %v3135 = vmul.f32 %v2943, %v2815
          %v3136 = vmul.f32 %v2944, %v2816
          %v3137 = vmul.f32 %v2945, %v2817
          %v3138 = vmul.f32 %v2946, %v2818
          %v3139 = vmul.f32 %v2947, %v2819
          %v3140 = vmul.f32 %v2948, %v2820
          %v3141 = vmul.f32 %v2949, %v2821
          %v3142 = vmul.f32 %v2950, %v2822
          %v3143 = vmul.f32 %v2951, %v2823
          %v3144 = vmul.f32 %v2952, %v2824
          %v3145 = vmul.f32 %v2953, %v2825
          %v3146 = vmul.f32 %v2954, %v2826
          %v3147 = vmul.f32 %v2955, %v2827
          %v3148 = vmul.f32 %v2956, %v2828
          %v3149 = vmul.f32 %v2957, %v2829
          %v3150 = vmul.f32 %v2958, %v2830
          %v3151 = vmul.f32 %v2959, %v2831
          %v3152 = vmul.f32 %v2960, %v2832
          %v3153 = vmul.f32 %v2961, %v2833
          %v3154 = vmul.f32 %v2962, %v2834
          %v3155 = vmul.f32 %v2963, %v2835
          %v3156 = vmul.f32 %v2964, %v2836
          %v3157 = vmul.f32 %v2965, %v2837
          %v3158 = vmul.f32 %v2966, %v2838
          %v3159 = vmul.f32 %v2967, %v2839
          %v3160 = vmul.f32 %v2968, %v2840
          %v3161 = vmul.f32 %v2969, %v2841
          %v3162 = vmul.f32 %v2970, %v2842
          %v3163 = vmul.f32 %v2971, %v2843
          %v3164 = vmul.f32 %v2972, %v2844
          %v3165 = vmul.f32 %v2973, %v2845
          %v3166 = vmul.f32 %v2974, %v2846
          %v3167 = vmul.f32 %v2975, %v2847
          %v3168 = vmul.f32 %v2976, %v2848
          %v3169 = vmul.f32 %v2977, %v2849
          %v3170 = vmul.f32 %v2978, %v2850
          %v3171 = vmul.f32 %v2979, %v2851
          %v3172 = vmul.f32 %v2980, %v2852
          %v3173 = vmul.f32 %v2981, %v2853
          %v3174 = vmul.f32 %v2982, %v2854
          %v3175 = vmul.f32 %v2983, %v2855
          %v3176 = vmul.f32 %v2984, %v2856
          %v3177 = vmul.f32 %v2985, %v2857
          %v3178 = vmul.f32 %v2986, %v2858
          %v3179 = vmul.f32 %v2987, %v2859
          %v3180 = vmul.f32 %v2988, %v2860
          %v3181 = vmul.f32 %v2989, %v2861
          %v3182 = vmul.f32 %v2990, %v2862
          %v3183 = vmul.f32 %v2991, %v2863
          %v3184 = vmul.f32 %v2992, %v2864
          %v3185 = vmul.f32 %v2993, %v2865
          %v3186 = vmul.f32 %v2994, %v2866
          %v3187 = vmul.f32 %v2995, %v2867
          %v3188 = vmul.f32 %v2996, %v2868
          %v3189 = vmul.f32 %v2997, %v2869
          %v3190 = vmul.f32 %v2998, %v2870
          %v3191 = vmul.f32 %v2999, %v2871
          %v3192 = vmul.f32 %v3000, %v2872
          %v3193 = vmul.f32 %v3001, %v2873
          %v3194 = vmul.f32 %v3003, %v2874
          %v3195 = vmul.f32 %v3005, %v2875
          %v3196 = vmul.f32 %v3007, %v2876
          %v3197 = vmul.f32 %v3009, %v2877
          %v3198 = vmul.f32 %v3011, %v2878
          %v3199 = vmul.f32 %v3013, %v2879
          %v3200 = vmul.f32 %v3015, %v2880
          %v3201 = vmul.f32 %v3017, %v2881
          %v3202 = vmul.f32 %v3019, %v2882
          %v3203 = vmul.f32 %v3021, %v2883
          %v3204 = vmul.f32 %v3023, %v2884
          %v3205 = vmul.f32 %v3025, %v2885
          %v3206 = vmul.f32 %v3027, %v2886
          %v3207 = vmul.f32 %v3029, %v2887
          %v3208 = vmul.f32 %v3031, %v2888
          %v3209 = vmul.f32 %v3033, %v2889
          %v3210 = vmul.f32 %v3035, %v2890
          %v3211 = vmul.f32 %v3037, %v2891
          %v3212 = vmul.f32 %v3039, %v2892
          %v3213 = vmul.f32 %v3041, %v2893
          %v3214 = vmul.f32 %v3043, %v2894
          %v3215 = vmul.f32 %v3045, %v2895
          %v3216 = vmul.f32 %v3047, %v2896
          %v3217 = vmul.f32 %v3049, %v2897
          %v3218 = vmul.f32 %v3051, %v2898
          %v3219 = vmul.f32 %v3053, %v2899
          %v3220 = vmul.f32 %v3055, %v2900
          %v3221 = vmul.f32 %v3057, %v2901
          %v3222 = vmul.f32 %v3059, %v2902
          %v3223 = vmul.f32 %v3061, %v2903
          %v3224 = vmul.f32 %v3063, %v2904
          %v3225 = vmul.f32 %v3065, %v2905
          %v3226 = vmul.f32 %v3067, %v2906
          %v3227 = vmul.f32 %v3069, %v2907
          %v3228 = vmul.f32 %v3071, %v2908
          %v3229 = vmul.f32 %v3073, %v2909
          %v3230 = vmul.f32 %v3075, %v2910
          %v3231 = vmul.f32 %v3077, %v2911
          %v3232 = vmul.f32 %v3079, %v2912
          %v3233 = vmul.f32 %v3081, %v2913
          %v3234 = vmul.f32 %v3083, %v2914
          %v3235 = vmul.f32 %v3085, %v2915
          %v3236 = vmul.f32 %v3087, %v2916
          %v3237 = vmul.f32 %v3089, %v2917
          %v3238 = vmul.f32 %v3091, %v2918
          %v3239 = vmul.f32 %v3093, %v2919
          %v3240 = vmul.f32 %v3095, %v2920
          %v3241 = vmul.f32 %v3097, %v2921
          %v3242 = vmul.f32 %v3099, %v2922
          %v3243 = vmul.f32 %v3101, %v2923
          %v3244 = vmul.f32 %v3103, %v2924
          %v3245 = vmul.f32 %v3105, %v2925
          %v3246 = vmul.f32 %v3107, %v2926
          %v3247 = vmul.f32 %v3109, %v2927
          %v3248 = vmul.f32 %v3111, %v2928
          %v3249 = vmul.f32 %v3113, %v2929
          %v3250 = vmul.f32 %v3115, %v2930
          %v3251 = vmul.f32 %v3117, %v2931
          %v3252 = vmul.f32 %v3119, %v2932
          %v3253 = vmul.f32 %v3121, %v2933
          %v3254 = vmul.f32 %v3123, %v2934
          %v3255 = vmul.f32 %v3125, %v2935
          %v3256 = vmul.f32 %v3127, %v2936
          %v3257 = vmul.f32 %v3129, %v2937
          %v3258 = vadd.f32 %v3130, %v3194
          %v3259 = vadd.f32 %v3131, %v3195
          %v3260 = vadd.f32 %v3132, %v3196
          %v3261 = vadd.f32 %v3133, %v3197
          %v3262 = vadd.f32 %v3134, %v3198
          %v3263 = vadd.f32 %v3135, %v3199
          %v3264 = vadd.f32 %v3136, %v3200
          %v3265 = vadd.f32 %v3137, %v3201
          %v3266 = vadd.f32 %v3138, %v3202
          %v3267 = vadd.f32 %v3139, %v3203
          %v3268 = vadd.f32 %v3140, %v3204
          %v3269 = vadd.f32 %v3141, %v3205
          %v3270 = vadd.f32 %v3142, %v3206
          %v3271 = vadd.f32 %v3143, %v3207
          %v3272 = vadd.f32 %v3144, %v3208
          %v3273 = vadd.f32 %v3145, %v3209
          %v3274 = vadd.f32 %v3146, %v3210
          %v3275 = vadd.f32 %v3147, %v3211
          %v3276 = vadd.f32 %v3148, %v3212
          %v3277 = vadd.f32 %v3149, %v3213
          %v3278 = vadd.f32 %v3150, %v3214
          %v3279 = vadd.f32 %v3151, %v3215
          %v3280 = vadd.f32 %v3152, %v3216
          %v3281 = vadd.f32 %v3153, %v3217
          %v3282 = vadd.f32 %v3154, %v3218
          %v3283 = vadd.f32 %v3155, %v3219
          %v3284 = vadd.f32 %v3156, %v3220
          %v3285 = vadd.f32 %v3157, %v3221
          %v3286 = vadd.f32 %v3158, %v3222
          %v3287 = vadd.f32 %v3159, %v3223
          %v3288 = vadd.f32 %v3160, %v3224
          %v3289 = vadd.f32 %v3161, %v3225
          %v3290 = vadd.f32 %v3162, %v3226
          %v3291 = vadd.f32 %v3163, %v3227
          %v3292 = vadd.f32 %v3164, %v3228
          %v3293 = vadd.f32 %v3165, %v3229
          %v3294 = vadd.f32 %v3166, %v3230
          %v3295 = vadd.f32 %v3167, %v3231
          %v3296 = vadd.f32 %v3168, %v3232
          %v3297 = vadd.f32 %v3169, %v3233
          %v3298 = vadd.f32 %v3170, %v3234
          %v3299 = vadd.f32 %v3171, %v3235
          %v3300 = vadd.f32 %v3172, %v3236
          %v3301 = vadd.f32 %v3173, %v3237
          %v3302 = vadd.f32 %v3174, %v3238
          %v3303 = vadd.f32 %v3175, %v3239
          %v3304 = vadd.f32 %v3176, %v3240
          %v3305 = vadd.f32 %v3177, %v3241
          %v3306 = vadd.f32 %v3178, %v3242
          %v3307 = vadd.f32 %v3179, %v3243
          %v3308 = vadd.f32 %v3180, %v3244
          %v3309 = vadd.f32 %v3181, %v3245
          %v3310 = vadd.f32 %v3182, %v3246
          %v3311 = vadd.f32 %v3183, %v3247
          %v3312 = vadd.f32 %v3184, %v3248
          %v3313 = vadd.f32 %v3185, %v3249
          %v3314 = vadd.f32 %v3186, %v3250
          %v3315 = vadd.f32 %v3187, %v3251
          %v3316 = vadd.f32 %v3188, %v3252
          %v3317 = vadd.f32 %v3189, %v3253
          %v3318 = vadd.f32 %v3190, %v3254
          %v3319 = vadd.f32 %v3191, %v3255
          %v3320 = vadd.f32 %v3192, %v3256
          %v3321 = vadd.f32 %v3193, %v3257
          %v3322 = vpack.c.bf16 %v3259, %v3258
          %v3323 = vpack.c.bf16 %v3261, %v3260
          %v3324 = vpack.c.bf16 %v3263, %v3262
          %v3325 = vpack.c.bf16 %v3265, %v3264
          %v3326 = vpack.c.bf16 %v3267, %v3266
          %v3327 = vpack.c.bf16 %v3269, %v3268
          %v3328 = vpack.c.bf16 %v3271, %v3270
          %v3329 = vpack.c.bf16 %v3273, %v3272
          %v3330 = vpack.c.bf16 %v3275, %v3274
          %v3331 = vpack.c.bf16 %v3277, %v3276
          %v3332 = vpack.c.bf16 %v3279, %v3278
          %v3333 = vpack.c.bf16 %v3281, %v3280
          %v3334 = vpack.c.bf16 %v3283, %v3282
          %v3335 = vpack.c.bf16 %v3285, %v3284
          %v3336 = vpack.c.bf16 %v3287, %v3286
          %v3337 = vpack.c.bf16 %v3289, %v3288
          %v3338 = vpack.c.bf16 %v3291, %v3290
          %v3339 = vpack.c.bf16 %v3293, %v3292
          %v3340 = vpack.c.bf16 %v3295, %v3294
          %v3341 = vpack.c.bf16 %v3297, %v3296
          %v3342 = vpack.c.bf16 %v3299, %v3298
          %v3343 = vpack.c.bf16 %v3301, %v3300
          %v3344 = vpack.c.bf16 %v3303, %v3302
          %v3345 = vpack.c.bf16 %v3305, %v3304
          %v3346 = vpack.c.bf16 %v3307, %v3306
          %v3347 = vpack.c.bf16 %v3309, %v3308
          %v3348 = vpack.c.bf16 %v3311, %v3310
          %v3349 = vpack.c.bf16 %v3313, %v3312
          %v3350 = vpack.c.bf16 %v3315, %v3314
          %v3351 = vpack.c.bf16 %v3317, %v3316
          %v3352 = vpack.c.bf16 %v3319, %v3318
          %v3353 = vpack.c.bf16 %v3321, %v3320
          %v3386 = vunpack.c.l.b16 %v3322
          %v3387 = vunpack.c.h.b16 %v3322
          %v3388 = vunpack.c.l.b16 %v3323
          %v3389 = vunpack.c.h.b16 %v3323
          %v3390 = vunpack.c.l.b16 %v3324
          %v3391 = vunpack.c.h.b16 %v3324
          %v3392 = vunpack.c.l.b16 %v3325
          %v3393 = vunpack.c.h.b16 %v3325
          %v3394 = vunpack.c.l.b16 %v3326
          %v3395 = vunpack.c.h.b16 %v3326
          %v3396 = vunpack.c.l.b16 %v3327
          %v3397 = vunpack.c.h.b16 %v3327
          %v3398 = vunpack.c.l.b16 %v3328
          %v3399 = vunpack.c.h.b16 %v3328
          %v3400 = vunpack.c.l.b16 %v3329
          %v3401 = vunpack.c.h.b16 %v3329
          %v3402 = vunpack.c.l.b16 %v3330
          %v3403 = vunpack.c.h.b16 %v3330
          %v3404 = vunpack.c.l.b16 %v3331
          %v3405 = vunpack.c.h.b16 %v3331
          %v3406 = vunpack.c.l.b16 %v3332
          %v3407 = vunpack.c.h.b16 %v3332
          %v3408 = vunpack.c.l.b16 %v3333
          %v3409 = vunpack.c.h.b16 %v3333
          %v3410 = vunpack.c.l.b16 %v3334
          %v3411 = vunpack.c.h.b16 %v3334
          %v3412 = vunpack.c.l.b16 %v3335
          %v3413 = vunpack.c.h.b16 %v3335
          %v3414 = vunpack.c.l.b16 %v3336
          %v3415 = vunpack.c.h.b16 %v3336
          %v3416 = vunpack.c.l.b16 %v3337
          %v3417 = vunpack.c.h.b16 %v3337
          %v3418 = vunpack.c.l.b16 %v3338
          %v3419 = vunpack.c.h.b16 %v3338
          %v3420 = vunpack.c.l.b16 %v3339
          %v3421 = vunpack.c.h.b16 %v3339
          %v3422 = vunpack.c.l.b16 %v3340
          %v3423 = vunpack.c.h.b16 %v3340
          %v3424 = vunpack.c.l.b16 %v3341
          %v3425 = vunpack.c.h.b16 %v3341
          %v3426 = vunpack.c.l.b16 %v3342
          %v3427 = vunpack.c.h.b16 %v3342
          %v3428 = vunpack.c.l.b16 %v3343
          %v3429 = vunpack.c.h.b16 %v3343
          %v3430 = vunpack.c.l.b16 %v3344
          %v3431 = vunpack.c.h.b16 %v3344
          %v3432 = vunpack.c.l.b16 %v3345
          %v3433 = vunpack.c.h.b16 %v3345
          %v3434 = vunpack.c.l.b16 %v3346
          %v3435 = vunpack.c.h.b16 %v3346
          %v3436 = vunpack.c.l.b16 %v3347
          %v3437 = vunpack.c.h.b16 %v3347
          %v3438 = vunpack.c.l.b16 %v3348
          %v3439 = vunpack.c.h.b16 %v3348
          %v3440 = vunpack.c.l.b16 %v3349
          %v3441 = vunpack.c.h.b16 %v3349
          %v3442 = vunpack.c.l.b16 %v3350
          %v3443 = vunpack.c.h.b16 %v3350
          %v3444 = vunpack.c.l.b16 %v3351
          %v3445 = vunpack.c.h.b16 %v3351
          %v3446 = vunpack.c.l.b16 %v3352
          %v3447 = vunpack.c.h.b16 %v3352
          %v3448 = vunpack.c.l.b16 %v3353
          %v3449 = vunpack.c.h.b16 %v3353
          %v3450 = vpack.c.b16 %v3386, %v3386
          %v3451 = vpack.c.b16 %v3387, %v3387
          %v3452 = vpack.c.b16 %v3388, %v3388
          %v3453 = vpack.c.b16 %v3389, %v3389
          %v3454 = vpack.c.b16 %v3390, %v3390
          %v3455 = vpack.c.b16 %v3391, %v3391
          %v3456 = vpack.c.b16 %v3392, %v3392
          %v3457 = vpack.c.b16 %v3393, %v3393
          %v3458 = vpack.c.b16 %v3394, %v3394
          %v3459 = vpack.c.b16 %v3395, %v3395
          %v3460 = vpack.c.b16 %v3396, %v3396
          %v3461 = vpack.c.b16 %v3397, %v3397
          %v3462 = vpack.c.b16 %v3398, %v3398
          %v3463 = vpack.c.b16 %v3399, %v3399
          %v3464 = vpack.c.b16 %v3400, %v3400
          %v3465 = vpack.c.b16 %v3401, %v3401
          %v3466 = vpack.c.b16 %v3402, %v3402
          %v3467 = vpack.c.b16 %v3403, %v3403
          %v3468 = vpack.c.b16 %v3404, %v3404
          %v3469 = vpack.c.b16 %v3405, %v3405
          %v3470 = vpack.c.b16 %v3406, %v3406
          %v3471 = vpack.c.b16 %v3407, %v3407
          %v3472 = vpack.c.b16 %v3408, %v3408
          %v3473 = vpack.c.b16 %v3409, %v3409
          %v3474 = vpack.c.b16 %v3410, %v3410
          %v3475 = vpack.c.b16 %v3411, %v3411
          %v3476 = vpack.c.b16 %v3412, %v3412
          %v3477 = vpack.c.b16 %v3413, %v3413
          %v3478 = vpack.c.b16 %v3414, %v3414
          %v3479 = vpack.c.b16 %v3415, %v3415
          %v3480 = vpack.c.b16 %v3416, %v3416
          %v3481 = vpack.c.b16 %v3417, %v3417
          %v3482 = vpack.c.b16 %v3418, %v3418
          %v3483 = vpack.c.b16 %v3419, %v3419
          %v3484 = vpack.c.b16 %v3420, %v3420
          %v3485 = vpack.c.b16 %v3421, %v3421
          %v3486 = vpack.c.b16 %v3422, %v3422
          %v3487 = vpack.c.b16 %v3423, %v3423
          %v3488 = vpack.c.b16 %v3424, %v3424
          %v3489 = vpack.c.b16 %v3425, %v3425
          %v3490 = vpack.c.b16 %v3426, %v3426
          %v3491 = vpack.c.b16 %v3427, %v3427
          %v3492 = vpack.c.b16 %v3428, %v3428
          %v3493 = vpack.c.b16 %v3429, %v3429
          %v3494 = vpack.c.b16 %v3430, %v3430
          %v3495 = vpack.c.b16 %v3431, %v3431
          %v3496 = vpack.c.b16 %v3432, %v3432
          %v3497 = vpack.c.b16 %v3433, %v3433
          %v3498 = vpack.c.b16 %v3434, %v3434
          %v3499 = vpack.c.b16 %v3435, %v3435
          %v3500 = vpack.c.b16 %v3436, %v3436
          %v3501 = vpack.c.b16 %v3437, %v3437
          %v3502 = vpack.c.b16 %v3438, %v3438
          %v3503 = vpack.c.b16 %v3439, %v3439
          %v3504 = vpack.c.b16 %v3440, %v3440
          %v3505 = vpack.c.b16 %v3441, %v3441
          %v3506 = vpack.c.b16 %v3442, %v3442
          %v3507 = vpack.c.b16 %v3443, %v3443
          %v3508 = vpack.c.b16 %v3444, %v3444
          %v3509 = vpack.c.b16 %v3445, %v3445
          %v3510 = vpack.c.b16 %v3446, %v3446
          %v3511 = vpack.c.b16 %v3447, %v3447
          %v3512 = vpack.c.b16 %v3448, %v3448
          %v3513 = vpack.c.b16 %v3449, %v3449
          %3578 = vst [vmem:[%s298] sm:$0xf] %v3450
          %3579 = vst [vmem:[%s298 + $0x10] sm:$0xf] %v3451
          %3580 = vst [vmem:[%s298 + $0x20] sm:$0xf] %v3452
          %3581 = vst [vmem:[%s298 + $0x30] sm:$0xf] %v3453
          %3582 = vst [vmem:[%s298 + $0x40] sm:$0xf] %v3454
          %3583 = vst [vmem:[%s298 + $0x50] sm:$0xf] %v3455
          %3584 = vst [vmem:[%s298 + $0x60] sm:$0xf] %v3456
          %3585 = vst [vmem:[%s298 + $0x70] sm:$0xf] %v3457
          %3586 = vst [vmem:[%s298 + $0x80] sm:$0xf] %v3458
          %3587 = vst [vmem:[%s298 + $0x90] sm:$0xf] %v3459
          %3588 = vst [vmem:[%s298 + $0xa0] sm:$0xf] %v3460
          %3589 = vst [vmem:[%s298 + $0xb0] sm:$0xf] %v3461
          %3590 = vst [vmem:[%s298 + $0xc0] sm:$0xf] %v3462
          %3591 = vst [vmem:[%s298 + $0xd0] sm:$0xf] %v3463
          %3592 = vst [vmem:[%s298 + $0xe0] sm:$0xf] %v3464
          %3593 = vst [vmem:[%s298 + $0xf0] sm:$0xf] %v3465
          %3594 = vst [vmem:[%s298 + $0x100] sm:$0xf] %v3466
          %3595 = vst [vmem:[%s298 + $0x110] sm:$0xf] %v3467
          %3596 = vst [vmem:[%s298 + $0x120] sm:$0xf] %v3468
          %3597 = vst [vmem:[%s298 + $0x130] sm:$0xf] %v3469
          %3598 = vst [vmem:[%s298 + $0x140] sm:$0xf] %v3470
          %3599 = vst [vmem:[%s298 + $0x150] sm:$0xf] %v3471
          %3600 = vst [vmem:[%s298 + $0x160] sm:$0xf] %v3472
          %3601 = vst [vmem:[%s298 + $0x170] sm:$0xf] %v3473
          %3602 = vst [vmem:[%s298 + $0x180] sm:$0xf] %v3474
          %3603 = vst [vmem:[%s298 + $0x190] sm:$0xf] %v3475
          %3604 = vst [vmem:[%s298 + $0x1a0] sm:$0xf] %v3476
          %3605 = vst [vmem:[%s298 + $0x1b0] sm:$0xf] %v3477
          %3606 = vst [vmem:[%s298 + $0x1c0] sm:$0xf] %v3478
          %3607 = vst [vmem:[%s298 + $0x1d0] sm:$0xf] %v3479
          %3608 = vst [vmem:[%s298 + $0x1e0] sm:$0xf] %v3480
          %3609 = vst [vmem:[%s298 + $0x1f0] sm:$0xf] %v3481
          %3610 = vst [vmem:[%s298 + $0x200] sm:$0xf] %v3482
          %3611 = vst [vmem:[%s298 + $0x210] sm:$0xf] %v3483
          %3612 = vst [vmem:[%s298 + $0x220] sm:$0xf] %v3484
          %3613 = vst [vmem:[%s298 + $0x230] sm:$0xf] %v3485
          %3614 = vst [vmem:[%s298 + $0x240] sm:$0xf] %v3486
          %3615 = vst [vmem:[%s298 + $0x250] sm:$0xf] %v3487
          %3616 = vst [vmem:[%s298 + $0x260] sm:$0xf] %v3488
          %3617 = vst [vmem:[%s298 + $0x270] sm:$0xf] %v3489
          %3618 = vst [vmem:[%s298 + $0x280] sm:$0xf] %v3490
          %3619 = vst [vmem:[%s298 + $0x290] sm:$0xf] %v3491
          %3620 = vst [vmem:[%s298 + $0x2a0] sm:$0xf] %v3492
          %3621 = vst [vmem:[%s298 + $0x2b0] sm:$0xf] %v3493
          %3622 = vst [vmem:[%s298 + $0x2c0] sm:$0xf] %v3494
          %3623 = vst [vmem:[%s298 + $0x2d0] sm:$0xf] %v3495
          %3624 = vst [vmem:[%s298 + $0x2e0] sm:$0xf] %v3496
          %3625 = vst [vmem:[%s298 + $0x2f0] sm:$0xf] %v3497
          %3626 = vst [vmem:[%s298 + $0x300] sm:$0xf] %v3498
          %3627 = vst [vmem:[%s298 + $0x310] sm:$0xf] %v3499
          %3628 = vst [vmem:[%s298 + $0x320] sm:$0xf] %v3500
          %3629 = vst [vmem:[%s298 + $0x330] sm:$0xf] %v3501
          %3630 = vst [vmem:[%s298 + $0x340] sm:$0xf] %v3502
          %3631 = vst [vmem:[%s298 + $0x350] sm:$0xf] %v3503
          %3632 = vst [vmem:[%s298 + $0x360] sm:$0xf] %v3504
          %3633 = vst [vmem:[%s298 + $0x370] sm:$0xf] %v3505
          %3634 = vst [vmem:[%s298 + $0x380] sm:$0xf] %v3506
          %3635 = vst [vmem:[%s298 + $0x390] sm:$0xf] %v3507
          %3636 = vst [vmem:[%s298 + $0x3a0] sm:$0xf] %v3508
          %3637 = vst [vmem:[%s298 + $0x3b0] sm:$0xf] %v3509
          %3638 = vst [vmem:[%s298 + $0x3c0] sm:$0xf] %v3510
          %3639 = vst [vmem:[%s298 + $0x3d0] sm:$0xf] %v3511
          %3640 = vst [vmem:[%s298 + $0x3e0] sm:$0xf] %v3512
          %3641 = vst [vmem:[%s298 + $0x3f0] sm:$0xf] %v3513
          %v3642 = vld [vmem:[#allocation2 + $0x8] sm:$0xff]
          %v3643 = vld [vmem:[#allocation2 + $0x28] sm:$0xff]
          %v3644 = vld [vmem:[#allocation2 + $0x48] sm:$0xff]
          %v3645 = vld [vmem:[#allocation2 + $0x68] sm:$0xff]
          %v3646 = vld [vmem:[#allocation2 + $0x88] sm:$0xff]
          %v3647 = vld [vmem:[#allocation2 + $0xa8] sm:$0xff]
          %v3648 = vld [vmem:[#allocation2 + $0xc8] sm:$0xff]
          %v3649 = vld [vmem:[#allocation2 + $0xe8] sm:$0xff]
          %v3650 = vld [vmem:[#allocation2 + $0x108] sm:$0xff]
          %v3651 = vld [vmem:[#allocation2 + $0x128] sm:$0xff]
          %v3652 = vld [vmem:[#allocation2 + $0x148] sm:$0xff]
          %v3653 = vld [vmem:[#allocation2 + $0x168] sm:$0xff]
          %v3654 = vld [vmem:[#allocation2 + $0x188] sm:$0xff]
          %v3655 = vld [vmem:[#allocation2 + $0x1a8] sm:$0xff]
          %v3656 = vld [vmem:[#allocation2 + $0x1c8] sm:$0xff]
          %v3657 = vld [vmem:[#allocation2 + $0x1e8] sm:$0xff]
          %v3658 = vld [vmem:[#allocation2 + $0x208] sm:$0xff]
          %v3659 = vld [vmem:[#allocation2 + $0x228] sm:$0xff]
          %v3660 = vld [vmem:[#allocation2 + $0x248] sm:$0xff]
          %v3661 = vld [vmem:[#allocation2 + $0x268] sm:$0xff]
          %v3662 = vld [vmem:[#allocation2 + $0x288] sm:$0xff]
          %v3663 = vld [vmem:[#allocation2 + $0x2a8] sm:$0xff]
          %v3664 = vld [vmem:[#allocation2 + $0x2c8] sm:$0xff]
          %v3665 = vld [vmem:[#allocation2 + $0x2e8] sm:$0xff]
          %v3666 = vld [vmem:[#allocation2 + $0x308] sm:$0xff]
          %v3667 = vld [vmem:[#allocation2 + $0x328] sm:$0xff]
          %v3668 = vld [vmem:[#allocation2 + $0x348] sm:$0xff]
          %v3669 = vld [vmem:[#allocation2 + $0x368] sm:$0xff]
          %v3670 = vld [vmem:[#allocation2 + $0x388] sm:$0xff]
          %v3671 = vld [vmem:[#allocation2 + $0x3a8] sm:$0xff]
          %v3672 = vld [vmem:[#allocation2 + $0x3c8] sm:$0xff]
          %v3673 = vld [vmem:[#allocation2 + $0x3e8] sm:$0xff]
          %v3674 = vld [vmem:[#allocation2 + $0x408] sm:$0xff]
          %v3675 = vld [vmem:[#allocation2 + $0x428] sm:$0xff]
          %v3676 = vld [vmem:[#allocation2 + $0x448] sm:$0xff]
          %v3677 = vld [vmem:[#allocation2 + $0x468] sm:$0xff]
          %v3678 = vld [vmem:[#allocation2 + $0x488] sm:$0xff]
          %v3679 = vld [vmem:[#allocation2 + $0x4a8] sm:$0xff]
          %v3680 = vld [vmem:[#allocation2 + $0x4c8] sm:$0xff]
          %v3681 = vld [vmem:[#allocation2 + $0x4e8] sm:$0xff]
          %v3682 = vld [vmem:[#allocation2 + $0x508] sm:$0xff]
          %v3683 = vld [vmem:[#allocation2 + $0x528] sm:$0xff]
          %v3684 = vld [vmem:[#allocation2 + $0x548] sm:$0xff]
          %v3685 = vld [vmem:[#allocation2 + $0x568] sm:$0xff]
          %v3686 = vld [vmem:[#allocation2 + $0x588] sm:$0xff]
          %v3687 = vld [vmem:[#allocation2 + $0x5a8] sm:$0xff]
          %v3688 = vld [vmem:[#allocation2 + $0x5c8] sm:$0xff]
          %v3689 = vld [vmem:[#allocation2 + $0x5e8] sm:$0xff]
          %v3690 = vld [vmem:[#allocation2 + $0x608] sm:$0xff]
          %v3691 = vld [vmem:[#allocation2 + $0x628] sm:$0xff]
          %v3692 = vld [vmem:[#allocation2 + $0x648] sm:$0xff]
          %v3693 = vld [vmem:[#allocation2 + $0x668] sm:$0xff]
          %v3694 = vld [vmem:[#allocation2 + $0x688] sm:$0xff]
          %v3695 = vld [vmem:[#allocation2 + $0x6a8] sm:$0xff]
          %v3696 = vld [vmem:[#allocation2 + $0x6c8] sm:$0xff]
          %v3697 = vld [vmem:[#allocation2 + $0x6e8] sm:$0xff]
          %v3698 = vld [vmem:[#allocation2 + $0x708] sm:$0xff]
          %v3699 = vld [vmem:[#allocation2 + $0x728] sm:$0xff]
          %v3700 = vld [vmem:[#allocation2 + $0x748] sm:$0xff]
          %v3701 = vld [vmem:[#allocation2 + $0x768] sm:$0xff]
          %v3702 = vld [vmem:[#allocation2 + $0x788] sm:$0xff]
          %v3703 = vld [vmem:[#allocation2 + $0x7a8] sm:$0xff]
          %v3704 = vld [vmem:[#allocation2 + $0x7c8] sm:$0xff]
          %v3705 = vld [vmem:[#allocation2 + $0x7e8] sm:$0xff]
          %3706 = vrot.lane.b32.xlu0 %v3642, 64
          %v3707 = vpop.permute.xlu0 %3706
          %3708 = vrot.lane.b32.xlu0 %v3643, 64
          %v3709 = vpop.permute.xlu0 %3708
          %3710 = vrot.lane.b32.xlu0 %v3644, 64
          %v3711 = vpop.permute.xlu0 %3710
          %3712 = vrot.lane.b32.xlu0 %v3645, 64
          %v3713 = vpop.permute.xlu0 %3712
          %3714 = vrot.lane.b32.xlu0 %v3646, 64
          %v3715 = vpop.permute.xlu0 %3714
          %3716 = vrot.lane.b32.xlu0 %v3647, 64
          %v3717 = vpop.permute.xlu0 %3716
          %3718 = vrot.lane.b32.xlu0 %v3648, 64
          %v3719 = vpop.permute.xlu0 %3718
          %3720 = vrot.lane.b32.xlu0 %v3649, 64
          %v3721 = vpop.permute.xlu0 %3720
          %3722 = vrot.lane.b32.xlu0 %v3650, 64
          %v3723 = vpop.permute.xlu0 %3722
          %3724 = vrot.lane.b32.xlu0 %v3651, 64
          %v3725 = vpop.permute.xlu0 %3724
          %3726 = vrot.lane.b32.xlu0 %v3652, 64
          %v3727 = vpop.permute.xlu0 %3726
          %3728 = vrot.lane.b32.xlu0 %v3653, 64
          %v3729 = vpop.permute.xlu0 %3728
          %3730 = vrot.lane.b32.xlu0 %v3654, 64
          %v3731 = vpop.permute.xlu0 %3730
          %3732 = vrot.lane.b32.xlu0 %v3655, 64
          %v3733 = vpop.permute.xlu0 %3732
          %3734 = vrot.lane.b32.xlu0 %v3656, 64
          %v3735 = vpop.permute.xlu0 %3734
          %3736 = vrot.lane.b32.xlu0 %v3657, 64
          %v3737 = vpop.permute.xlu0 %3736
          %3738 = vrot.lane.b32.xlu0 %v3658, 64
          %v3739 = vpop.permute.xlu0 %3738
          %3740 = vrot.lane.b32.xlu0 %v3659, 64
          %v3741 = vpop.permute.xlu0 %3740
          %3742 = vrot.lane.b32.xlu0 %v3660, 64
          %v3743 = vpop.permute.xlu0 %3742
          %3744 = vrot.lane.b32.xlu0 %v3661, 64
          %v3745 = vpop.permute.xlu0 %3744
          %3746 = vrot.lane.b32.xlu0 %v3662, 64
          %v3747 = vpop.permute.xlu0 %3746
          %3748 = vrot.lane.b32.xlu0 %v3663, 64
          %v3749 = vpop.permute.xlu0 %3748
          %3750 = vrot.lane.b32.xlu0 %v3664, 64
          %v3751 = vpop.permute.xlu0 %3750
          %3752 = vrot.lane.b32.xlu0 %v3665, 64
          %v3753 = vpop.permute.xlu0 %3752
          %3754 = vrot.lane.b32.xlu0 %v3666, 64
          %v3755 = vpop.permute.xlu0 %3754
          %3756 = vrot.lane.b32.xlu0 %v3667, 64
          %v3757 = vpop.permute.xlu0 %3756
          %3758 = vrot.lane.b32.xlu0 %v3668, 64
          %v3759 = vpop.permute.xlu0 %3758
          %3760 = vrot.lane.b32.xlu0 %v3669, 64
          %v3761 = vpop.permute.xlu0 %3760
          %3762 = vrot.lane.b32.xlu0 %v3670, 64
          %v3763 = vpop.permute.xlu0 %3762
          %3764 = vrot.lane.b32.xlu0 %v3671, 64
          %v3765 = vpop.permute.xlu0 %3764
          %3766 = vrot.lane.b32.xlu0 %v3672, 64
          %v3767 = vpop.permute.xlu0 %3766
          %3768 = vrot.lane.b32.xlu0 %v3673, 64
          %v3769 = vpop.permute.xlu0 %3768
          %3770 = vrot.lane.b32.xlu0 %v3674, 64
          %v3771 = vpop.permute.xlu0 %3770
          %3772 = vrot.lane.b32.xlu0 %v3675, 64
          %v3773 = vpop.permute.xlu0 %3772
          %3774 = vrot.lane.b32.xlu0 %v3676, 64
          %v3775 = vpop.permute.xlu0 %3774
          %3776 = vrot.lane.b32.xlu0 %v3677, 64
          %v3777 = vpop.permute.xlu0 %3776
          %3778 = vrot.lane.b32.xlu0 %v3678, 64
          %v3779 = vpop.permute.xlu0 %3778
          %3780 = vrot.lane.b32.xlu0 %v3679, 64
          %v3781 = vpop.permute.xlu0 %3780
          %3782 = vrot.lane.b32.xlu0 %v3680, 64
          %v3783 = vpop.permute.xlu0 %3782
          %3784 = vrot.lane.b32.xlu0 %v3681, 64
          %v3785 = vpop.permute.xlu0 %3784
          %3786 = vrot.lane.b32.xlu0 %v3682, 64
          %v3787 = vpop.permute.xlu0 %3786
          %3788 = vrot.lane.b32.xlu0 %v3683, 64
          %v3789 = vpop.permute.xlu0 %3788
          %3790 = vrot.lane.b32.xlu0 %v3684, 64
          %v3791 = vpop.permute.xlu0 %3790
          %3792 = vrot.lane.b32.xlu0 %v3685, 64
          %v3793 = vpop.permute.xlu0 %3792
          %3794 = vrot.lane.b32.xlu0 %v3686, 64
          %v3795 = vpop.permute.xlu0 %3794
          %3796 = vrot.lane.b32.xlu0 %v3687, 64
          %v3797 = vpop.permute.xlu0 %3796
          %3798 = vrot.lane.b32.xlu0 %v3688, 64
          %v3799 = vpop.permute.xlu0 %3798
          %3800 = vrot.lane.b32.xlu0 %v3689, 64
          %v3801 = vpop.permute.xlu0 %3800
          %3802 = vrot.lane.b32.xlu0 %v3690, 64
          %v3803 = vpop.permute.xlu0 %3802
          %3804 = vrot.lane.b32.xlu0 %v3691, 64
          %v3805 = vpop.permute.xlu0 %3804
          %3806 = vrot.lane.b32.xlu0 %v3692, 64
          %v3807 = vpop.permute.xlu0 %3806
          %3808 = vrot.lane.b32.xlu0 %v3693, 64
          %v3809 = vpop.permute.xlu0 %3808
          %3810 = vrot.lane.b32.xlu0 %v3694, 64
          %v3811 = vpop.permute.xlu0 %3810
          %3812 = vrot.lane.b32.xlu0 %v3695, 64
          %v3813 = vpop.permute.xlu0 %3812
          %3814 = vrot.lane.b32.xlu0 %v3696, 64
          %v3815 = vpop.permute.xlu0 %3814
          %3816 = vrot.lane.b32.xlu0 %v3697, 64
          %v3817 = vpop.permute.xlu0 %3816
          %3818 = vrot.lane.b32.xlu0 %v3698, 64
          %v3819 = vpop.permute.xlu0 %3818
          %3820 = vrot.lane.b32.xlu0 %v3699, 64
          %v3821 = vpop.permute.xlu0 %3820
          %3822 = vrot.lane.b32.xlu0 %v3700, 64
          %v3823 = vpop.permute.xlu0 %3822
          %3824 = vrot.lane.b32.xlu0 %v3701, 64
          %v3825 = vpop.permute.xlu0 %3824
          %3826 = vrot.lane.b32.xlu0 %v3702, 64
          %v3827 = vpop.permute.xlu0 %3826
          %3828 = vrot.lane.b32.xlu0 %v3703, 64
          %v3829 = vpop.permute.xlu0 %3828
          %3830 = vrot.lane.b32.xlu0 %v3704, 64
          %v3831 = vpop.permute.xlu0 %3830
          %3832 = vrot.lane.b32.xlu0 %v3705, 64
          %v3833 = vpop.permute.xlu0 %3832
          %v3834 = vmul.f32 %v3642, %v2810
          %v3835 = vmul.f32 %v3643, %v2811
          %v3836 = vmul.f32 %v3644, %v2812
          %v3837 = vmul.f32 %v3645, %v2813
          %v3838 = vmul.f32 %v3646, %v2814
          %v3839 = vmul.f32 %v3647, %v2815
          %v3840 = vmul.f32 %v3648, %v2816
          %v3841 = vmul.f32 %v3649, %v2817
          %v3842 = vmul.f32 %v3650, %v2818
          %v3843 = vmul.f32 %v3651, %v2819
          %v3844 = vmul.f32 %v3652, %v2820
          %v3845 = vmul.f32 %v3653, %v2821
          %v3846 = vmul.f32 %v3654, %v2822
          %v3847 = vmul.f32 %v3655, %v2823
          %v3848 = vmul.f32 %v3656, %v2824
          %v3849 = vmul.f32 %v3657, %v2825
          %v3850 = vmul.f32 %v3658, %v2826
          %v3851 = vmul.f32 %v3659, %v2827
          %v3852 = vmul.f32 %v3660, %v2828
          %v3853 = vmul.f32 %v3661, %v2829
          %v3854 = vmul.f32 %v3662, %v2830
          %v3855 = vmul.f32 %v3663, %v2831
          %v3856 = vmul.f32 %v3664, %v2832
          %v3857 = vmul.f32 %v3665, %v2833
          %v3858 = vmul.f32 %v3666, %v2834
          %v3859 = vmul.f32 %v3667, %v2835
          %v3860 = vmul.f32 %v3668, %v2836
          %v3861 = vmul.f32 %v3669, %v2837
          %v3862 = vmul.f32 %v3670, %v2838
          %v3863 = vmul.f32 %v3671, %v2839
          %v3864 = vmul.f32 %v3672, %v2840
          %v3865 = vmul.f32 %v3673, %v2841
          %v3866 = vmul.f32 %v3674, %v2842
          %v3867 = vmul.f32 %v3675, %v2843
          %v3868 = vmul.f32 %v3676, %v2844
          %v3869 = vmul.f32 %v3677, %v2845
          %v3870 = vmul.f32 %v3678, %v2846
          %v3871 = vmul.f32 %v3679, %v2847
          %v3872 = vmul.f32 %v3680, %v2848
          %v3873 = vmul.f32 %v3681, %v2849
          %v3874 = vmul.f32 %v3682, %v2850
          %v3875 = vmul.f32 %v3683, %v2851
          %v3876 = vmul.f32 %v3684, %v2852
          %v3877 = vmul.f32 %v3685, %v2853
          %v3878 = vmul.f32 %v3686, %v2854
          %v3879 = vmul.f32 %v3687, %v2855
          %v3880 = vmul.f32 %v3688, %v2856
          %v3881 = vmul.f32 %v3689, %v2857
          %v3882 = vmul.f32 %v3690, %v2858
          %v3883 = vmul.f32 %v3691, %v2859
          %v3884 = vmul.f32 %v3692, %v2860
          %v3885 = vmul.f32 %v3693, %v2861
          %v3886 = vmul.f32 %v3694, %v2862
          %v3887 = vmul.f32 %v3695, %v2863
          %v3888 = vmul.f32 %v3696, %v2864
          %v3889 = vmul.f32 %v3697, %v2865
          %v3890 = vmul.f32 %v3698, %v2866
          %v3891 = vmul.f32 %v3699, %v2867
          %v3892 = vmul.f32 %v3700, %v2868
          %v3893 = vmul.f32 %v3701, %v2869
          %v3894 = vmul.f32 %v3702, %v2870
          %v3895 = vmul.f32 %v3703, %v2871
          %v3896 = vmul.f32 %v3704, %v2872
          %v3897 = vmul.f32 %v3705, %v2873
          %v3898 = vmul.f32 %v3707, %v2874
          %v3899 = vmul.f32 %v3709, %v2875
          %v3900 = vmul.f32 %v3711, %v2876
          %v3901 = vmul.f32 %v3713, %v2877
          %v3902 = vmul.f32 %v3715, %v2878
          %v3903 = vmul.f32 %v3717, %v2879
          %v3904 = vmul.f32 %v3719, %v2880
          %v3905 = vmul.f32 %v3721, %v2881
          %v3906 = vmul.f32 %v3723, %v2882
          %v3907 = vmul.f32 %v3725, %v2883
          %v3908 = vmul.f32 %v3727, %v2884
          %v3909 = vmul.f32 %v3729, %v2885
          %v3910 = vmul.f32 %v3731, %v2886
          %v3911 = vmul.f32 %v3733, %v2887
          %v3912 = vmul.f32 %v3735, %v2888
          %v3913 = vmul.f32 %v3737, %v2889
          %v3914 = vmul.f32 %v3739, %v2890
          %v3915 = vmul.f32 %v3741, %v2891
          %v3916 = vmul.f32 %v3743, %v2892
          %v3917 = vmul.f32 %v3745, %v2893
          %v3918 = vmul.f32 %v3747, %v2894
          %v3919 = vmul.f32 %v3749, %v2895
          %v3920 = vmul.f32 %v3751, %v2896
          %v3921 = vmul.f32 %v3753, %v2897
          %v3922 = vmul.f32 %v3755, %v2898
          %v3923 = vmul.f32 %v3757, %v2899
          %v3924 = vmul.f32 %v3759, %v2900
          %v3925 = vmul.f32 %v3761, %v2901
          %v3926 = vmul.f32 %v3763, %v2902
          %v3927 = vmul.f32 %v3765, %v2903
          %v3928 = vmul.f32 %v3767, %v2904
          %v3929 = vmul.f32 %v3769, %v2905
          %v3930 = vmul.f32 %v3771, %v2906
          %v3931 = vmul.f32 %v3773, %v2907
          %v3932 = vmul.f32 %v3775, %v2908
          %v3933 = vmul.f32 %v3777, %v2909
          %v3934 = vmul.f32 %v3779, %v2910
          %v3935 = vmul.f32 %v3781, %v2911
          %v3936 = vmul.f32 %v3783, %v2912
          %v3937 = vmul.f32 %v3785, %v2913
          %v3938 = vmul.f32 %v3787, %v2914
          %v3939 = vmul.f32 %v3789, %v2915
          %v3940 = vmul.f32 %v3791, %v2916
          %v3941 = vmul.f32 %v3793, %v2917
          %v3942 = vmul.f32 %v3795, %v2918
          %v3943 = vmul.f32 %v3797, %v2919
          %v3944 = vmul.f32 %v3799, %v2920
          %v3945 = vmul.f32 %v3801, %v2921
          %v3946 = vmul.f32 %v3803, %v2922
          %v3947 = vmul.f32 %v3805, %v2923
          %v3948 = vmul.f32 %v3807, %v2924
          %v3949 = vmul.f32 %v3809, %v2925
          %v3950 = vmul.f32 %v3811, %v2926
          %v3951 = vmul.f32 %v3813, %v2927
          %v3952 = vmul.f32 %v3815, %v2928
          %v3953 = vmul.f32 %v3817, %v2929
          %v3954 = vmul.f32 %v3819, %v2930
          %v3955 = vmul.f32 %v3821, %v2931
          %v3956 = vmul.f32 %v3823, %v2932
          %v3957 = vmul.f32 %v3825, %v2933
          %v3958 = vmul.f32 %v3827, %v2934
          %v3959 = vmul.f32 %v3829, %v2935
          %v3960 = vmul.f32 %v3831, %v2936
          %v3961 = vmul.f32 %v3833, %v2937
          %v3962 = vadd.f32 %v3834, %v3898
          %v3963 = vadd.f32 %v3835, %v3899
          %v3964 = vadd.f32 %v3836, %v3900
          %v3965 = vadd.f32 %v3837, %v3901
          %v3966 = vadd.f32 %v3838, %v3902
          %v3967 = vadd.f32 %v3839, %v3903
          %v3968 = vadd.f32 %v3840, %v3904
          %v3969 = vadd.f32 %v3841, %v3905
          %v3970 = vadd.f32 %v3842, %v3906
          %v3971 = vadd.f32 %v3843, %v3907
          %v3972 = vadd.f32 %v3844, %v3908
          %v3973 = vadd.f32 %v3845, %v3909
          %v3974 = vadd.f32 %v3846, %v3910
          %v3975 = vadd.f32 %v3847, %v3911
          %v3976 = vadd.f32 %v3848, %v3912
          %v3977 = vadd.f32 %v3849, %v3913
          %v3978 = vadd.f32 %v3850, %v3914
          %v3979 = vadd.f32 %v3851, %v3915
          %v3980 = vadd.f32 %v3852, %v3916
          %v3981 = vadd.f32 %v3853, %v3917
          %v3982 = vadd.f32 %v3854, %v3918
          %v3983 = vadd.f32 %v3855, %v3919
          %v3984 = vadd.f32 %v3856, %v3920
          %v3985 = vadd.f32 %v3857, %v3921
          %v3986 = vadd.f32 %v3858, %v3922
          %v3987 = vadd.f32 %v3859, %v3923
          %v3988 = vadd.f32 %v3860, %v3924
          %v3989 = vadd.f32 %v3861, %v3925
          %v3990 = vadd.f32 %v3862, %v3926
          %v3991 = vadd.f32 %v3863, %v3927
          %v3992 = vadd.f32 %v3864, %v3928
          %v3993 = vadd.f32 %v3865, %v3929
          %v3994 = vadd.f32 %v3866, %v3930
          %v3995 = vadd.f32 %v3867, %v3931
          %v3996 = vadd.f32 %v3868, %v3932
          %v3997 = vadd.f32 %v3869, %v3933
          %v3998 = vadd.f32 %v3870, %v3934
          %v3999 = vadd.f32 %v3871, %v3935
          %v4000 = vadd.f32 %v3872, %v3936
          %v4001 = vadd.f32 %v3873, %v3937
          %v4002 = vadd.f32 %v3874, %v3938
          %v4003 = vadd.f32 %v3875, %v3939
          %v4004 = vadd.f32 %v3876, %v3940
          %v4005 = vadd.f32 %v3877, %v3941
          %v4006 = vadd.f32 %v3878, %v3942
          %v4007 = vadd.f32 %v3879, %v3943
          %v4008 = vadd.f32 %v3880, %v3944
          %v4009 = vadd.f32 %v3881, %v3945
          %v4010 = vadd.f32 %v3882, %v3946
          %v4011 = vadd.f32 %v3883, %v3947
          %v4012 = vadd.f32 %v3884, %v3948
          %v4013 = vadd.f32 %v3885, %v3949
          %v4014 = vadd.f32 %v3886, %v3950
          %v4015 = vadd.f32 %v3887, %v3951
          %v4016 = vadd.f32 %v3888, %v3952
          %v4017 = vadd.f32 %v3889, %v3953
          %v4018 = vadd.f32 %v3890, %v3954
          %v4019 = vadd.f32 %v3891, %v3955
          %v4020 = vadd.f32 %v3892, %v3956
          %v4021 = vadd.f32 %v3893, %v3957
          %v4022 = vadd.f32 %v3894, %v3958
          %v4023 = vadd.f32 %v3895, %v3959
          %v4024 = vadd.f32 %v3896, %v3960
          %v4025 = vadd.f32 %v3897, %v3961
          %v4026 = vpack.c.bf16 %v3963, %v3962
          %v4027 = vpack.c.bf16 %v3965, %v3964
          %v4028 = vpack.c.bf16 %v3967, %v3966
          %v4029 = vpack.c.bf16 %v3969, %v3968
          %v4030 = vpack.c.bf16 %v3971, %v3970
          %v4031 = vpack.c.bf16 %v3973, %v3972
          %v4032 = vpack.c.bf16 %v3975, %v3974
          %v4033 = vpack.c.bf16 %v3977, %v3976
          %v4034 = vpack.c.bf16 %v3979, %v3978
          %v4035 = vpack.c.bf16 %v3981, %v3980
          %v4036 = vpack.c.bf16 %v3983, %v3982
          %v4037 = vpack.c.bf16 %v3985, %v3984
          %v4038 = vpack.c.bf16 %v3987, %v3986
          %v4039 = vpack.c.bf16 %v3989, %v3988
          %v4040 = vpack.c.bf16 %v3991, %v3990
          %v4041 = vpack.c.bf16 %v3993, %v3992
          %v4042 = vpack.c.bf16 %v3995, %v3994
          %v4043 = vpack.c.bf16 %v3997, %v3996
          %v4044 = vpack.c.bf16 %v3999, %v3998
          %v4045 = vpack.c.bf16 %v4001, %v4000
          %v4046 = vpack.c.bf16 %v4003, %v4002
          %v4047 = vpack.c.bf16 %v4005, %v4004
          %v4048 = vpack.c.bf16 %v4007, %v4006
          %v4049 = vpack.c.bf16 %v4009, %v4008
          %v4050 = vpack.c.bf16 %v4011, %v4010
          %v4051 = vpack.c.bf16 %v4013, %v4012
          %v4052 = vpack.c.bf16 %v4015, %v4014
          %v4053 = vpack.c.bf16 %v4017, %v4016
          %v4054 = vpack.c.bf16 %v4019, %v4018
          %v4055 = vpack.c.bf16 %v4021, %v4020
          %v4056 = vpack.c.bf16 %v4023, %v4022
          %v4057 = vpack.c.bf16 %v4025, %v4024
          %v4090 = vunpack.c.l.b16 %v4026
          %v4091 = vunpack.c.h.b16 %v4026
          %v4092 = vunpack.c.l.b16 %v4027
          %v4093 = vunpack.c.h.b16 %v4027
          %v4094 = vunpack.c.l.b16 %v4028
          %v4095 = vunpack.c.h.b16 %v4028
          %v4096 = vunpack.c.l.b16 %v4029
          %v4097 = vunpack.c.h.b16 %v4029
          %v4098 = vunpack.c.l.b16 %v4030
          %v4099 = vunpack.c.h.b16 %v4030
          %v4100 = vunpack.c.l.b16 %v4031
          %v4101 = vunpack.c.h.b16 %v4031
          %v4102 = vunpack.c.l.b16 %v4032
          %v4103 = vunpack.c.h.b16 %v4032
          %v4104 = vunpack.c.l.b16 %v4033
          %v4105 = vunpack.c.h.b16 %v4033
          %v4106 = vunpack.c.l.b16 %v4034
          %v4107 = vunpack.c.h.b16 %v4034
          %v4108 = vunpack.c.l.b16 %v4035
          %v4109 = vunpack.c.h.b16 %v4035
          %v4110 = vunpack.c.l.b16 %v4036
          %v4111 = vunpack.c.h.b16 %v4036
          %v4112 = vunpack.c.l.b16 %v4037
          %v4113 = vunpack.c.h.b16 %v4037
          %v4114 = vunpack.c.l.b16 %v4038
          %v4115 = vunpack.c.h.b16 %v4038
          %v4116 = vunpack.c.l.b16 %v4039
          %v4117 = vunpack.c.h.b16 %v4039
          %v4118 = vunpack.c.l.b16 %v4040
          %v4119 = vunpack.c.h.b16 %v4040
          %v4120 = vunpack.c.l.b16 %v4041
          %v4121 = vunpack.c.h.b16 %v4041
          %v4122 = vunpack.c.l.b16 %v4042
          %v4123 = vunpack.c.h.b16 %v4042
          %v4124 = vunpack.c.l.b16 %v4043
          %v4125 = vunpack.c.h.b16 %v4043
          %v4126 = vunpack.c.l.b16 %v4044
          %v4127 = vunpack.c.h.b16 %v4044
          %v4128 = vunpack.c.l.b16 %v4045
          %v4129 = vunpack.c.h.b16 %v4045
          %v4130 = vunpack.c.l.b16 %v4046
          %v4131 = vunpack.c.h.b16 %v4046
          %v4132 = vunpack.c.l.b16 %v4047
          %v4133 = vunpack.c.h.b16 %v4047
          %v4134 = vunpack.c.l.b16 %v4048
          %v4135 = vunpack.c.h.b16 %v4048
          %v4136 = vunpack.c.l.b16 %v4049
          %v4137 = vunpack.c.h.b16 %v4049
          %v4138 = vunpack.c.l.b16 %v4050
          %v4139 = vunpack.c.h.b16 %v4050
          %v4140 = vunpack.c.l.b16 %v4051
          %v4141 = vunpack.c.h.b16 %v4051
          %v4142 = vunpack.c.l.b16 %v4052
          %v4143 = vunpack.c.h.b16 %v4052
          %v4144 = vunpack.c.l.b16 %v4053
          %v4145 = vunpack.c.h.b16 %v4053
          %v4146 = vunpack.c.l.b16 %v4054
          %v4147 = vunpack.c.h.b16 %v4054
          %v4148 = vunpack.c.l.b16 %v4055
          %v4149 = vunpack.c.h.b16 %v4055
          %v4150 = vunpack.c.l.b16 %v4056
          %v4151 = vunpack.c.h.b16 %v4056
          %v4152 = vunpack.c.l.b16 %v4057
          %v4153 = vunpack.c.h.b16 %v4057
          %v4154 = vpack.c.b16 %v4090, %v4090
          %v4155 = vpack.c.b16 %v4091, %v4091
          %v4156 = vpack.c.b16 %v4092, %v4092
          %v4157 = vpack.c.b16 %v4093, %v4093
          %v4158 = vpack.c.b16 %v4094, %v4094
          %v4159 = vpack.c.b16 %v4095, %v4095
          %v4160 = vpack.c.b16 %v4096, %v4096
          %v4161 = vpack.c.b16 %v4097, %v4097
          %v4162 = vpack.c.b16 %v4098, %v4098
          %v4163 = vpack.c.b16 %v4099, %v4099
          %v4164 = vpack.c.b16 %v4100, %v4100
          %v4165 = vpack.c.b16 %v4101, %v4101
          %v4166 = vpack.c.b16 %v4102, %v4102
          %v4167 = vpack.c.b16 %v4103, %v4103
          %v4168 = vpack.c.b16 %v4104, %v4104
          %v4169 = vpack.c.b16 %v4105, %v4105
          %v4170 = vpack.c.b16 %v4106, %v4106
          %v4171 = vpack.c.b16 %v4107, %v4107
          %v4172 = vpack.c.b16 %v4108, %v4108
          %v4173 = vpack.c.b16 %v4109, %v4109
          %v4174 = vpack.c.b16 %v4110, %v4110
          %v4175 = vpack.c.b16 %v4111, %v4111
          %v4176 = vpack.c.b16 %v4112, %v4112
          %v4177 = vpack.c.b16 %v4113, %v4113
          %v4178 = vpack.c.b16 %v4114, %v4114
          %v4179 = vpack.c.b16 %v4115, %v4115
          %v4180 = vpack.c.b16 %v4116, %v4116
          %v4181 = vpack.c.b16 %v4117, %v4117
          %v4182 = vpack.c.b16 %v4118, %v4118
          %v4183 = vpack.c.b16 %v4119, %v4119
          %v4184 = vpack.c.b16 %v4120, %v4120
          %v4185 = vpack.c.b16 %v4121, %v4121
          %v4186 = vpack.c.b16 %v4122, %v4122
          %v4187 = vpack.c.b16 %v4123, %v4123
          %v4188 = vpack.c.b16 %v4124, %v4124
          %v4189 = vpack.c.b16 %v4125, %v4125
          %v4190 = vpack.c.b16 %v4126, %v4126
          %v4191 = vpack.c.b16 %v4127, %v4127
          %v4192 = vpack.c.b16 %v4128, %v4128
          %v4193 = vpack.c.b16 %v4129, %v4129
          %v4194 = vpack.c.b16 %v4130, %v4130
          %v4195 = vpack.c.b16 %v4131, %v4131
          %v4196 = vpack.c.b16 %v4132, %v4132
          %v4197 = vpack.c.b16 %v4133, %v4133
          %v4198 = vpack.c.b16 %v4134, %v4134
          %v4199 = vpack.c.b16 %v4135, %v4135
          %v4200 = vpack.c.b16 %v4136, %v4136
          %v4201 = vpack.c.b16 %v4137, %v4137
          %v4202 = vpack.c.b16 %v4138, %v4138
          %v4203 = vpack.c.b16 %v4139, %v4139
          %v4204 = vpack.c.b16 %v4140, %v4140
          %v4205 = vpack.c.b16 %v4141, %v4141
          %v4206 = vpack.c.b16 %v4142, %v4142
          %v4207 = vpack.c.b16 %v4143, %v4143
          %v4208 = vpack.c.b16 %v4144, %v4144
          %v4209 = vpack.c.b16 %v4145, %v4145
          %v4210 = vpack.c.b16 %v4146, %v4146
          %v4211 = vpack.c.b16 %v4147, %v4147
          %v4212 = vpack.c.b16 %v4148, %v4148
          %v4213 = vpack.c.b16 %v4149, %v4149
          %v4214 = vpack.c.b16 %v4150, %v4150
          %v4215 = vpack.c.b16 %v4151, %v4151
          %v4216 = vpack.c.b16 %v4152, %v4152
          %v4217 = vpack.c.b16 %v4153, %v4153
          %4282 = vst [vmem:[%s298 + $0x4] sm:$0xf] %v4154
          %4283 = vst [vmem:[%s298 + $0x14] sm:$0xf] %v4155
          %4284 = vst [vmem:[%s298 + $0x24] sm:$0xf] %v4156
          %4285 = vst [vmem:[%s298 + $0x34] sm:$0xf] %v4157
          %4286 = vst [vmem:[%s298 + $0x44] sm:$0xf] %v4158
          %4287 = vst [vmem:[%s298 + $0x54] sm:$0xf] %v4159
          %4288 = vst [vmem:[%s298 + $0x64] sm:$0xf] %v4160
          %4289 = vst [vmem:[%s298 + $0x74] sm:$0xf] %v4161
          %4290 = vst [vmem:[%s298 + $0x84] sm:$0xf] %v4162
          %4291 = vst [vmem:[%s298 + $0x94] sm:$0xf] %v4163
          %4292 = vst [vmem:[%s298 + $0xa4] sm:$0xf] %v4164
          %4293 = vst [vmem:[%s298 + $0xb4] sm:$0xf] %v4165
          %4294 = vst [vmem:[%s298 + $0xc4] sm:$0xf] %v4166
          %4295 = vst [vmem:[%s298 + $0xd4] sm:$0xf] %v4167
          %4296 = vst [vmem:[%s298 + $0xe4] sm:$0xf] %v4168
          %4297 = vst [vmem:[%s298 + $0xf4] sm:$0xf] %v4169
          %4298 = vst [vmem:[%s298 + $0x104] sm:$0xf] %v4170
          %4299 = vst [vmem:[%s298 + $0x114] sm:$0xf] %v4171
          %4300 = vst [vmem:[%s298 + $0x124] sm:$0xf] %v4172
          %4301 = vst [vmem:[%s298 + $0x134] sm:$0xf] %v4173
          %4302 = vst [vmem:[%s298 + $0x144] sm:$0xf] %v4174
          %4303 = vst [vmem:[%s298 + $0x154] sm:$0xf] %v4175
          %4304 = vst [vmem:[%s298 + $0x164] sm:$0xf] %v4176
          %4305 = vst [vmem:[%s298 + $0x174] sm:$0xf] %v4177
          %4306 = vst [vmem:[%s298 + $0x184] sm:$0xf] %v4178
          %4307 = vst [vmem:[%s298 + $0x194] sm:$0xf] %v4179
          %4308 = vst [vmem:[%s298 + $0x1a4] sm:$0xf] %v4180
          %4309 = vst [vmem:[%s298 + $0x1b4] sm:$0xf] %v4181
          %4310 = vst [vmem:[%s298 + $0x1c4] sm:$0xf] %v4182
          %4311 = vst [vmem:[%s298 + $0x1d4] sm:$0xf] %v4183
          %4312 = vst [vmem:[%s298 + $0x1e4] sm:$0xf] %v4184
          %4313 = vst [vmem:[%s298 + $0x1f4] sm:$0xf] %v4185
          %4314 = vst [vmem:[%s298 + $0x204] sm:$0xf] %v4186
          %4315 = vst [vmem:[%s298 + $0x214] sm:$0xf] %v4187
          %4316 = vst [vmem:[%s298 + $0x224] sm:$0xf] %v4188
          %4317 = vst [vmem:[%s298 + $0x234] sm:$0xf] %v4189
          %4318 = vst [vmem:[%s298 + $0x244] sm:$0xf] %v4190
          %4319 = vst [vmem:[%s298 + $0x254] sm:$0xf] %v4191
          %4320 = vst [vmem:[%s298 + $0x264] sm:$0xf] %v4192
          %4321 = vst [vmem:[%s298 + $0x274] sm:$0xf] %v4193
          %4322 = vst [vmem:[%s298 + $0x284] sm:$0xf] %v4194
          %4323 = vst [vmem:[%s298 + $0x294] sm:$0xf] %v4195
          %4324 = vst [vmem:[%s298 + $0x2a4] sm:$0xf] %v4196
          %4325 = vst [vmem:[%s298 + $0x2b4] sm:$0xf] %v4197
          %4326 = vst [vmem:[%s298 + $0x2c4] sm:$0xf] %v4198
          %4327 = vst [vmem:[%s298 + $0x2d4] sm:$0xf] %v4199
          %4328 = vst [vmem:[%s298 + $0x2e4] sm:$0xf] %v4200
          %4329 = vst [vmem:[%s298 + $0x2f4] sm:$0xf] %v4201
          %4330 = vst [vmem:[%s298 + $0x304] sm:$0xf] %v4202
          %4331 = vst [vmem:[%s298 + $0x314] sm:$0xf] %v4203
          %4332 = vst [vmem:[%s298 + $0x324] sm:$0xf] %v4204
          %4333 = vst [vmem:[%s298 + $0x334] sm:$0xf] %v4205
          %4334 = vst [vmem:[%s298 + $0x344] sm:$0xf] %v4206
          %4335 = vst [vmem:[%s298 + $0x354] sm:$0xf] %v4207
          %4336 = vst [vmem:[%s298 + $0x364] sm:$0xf] %v4208
          %4337 = vst [vmem:[%s298 + $0x374] sm:$0xf] %v4209
          %4338 = vst [vmem:[%s298 + $0x384] sm:$0xf] %v4210
          %4339 = vst [vmem:[%s298 + $0x394] sm:$0xf] %v4211
          %4340 = vst [vmem:[%s298 + $0x3a4] sm:$0xf] %v4212
          %4341 = vst [vmem:[%s298 + $0x3b4] sm:$0xf] %v4213
          %4342 = vst [vmem:[%s298 + $0x3c4] sm:$0xf] %v4214
          %4343 = vst [vmem:[%s298 + $0x3d4] sm:$0xf] %v4215
          %4344 = vst [vmem:[%s298 + $0x3e4] sm:$0xf] %v4216
          %4345 = vst [vmem:[%s298 + $0x3f4] sm:$0xf] %v4217
          %v4346 = vld [vmem:[#allocation2 + $0x10] sm:$0xff]
          %v4347 = vld [vmem:[#allocation2 + $0x30] sm:$0xff]
          %v4348 = vld [vmem:[#allocation2 + $0x50] sm:$0xff]
          %v4349 = vld [vmem:[#allocation2 + $0x70] sm:$0xff]
          %v4350 = vld [vmem:[#allocation2 + $0x90] sm:$0xff]
          %v4351 = vld [vmem:[#allocation2 + $0xb0] sm:$0xff]
          %v4352 = vld [vmem:[#allocation2 + $0xd0] sm:$0xff]
          %v4353 = vld [vmem:[#allocation2 + $0xf0] sm:$0xff]
          %v4354 = vld [vmem:[#allocation2 + $0x110] sm:$0xff]
          %v4355 = vld [vmem:[#allocation2 + $0x130] sm:$0xff]
          %v4356 = vld [vmem:[#allocation2 + $0x150] sm:$0xff]
          %v4357 = vld [vmem:[#allocation2 + $0x170] sm:$0xff]
          %v4358 = vld [vmem:[#allocation2 + $0x190] sm:$0xff]
          %v4359 = vld [vmem:[#allocation2 + $0x1b0] sm:$0xff]
          %v4360 = vld [vmem:[#allocation2 + $0x1d0] sm:$0xff]
          %v4361 = vld [vmem:[#allocation2 + $0x1f0] sm:$0xff]
          %v4362 = vld [vmem:[#allocation2 + $0x210] sm:$0xff]
          %v4363 = vld [vmem:[#allocation2 + $0x230] sm:$0xff]
          %v4364 = vld [vmem:[#allocation2 + $0x250] sm:$0xff]
          %v4365 = vld [vmem:[#allocation2 + $0x270] sm:$0xff]
          %v4366 = vld [vmem:[#allocation2 + $0x290] sm:$0xff]
          %v4367 = vld [vmem:[#allocation2 + $0x2b0] sm:$0xff]
          %v4368 = vld [vmem:[#allocation2 + $0x2d0] sm:$0xff]
          %v4369 = vld [vmem:[#allocation2 + $0x2f0] sm:$0xff]
          %v4370 = vld [vmem:[#allocation2 + $0x310] sm:$0xff]
          %v4371 = vld [vmem:[#allocation2 + $0x330] sm:$0xff]
          %v4372 = vld [vmem:[#allocation2 + $0x350] sm:$0xff]
          %v4373 = vld [vmem:[#allocation2 + $0x370] sm:$0xff]
          %v4374 = vld [vmem:[#allocation2 + $0x390] sm:$0xff]
          %v4375 = vld [vmem:[#allocation2 + $0x3b0] sm:$0xff]
          %v4376 = vld [vmem:[#allocation2 + $0x3d0] sm:$0xff]
          %v4377 = vld [vmem:[#allocation2 + $0x3f0] sm:$0xff]
          %v4378 = vld [vmem:[#allocation2 + $0x410] sm:$0xff]
          %v4379 = vld [vmem:[#allocation2 + $0x430] sm:$0xff]
          %v4380 = vld [vmem:[#allocation2 + $0x450] sm:$0xff]
          %v4381 = vld [vmem:[#allocation2 + $0x470] sm:$0xff]
          %v4382 = vld [vmem:[#allocation2 + $0x490] sm:$0xff]
          %v4383 = vld [vmem:[#allocation2 + $0x4b0] sm:$0xff]
          %v4384 = vld [vmem:[#allocation2 + $0x4d0] sm:$0xff]
          %v4385 = vld [vmem:[#allocation2 + $0x4f0] sm:$0xff]
          %v4386 = vld [vmem:[#allocation2 + $0x510] sm:$0xff]
          %v4387 = vld [vmem:[#allocation2 + $0x530] sm:$0xff]
          %v4388 = vld [vmem:[#allocation2 + $0x550] sm:$0xff]
          %v4389 = vld [vmem:[#allocation2 + $0x570] sm:$0xff]
          %v4390 = vld [vmem:[#allocation2 + $0x590] sm:$0xff]
          %v4391 = vld [vmem:[#allocation2 + $0x5b0] sm:$0xff]
          %v4392 = vld [vmem:[#allocation2 + $0x5d0] sm:$0xff]
          %v4393 = vld [vmem:[#allocation2 + $0x5f0] sm:$0xff]
          %v4394 = vld [vmem:[#allocation2 + $0x610] sm:$0xff]
          %v4395 = vld [vmem:[#allocation2 + $0x630] sm:$0xff]
          %v4396 = vld [vmem:[#allocation2 + $0x650] sm:$0xff]
          %v4397 = vld [vmem:[#allocation2 + $0x670] sm:$0xff]
          %v4398 = vld [vmem:[#allocation2 + $0x690] sm:$0xff]
          %v4399 = vld [vmem:[#allocation2 + $0x6b0] sm:$0xff]
          %v4400 = vld [vmem:[#allocation2 + $0x6d0] sm:$0xff]
          %v4401 = vld [vmem:[#allocation2 + $0x6f0] sm:$0xff]
          %v4402 = vld [vmem:[#allocation2 + $0x710] sm:$0xff]
          %v4403 = vld [vmem:[#allocation2 + $0x730] sm:$0xff]
          %v4404 = vld [vmem:[#allocation2 + $0x750] sm:$0xff]
          %v4405 = vld [vmem:[#allocation2 + $0x770] sm:$0xff]
          %v4406 = vld [vmem:[#allocation2 + $0x790] sm:$0xff]
          %v4407 = vld [vmem:[#allocation2 + $0x7b0] sm:$0xff]
          %v4408 = vld [vmem:[#allocation2 + $0x7d0] sm:$0xff]
          %v4409 = vld [vmem:[#allocation2 + $0x7f0] sm:$0xff]
          %4410 = vrot.lane.b32.xlu0 %v4346, 64
          %v4411 = vpop.permute.xlu0 %4410
          %4412 = vrot.lane.b32.xlu0 %v4347, 64
          %v4413 = vpop.permute.xlu0 %4412
          %4414 = vrot.lane.b32.xlu0 %v4348, 64
          %v4415 = vpop.permute.xlu0 %4414
          %4416 = vrot.lane.b32.xlu0 %v4349, 64
          %v4417 = vpop.permute.xlu0 %4416
          %4418 = vrot.lane.b32.xlu0 %v4350, 64
          %v4419 = vpop.permute.xlu0 %4418
          %4420 = vrot.lane.b32.xlu0 %v4351, 64
          %v4421 = vpop.permute.xlu0 %4420
          %4422 = vrot.lane.b32.xlu0 %v4352, 64
          %v4423 = vpop.permute.xlu0 %4422
          %4424 = vrot.lane.b32.xlu0 %v4353, 64
          %v4425 = vpop.permute.xlu0 %4424
          %4426 = vrot.lane.b32.xlu0 %v4354, 64
          %v4427 = vpop.permute.xlu0 %4426
          %4428 = vrot.lane.b32.xlu0 %v4355, 64
          %v4429 = vpop.permute.xlu0 %4428
          %4430 = vrot.lane.b32.xlu0 %v4356, 64
          %v4431 = vpop.permute.xlu0 %4430
          %4432 = vrot.lane.b32.xlu0 %v4357, 64
          %v4433 = vpop.permute.xlu0 %4432
          %4434 = vrot.lane.b32.xlu0 %v4358, 64
          %v4435 = vpop.permute.xlu0 %4434
          %4436 = vrot.lane.b32.xlu0 %v4359, 64
          %v4437 = vpop.permute.xlu0 %4436
          %4438 = vrot.lane.b32.xlu0 %v4360, 64
          %v4439 = vpop.permute.xlu0 %4438
          %4440 = vrot.lane.b32.xlu0 %v4361, 64
          %v4441 = vpop.permute.xlu0 %4440
          %4442 = vrot.lane.b32.xlu0 %v4362, 64
          %v4443 = vpop.permute.xlu0 %4442
          %4444 = vrot.lane.b32.xlu0 %v4363, 64
          %v4445 = vpop.permute.xlu0 %4444
          %4446 = vrot.lane.b32.xlu0 %v4364, 64
          %v4447 = vpop.permute.xlu0 %4446
          %4448 = vrot.lane.b32.xlu0 %v4365, 64
          %v4449 = vpop.permute.xlu0 %4448
          %4450 = vrot.lane.b32.xlu0 %v4366, 64
          %v4451 = vpop.permute.xlu0 %4450
          %4452 = vrot.lane.b32.xlu0 %v4367, 64
          %v4453 = vpop.permute.xlu0 %4452
          %4454 = vrot.lane.b32.xlu0 %v4368, 64
          %v4455 = vpop.permute.xlu0 %4454
          %4456 = vrot.lane.b32.xlu0 %v4369, 64
          %v4457 = vpop.permute.xlu0 %4456
          %4458 = vrot.lane.b32.xlu0 %v4370, 64
          %v4459 = vpop.permute.xlu0 %4458
          %4460 = vrot.lane.b32.xlu0 %v4371, 64
          %v4461 = vpop.permute.xlu0 %4460
          %4462 = vrot.lane.b32.xlu0 %v4372, 64
          %v4463 = vpop.permute.xlu0 %4462
          %4464 = vrot.lane.b32.xlu0 %v4373, 64
          %v4465 = vpop.permute.xlu0 %4464
          %4466 = vrot.lane.b32.xlu0 %v4374, 64
          %v4467 = vpop.permute.xlu0 %4466
          %4468 = vrot.lane.b32.xlu0 %v4375, 64
          %v4469 = vpop.permute.xlu0 %4468
          %4470 = vrot.lane.b32.xlu0 %v4376, 64
          %v4471 = vpop.permute.xlu0 %4470
          %4472 = vrot.lane.b32.xlu0 %v4377, 64
          %v4473 = vpop.permute.xlu0 %4472
          %4474 = vrot.lane.b32.xlu0 %v4378, 64
          %v4475 = vpop.permute.xlu0 %4474
          %4476 = vrot.lane.b32.xlu0 %v4379, 64
          %v4477 = vpop.permute.xlu0 %4476
          %4478 = vrot.lane.b32.xlu0 %v4380, 64
          %v4479 = vpop.permute.xlu0 %4478
          %4480 = vrot.lane.b32.xlu0 %v4381, 64
          %v4481 = vpop.permute.xlu0 %4480
          %4482 = vrot.lane.b32.xlu0 %v4382, 64
          %v4483 = vpop.permute.xlu0 %4482
          %4484 = vrot.lane.b32.xlu0 %v4383, 64
          %v4485 = vpop.permute.xlu0 %4484
          %4486 = vrot.lane.b32.xlu0 %v4384, 64
          %v4487 = vpop.permute.xlu0 %4486
          %4488 = vrot.lane.b32.xlu0 %v4385, 64
          %v4489 = vpop.permute.xlu0 %4488
          %4490 = vrot.lane.b32.xlu0 %v4386, 64
          %v4491 = vpop.permute.xlu0 %4490
          %4492 = vrot.lane.b32.xlu0 %v4387, 64
          %v4493 = vpop.permute.xlu0 %4492
          %4494 = vrot.lane.b32.xlu0 %v4388, 64
          %v4495 = vpop.permute.xlu0 %4494
          %4496 = vrot.lane.b32.xlu0 %v4389, 64
          %v4497 = vpop.permute.xlu0 %4496
          %4498 = vrot.lane.b32.xlu0 %v4390, 64
          %v4499 = vpop.permute.xlu0 %4498
          %4500 = vrot.lane.b32.xlu0 %v4391, 64
          %v4501 = vpop.permute.xlu0 %4500
          %4502 = vrot.lane.b32.xlu0 %v4392, 64
          %v4503 = vpop.permute.xlu0 %4502
          %4504 = vrot.lane.b32.xlu0 %v4393, 64
          %v4505 = vpop.permute.xlu0 %4504
          %4506 = vrot.lane.b32.xlu0 %v4394, 64
          %v4507 = vpop.permute.xlu0 %4506
          %4508 = vrot.lane.b32.xlu0 %v4395, 64
          %v4509 = vpop.permute.xlu0 %4508
          %4510 = vrot.lane.b32.xlu0 %v4396, 64
          %v4511 = vpop.permute.xlu0 %4510
          %4512 = vrot.lane.b32.xlu0 %v4397, 64
          %v4513 = vpop.permute.xlu0 %4512
          %4514 = vrot.lane.b32.xlu0 %v4398, 64
          %v4515 = vpop.permute.xlu0 %4514
          %4516 = vrot.lane.b32.xlu0 %v4399, 64
          %v4517 = vpop.permute.xlu0 %4516
          %4518 = vrot.lane.b32.xlu0 %v4400, 64
          %v4519 = vpop.permute.xlu0 %4518
          %4520 = vrot.lane.b32.xlu0 %v4401, 64
          %v4521 = vpop.permute.xlu0 %4520
          %4522 = vrot.lane.b32.xlu0 %v4402, 64
          %v4523 = vpop.permute.xlu0 %4522
          %4524 = vrot.lane.b32.xlu0 %v4403, 64
          %v4525 = vpop.permute.xlu0 %4524
          %4526 = vrot.lane.b32.xlu0 %v4404, 64
          %v4527 = vpop.permute.xlu0 %4526
          %4528 = vrot.lane.b32.xlu0 %v4405, 64
          %v4529 = vpop.permute.xlu0 %4528
          %4530 = vrot.lane.b32.xlu0 %v4406, 64
          %v4531 = vpop.permute.xlu0 %4530
          %4532 = vrot.lane.b32.xlu0 %v4407, 64
          %v4533 = vpop.permute.xlu0 %4532
          %4534 = vrot.lane.b32.xlu0 %v4408, 64
          %v4535 = vpop.permute.xlu0 %4534
          %4536 = vrot.lane.b32.xlu0 %v4409, 64
          %v4537 = vpop.permute.xlu0 %4536
          %v4538 = vmul.f32 %v4346, %v2810
          %v4539 = vmul.f32 %v4347, %v2811
          %v4540 = vmul.f32 %v4348, %v2812
          %v4541 = vmul.f32 %v4349, %v2813
          %v4542 = vmul.f32 %v4350, %v2814
          %v4543 = vmul.f32 %v4351, %v2815
          %v4544 = vmul.f32 %v4352, %v2816
          %v4545 = vmul.f32 %v4353, %v2817
          %v4546 = vmul.f32 %v4354, %v2818
          %v4547 = vmul.f32 %v4355, %v2819
          %v4548 = vmul.f32 %v4356, %v2820
          %v4549 = vmul.f32 %v4357, %v2821
          %v4550 = vmul.f32 %v4358, %v2822
          %v4551 = vmul.f32 %v4359, %v2823
          %v4552 = vmul.f32 %v4360, %v2824
          %v4553 = vmul.f32 %v4361, %v2825
          %v4554 = vmul.f32 %v4362, %v2826
          %v4555 = vmul.f32 %v4363, %v2827
          %v4556 = vmul.f32 %v4364, %v2828
          %v4557 = vmul.f32 %v4365, %v2829
          %v4558 = vmul.f32 %v4366, %v2830
          %v4559 = vmul.f32 %v4367, %v2831
          %v4560 = vmul.f32 %v4368, %v2832
          %v4561 = vmul.f32 %v4369, %v2833
          %v4562 = vmul.f32 %v4370, %v2834
          %v4563 = vmul.f32 %v4371, %v2835
          %v4564 = vmul.f32 %v4372, %v2836
          %v4565 = vmul.f32 %v4373, %v2837
          %v4566 = vmul.f32 %v4374, %v2838
          %v4567 = vmul.f32 %v4375, %v2839
          %v4568 = vmul.f32 %v4376, %v2840
          %v4569 = vmul.f32 %v4377, %v2841
          %v4570 = vmul.f32 %v4378, %v2842
          %v4571 = vmul.f32 %v4379, %v2843
          %v4572 = vmul.f32 %v4380, %v2844
          %v4573 = vmul.f32 %v4381, %v2845
          %v4574 = vmul.f32 %v4382, %v2846
          %v4575 = vmul.f32 %v4383, %v2847
          %v4576 = vmul.f32 %v4384, %v2848
          %v4577 = vmul.f32 %v4385, %v2849
          %v4578 = vmul.f32 %v4386, %v2850
          %v4579 = vmul.f32 %v4387, %v2851
          %v4580 = vmul.f32 %v4388, %v2852
          %v4581 = vmul.f32 %v4389, %v2853
          %v4582 = vmul.f32 %v4390, %v2854
          %v4583 = vmul.f32 %v4391, %v2855
          %v4584 = vmul.f32 %v4392, %v2856
          %v4585 = vmul.f32 %v4393, %v2857
          %v4586 = vmul.f32 %v4394, %v2858
          %v4587 = vmul.f32 %v4395, %v2859
          %v4588 = vmul.f32 %v4396, %v2860
          %v4589 = vmul.f32 %v4397, %v2861
          %v4590 = vmul.f32 %v4398, %v2862
          %v4591 = vmul.f32 %v4399, %v2863
          %v4592 = vmul.f32 %v4400, %v2864
          %v4593 = vmul.f32 %v4401, %v2865
          %v4594 = vmul.f32 %v4402, %v2866
          %v4595 = vmul.f32 %v4403, %v2867
          %v4596 = vmul.f32 %v4404, %v2868
          %v4597 = vmul.f32 %v4405, %v2869
          %v4598 = vmul.f32 %v4406, %v2870
          %v4599 = vmul.f32 %v4407, %v2871
          %v4600 = vmul.f32 %v4408, %v2872
          %v4601 = vmul.f32 %v4409, %v2873
          %v4602 = vmul.f32 %v4411, %v2874
          %v4603 = vmul.f32 %v4413, %v2875
          %v4604 = vmul.f32 %v4415, %v2876
          %v4605 = vmul.f32 %v4417, %v2877
          %v4606 = vmul.f32 %v4419, %v2878
          %v4607 = vmul.f32 %v4421, %v2879
          %v4608 = vmul.f32 %v4423, %v2880
          %v4609 = vmul.f32 %v4425, %v2881
          %v4610 = vmul.f32 %v4427, %v2882
          %v4611 = vmul.f32 %v4429, %v2883
          %v4612 = vmul.f32 %v4431, %v2884
          %v4613 = vmul.f32 %v4433, %v2885
          %v4614 = vmul.f32 %v4435, %v2886
          %v4615 = vmul.f32 %v4437, %v2887
          %v4616 = vmul.f32 %v4439, %v2888
          %v4617 = vmul.f32 %v4441, %v2889
          %v4618 = vmul.f32 %v4443, %v2890
          %v4619 = vmul.f32 %v4445, %v2891
          %v4620 = vmul.f32 %v4447, %v2892
          %v4621 = vmul.f32 %v4449, %v2893
          %v4622 = vmul.f32 %v4451, %v2894
          %v4623 = vmul.f32 %v4453, %v2895
          %v4624 = vmul.f32 %v4455, %v2896
          %v4625 = vmul.f32 %v4457, %v2897
          %v4626 = vmul.f32 %v4459, %v2898
          %v4627 = vmul.f32 %v4461, %v2899
          %v4628 = vmul.f32 %v4463, %v2900
          %v4629 = vmul.f32 %v4465, %v2901
          %v4630 = vmul.f32 %v4467, %v2902
          %v4631 = vmul.f32 %v4469, %v2903
          %v4632 = vmul.f32 %v4471, %v2904
          %v4633 = vmul.f32 %v4473, %v2905
          %v4634 = vmul.f32 %v4475, %v2906
          %v4635 = vmul.f32 %v4477, %v2907
          %v4636 = vmul.f32 %v4479, %v2908
          %v4637 = vmul.f32 %v4481, %v2909
          %v4638 = vmul.f32 %v4483, %v2910
          %v4639 = vmul.f32 %v4485, %v2911
          %v4640 = vmul.f32 %v4487, %v2912
          %v4641 = vmul.f32 %v4489, %v2913
          %v4642 = vmul.f32 %v4491, %v2914
          %v4643 = vmul.f32 %v4493, %v2915
          %v4644 = vmul.f32 %v4495, %v2916
          %v4645 = vmul.f32 %v4497, %v2917
          %v4646 = vmul.f32 %v4499, %v2918
          %v4647 = vmul.f32 %v4501, %v2919
          %v4648 = vmul.f32 %v4503, %v2920
          %v4649 = vmul.f32 %v4505, %v2921
          %v4650 = vmul.f32 %v4507, %v2922
          %v4651 = vmul.f32 %v4509, %v2923
          %v4652 = vmul.f32 %v4511, %v2924
          %v4653 = vmul.f32 %v4513, %v2925
          %v4654 = vmul.f32 %v4515, %v2926
          %v4655 = vmul.f32 %v4517, %v2927
          %v4656 = vmul.f32 %v4519, %v2928
          %v4657 = vmul.f32 %v4521, %v2929
          %v4658 = vmul.f32 %v4523, %v2930
          %v4659 = vmul.f32 %v4525, %v2931
          %v4660 = vmul.f32 %v4527, %v2932
          %v4661 = vmul.f32 %v4529, %v2933
          %v4662 = vmul.f32 %v4531, %v2934
          %v4663 = vmul.f32 %v4533, %v2935
          %v4664 = vmul.f32 %v4535, %v2936
          %v4665 = vmul.f32 %v4537, %v2937
          %v4666 = vadd.f32 %v4538, %v4602
          %v4667 = vadd.f32 %v4539, %v4603
          %v4668 = vadd.f32 %v4540, %v4604
          %v4669 = vadd.f32 %v4541, %v4605
          %v4670 = vadd.f32 %v4542, %v4606
          %v4671 = vadd.f32 %v4543, %v4607
          %v4672 = vadd.f32 %v4544, %v4608
          %v4673 = vadd.f32 %v4545, %v4609
          %v4674 = vadd.f32 %v4546, %v4610
          %v4675 = vadd.f32 %v4547, %v4611
          %v4676 = vadd.f32 %v4548, %v4612
          %v4677 = vadd.f32 %v4549, %v4613
          %v4678 = vadd.f32 %v4550, %v4614
          %v4679 = vadd.f32 %v4551, %v4615
          %v4680 = vadd.f32 %v4552, %v4616
          %v4681 = vadd.f32 %v4553, %v4617
          %v4682 = vadd.f32 %v4554, %v4618
          %v4683 = vadd.f32 %v4555, %v4619
          %v4684 = vadd.f32 %v4556, %v4620
          %v4685 = vadd.f32 %v4557, %v4621
          %v4686 = vadd.f32 %v4558, %v4622
          %v4687 = vadd.f32 %v4559, %v4623
          %v4688 = vadd.f32 %v4560, %v4624
          %v4689 = vadd.f32 %v4561, %v4625
          %v4690 = vadd.f32 %v4562, %v4626
          %v4691 = vadd.f32 %v4563, %v4627
          %v4692 = vadd.f32 %v4564, %v4628
          %v4693 = vadd.f32 %v4565, %v4629
          %v4694 = vadd.f32 %v4566, %v4630
          %v4695 = vadd.f32 %v4567, %v4631
          %v4696 = vadd.f32 %v4568, %v4632
          %v4697 = vadd.f32 %v4569, %v4633
          %v4698 = vadd.f32 %v4570, %v4634
          %v4699 = vadd.f32 %v4571, %v4635
          %v4700 = vadd.f32 %v4572, %v4636
          %v4701 = vadd.f32 %v4573, %v4637
          %v4702 = vadd.f32 %v4574, %v4638
          %v4703 = vadd.f32 %v4575, %v4639
          %v4704 = vadd.f32 %v4576, %v4640
          %v4705 = vadd.f32 %v4577, %v4641
          %v4706 = vadd.f32 %v4578, %v4642
          %v4707 = vadd.f32 %v4579, %v4643
          %v4708 = vadd.f32 %v4580, %v4644
          %v4709 = vadd.f32 %v4581, %v4645
          %v4710 = vadd.f32 %v4582, %v4646
          %v4711 = vadd.f32 %v4583, %v4647
          %v4712 = vadd.f32 %v4584, %v4648
          %v4713 = vadd.f32 %v4585, %v4649
          %v4714 = vadd.f32 %v4586, %v4650
          %v4715 = vadd.f32 %v4587, %v4651
          %v4716 = vadd.f32 %v4588, %v4652
          %v4717 = vadd.f32 %v4589, %v4653
          %v4718 = vadd.f32 %v4590, %v4654
          %v4719 = vadd.f32 %v4591, %v4655
          %v4720 = vadd.f32 %v4592, %v4656
          %v4721 = vadd.f32 %v4593, %v4657
          %v4722 = vadd.f32 %v4594, %v4658
          %v4723 = vadd.f32 %v4595, %v4659
          %v4724 = vadd.f32 %v4596, %v4660
          %v4725 = vadd.f32 %v4597, %v4661
          %v4726 = vadd.f32 %v4598, %v4662
          %v4727 = vadd.f32 %v4599, %v4663
          %v4728 = vadd.f32 %v4600, %v4664
          %v4729 = vadd.f32 %v4601, %v4665
          %v4730 = vpack.c.bf16 %v4667, %v4666
          %v4731 = vpack.c.bf16 %v4669, %v4668
          %v4732 = vpack.c.bf16 %v4671, %v4670
          %v4733 = vpack.c.bf16 %v4673, %v4672
          %v4734 = vpack.c.bf16 %v4675, %v4674
          %v4735 = vpack.c.bf16 %v4677, %v4676
          %v4736 = vpack.c.bf16 %v4679, %v4678
          %v4737 = vpack.c.bf16 %v4681, %v4680
          %v4738 = vpack.c.bf16 %v4683, %v4682
          %v4739 = vpack.c.bf16 %v4685, %v4684
          %v4740 = vpack.c.bf16 %v4687, %v4686
          %v4741 = vpack.c.bf16 %v4689, %v4688
          %v4742 = vpack.c.bf16 %v4691, %v4690
          %v4743 = vpack.c.bf16 %v4693, %v4692
          %v4744 = vpack.c.bf16 %v4695, %v4694
          %v4745 = vpack.c.bf16 %v4697, %v4696
          %v4746 = vpack.c.bf16 %v4699, %v4698
          %v4747 = vpack.c.bf16 %v4701, %v4700
          %v4748 = vpack.c.bf16 %v4703, %v4702
          %v4749 = vpack.c.bf16 %v4705, %v4704
          %v4750 = vpack.c.bf16 %v4707, %v4706
          %v4751 = vpack.c.bf16 %v4709, %v4708
          %v4752 = vpack.c.bf16 %v4711, %v4710
          %v4753 = vpack.c.bf16 %v4713, %v4712
          %v4754 = vpack.c.bf16 %v4715, %v4714
          %v4755 = vpack.c.bf16 %v4717, %v4716
          %v4756 = vpack.c.bf16 %v4719, %v4718
          %v4757 = vpack.c.bf16 %v4721, %v4720
          %v4758 = vpack.c.bf16 %v4723, %v4722
          %v4759 = vpack.c.bf16 %v4725, %v4724
          %v4760 = vpack.c.bf16 %v4727, %v4726
          %v4761 = vpack.c.bf16 %v4729, %v4728
          %v4794 = vunpack.c.l.b16 %v4730
          %v4795 = vunpack.c.h.b16 %v4730
          %v4796 = vunpack.c.l.b16 %v4731
          %v4797 = vunpack.c.h.b16 %v4731
          %v4798 = vunpack.c.l.b16 %v4732
          %v4799 = vunpack.c.h.b16 %v4732
          %v4800 = vunpack.c.l.b16 %v4733
          %v4801 = vunpack.c.h.b16 %v4733
          %v4802 = vunpack.c.l.b16 %v4734
          %v4803 = vunpack.c.h.b16 %v4734
          %v4804 = vunpack.c.l.b16 %v4735
          %v4805 = vunpack.c.h.b16 %v4735
          %v4806 = vunpack.c.l.b16 %v4736
          %v4807 = vunpack.c.h.b16 %v4736
          %v4808 = vunpack.c.l.b16 %v4737
          %v4809 = vunpack.c.h.b16 %v4737
          %v4810 = vunpack.c.l.b16 %v4738
          %v4811 = vunpack.c.h.b16 %v4738
          %v4812 = vunpack.c.l.b16 %v4739
          %v4813 = vunpack.c.h.b16 %v4739
          %v4814 = vunpack.c.l.b16 %v4740
          %v4815 = vunpack.c.h.b16 %v4740
          %v4816 = vunpack.c.l.b16 %v4741
          %v4817 = vunpack.c.h.b16 %v4741
          %v4818 = vunpack.c.l.b16 %v4742
          %v4819 = vunpack.c.h.b16 %v4742
          %v4820 = vunpack.c.l.b16 %v4743
          %v4821 = vunpack.c.h.b16 %v4743
          %v4822 = vunpack.c.l.b16 %v4744
          %v4823 = vunpack.c.h.b16 %v4744
          %v4824 = vunpack.c.l.b16 %v4745
          %v4825 = vunpack.c.h.b16 %v4745
          %v4826 = vunpack.c.l.b16 %v4746
          %v4827 = vunpack.c.h.b16 %v4746
          %v4828 = vunpack.c.l.b16 %v4747
          %v4829 = vunpack.c.h.b16 %v4747
          %v4830 = vunpack.c.l.b16 %v4748
          %v4831 = vunpack.c.h.b16 %v4748
          %v4832 = vunpack.c.l.b16 %v4749
          %v4833 = vunpack.c.h.b16 %v4749
          %v4834 = vunpack.c.l.b16 %v4750
          %v4835 = vunpack.c.h.b16 %v4750
          %v4836 = vunpack.c.l.b16 %v4751
          %v4837 = vunpack.c.h.b16 %v4751
          %v4838 = vunpack.c.l.b16 %v4752
          %v4839 = vunpack.c.h.b16 %v4752
          %v4840 = vunpack.c.l.b16 %v4753
          %v4841 = vunpack.c.h.b16 %v4753
          %v4842 = vunpack.c.l.b16 %v4754
          %v4843 = vunpack.c.h.b16 %v4754
          %v4844 = vunpack.c.l.b16 %v4755
          %v4845 = vunpack.c.h.b16 %v4755
          %v4846 = vunpack.c.l.b16 %v4756
          %v4847 = vunpack.c.h.b16 %v4756
          %v4848 = vunpack.c.l.b16 %v4757
          %v4849 = vunpack.c.h.b16 %v4757
          %v4850 = vunpack.c.l.b16 %v4758
          %v4851 = vunpack.c.h.b16 %v4758
          %v4852 = vunpack.c.l.b16 %v4759
          %v4853 = vunpack.c.h.b16 %v4759
          %v4854 = vunpack.c.l.b16 %v4760
          %v4855 = vunpack.c.h.b16 %v4760
          %v4856 = vunpack.c.l.b16 %v4761
          %v4857 = vunpack.c.h.b16 %v4761
          %v4858 = vpack.c.b16 %v4794, %v4794
          %v4859 = vpack.c.b16 %v4795, %v4795
          %v4860 = vpack.c.b16 %v4796, %v4796
          %v4861 = vpack.c.b16 %v4797, %v4797
          %v4862 = vpack.c.b16 %v4798, %v4798
          %v4863 = vpack.c.b16 %v4799, %v4799
          %v4864 = vpack.c.b16 %v4800, %v4800
          %v4865 = vpack.c.b16 %v4801, %v4801
          %v4866 = vpack.c.b16 %v4802, %v4802
          %v4867 = vpack.c.b16 %v4803, %v4803
          %v4868 = vpack.c.b16 %v4804, %v4804
          %v4869 = vpack.c.b16 %v4805, %v4805
          %v4870 = vpack.c.b16 %v4806, %v4806
          %v4871 = vpack.c.b16 %v4807, %v4807
          %v4872 = vpack.c.b16 %v4808, %v4808
          %v4873 = vpack.c.b16 %v4809, %v4809
          %v4874 = vpack.c.b16 %v4810, %v4810
          %v4875 = vpack.c.b16 %v4811, %v4811
          %v4876 = vpack.c.b16 %v4812, %v4812
          %v4877 = vpack.c.b16 %v4813, %v4813
          %v4878 = vpack.c.b16 %v4814, %v4814
          %v4879 = vpack.c.b16 %v4815, %v4815
          %v4880 = vpack.c.b16 %v4816, %v4816
          %v4881 = vpack.c.b16 %v4817, %v4817
          %v4882 = vpack.c.b16 %v4818, %v4818
          %v4883 = vpack.c.b16 %v4819, %v4819
          %v4884 = vpack.c.b16 %v4820, %v4820
          %v4885 = vpack.c.b16 %v4821, %v4821
          %v4886 = vpack.c.b16 %v4822, %v4822
          %v4887 = vpack.c.b16 %v4823, %v4823
          %v4888 = vpack.c.b16 %v4824, %v4824
          %v4889 = vpack.c.b16 %v4825, %v4825
          %v4890 = vpack.c.b16 %v4826, %v4826
          %v4891 = vpack.c.b16 %v4827, %v4827
          %v4892 = vpack.c.b16 %v4828, %v4828
          %v4893 = vpack.c.b16 %v4829, %v4829
          %v4894 = vpack.c.b16 %v4830, %v4830
          %v4895 = vpack.c.b16 %v4831, %v4831
          %v4896 = vpack.c.b16 %v4832, %v4832
          %v4897 = vpack.c.b16 %v4833, %v4833
          %v4898 = vpack.c.b16 %v4834, %v4834
          %v4899 = vpack.c.b16 %v4835, %v4835
          %v4900 = vpack.c.b16 %v4836, %v4836
          %v4901 = vpack.c.b16 %v4837, %v4837
          %v4902 = vpack.c.b16 %v4838, %v4838
          %v4903 = vpack.c.b16 %v4839, %v4839
          %v4904 = vpack.c.b16 %v4840, %v4840
          %v4905 = vpack.c.b16 %v4841, %v4841
          %v4906 = vpack.c.b16 %v4842, %v4842
          %v4907 = vpack.c.b16 %v4843, %v4843
          %v4908 = vpack.c.b16 %v4844, %v4844
          %v4909 = vpack.c.b16 %v4845, %v4845
          %v4910 = vpack.c.b16 %v4846, %v4846
          %v4911 = vpack.c.b16 %v4847, %v4847
          %v4912 = vpack.c.b16 %v4848, %v4848
          %v4913 = vpack.c.b16 %v4849, %v4849
          %v4914 = vpack.c.b16 %v4850, %v4850
          %v4915 = vpack.c.b16 %v4851, %v4851
          %v4916 = vpack.c.b16 %v4852, %v4852
          %v4917 = vpack.c.b16 %v4853, %v4853
          %v4918 = vpack.c.b16 %v4854, %v4854
          %v4919 = vpack.c.b16 %v4855, %v4855
          %v4920 = vpack.c.b16 %v4856, %v4856
          %v4921 = vpack.c.b16 %v4857, %v4857
          %4986 = vst [vmem:[%s298 + $0x8] sm:$0xf] %v4858
          %4987 = vst [vmem:[%s298 + $0x18] sm:$0xf] %v4859
          %4988 = vst [vmem:[%s298 + $0x28] sm:$0xf] %v4860
          %4989 = vst [vmem:[%s298 + $0x38] sm:$0xf] %v4861
          %4990 = vst [vmem:[%s298 + $0x48] sm:$0xf] %v4862
          %4991 = vst [vmem:[%s298 + $0x58] sm:$0xf] %v4863
          %4992 = vst [vmem:[%s298 + $0x68] sm:$0xf] %v4864
          %4993 = vst [vmem:[%s298 + $0x78] sm:$0xf] %v4865
          %4994 = vst [vmem:[%s298 + $0x88] sm:$0xf] %v4866
          %4995 = vst [vmem:[%s298 + $0x98] sm:$0xf] %v4867
          %4996 = vst [vmem:[%s298 + $0xa8] sm:$0xf] %v4868
          %4997 = vst [vmem:[%s298 + $0xb8] sm:$0xf] %v4869
          %4998 = vst [vmem:[%s298 + $0xc8] sm:$0xf] %v4870
          %4999 = vst [vmem:[%s298 + $0xd8] sm:$0xf] %v4871
          %5000 = vst [vmem:[%s298 + $0xe8] sm:$0xf] %v4872
          %5001 = vst [vmem:[%s298 + $0xf8] sm:$0xf] %v4873
          %5002 = vst [vmem:[%s298 + $0x108] sm:$0xf] %v4874
          %5003 = vst [vmem:[%s298 + $0x118] sm:$0xf] %v4875
          %5004 = vst [vmem:[%s298 + $0x128] sm:$0xf] %v4876
          %5005 = vst [vmem:[%s298 + $0x138] sm:$0xf] %v4877
          %5006 = vst [vmem:[%s298 + $0x148] sm:$0xf] %v4878
          %5007 = vst [vmem:[%s298 + $0x158] sm:$0xf] %v4879
          %5008 = vst [vmem:[%s298 + $0x168] sm:$0xf] %v4880
          %5009 = vst [vmem:[%s298 + $0x178] sm:$0xf] %v4881
          %5010 = vst [vmem:[%s298 + $0x188] sm:$0xf] %v4882
          %5011 = vst [vmem:[%s298 + $0x198] sm:$0xf] %v4883
          %5012 = vst [vmem:[%s298 + $0x1a8] sm:$0xf] %v4884
          %5013 = vst [vmem:[%s298 + $0x1b8] sm:$0xf] %v4885
          %5014 = vst [vmem:[%s298 + $0x1c8] sm:$0xf] %v4886
          %5015 = vst [vmem:[%s298 + $0x1d8] sm:$0xf] %v4887
          %5016 = vst [vmem:[%s298 + $0x1e8] sm:$0xf] %v4888
          %5017 = vst [vmem:[%s298 + $0x1f8] sm:$0xf] %v4889
          %5018 = vst [vmem:[%s298 + $0x208] sm:$0xf] %v4890
          %5019 = vst [vmem:[%s298 + $0x218] sm:$0xf] %v4891
          %5020 = vst [vmem:[%s298 + $0x228] sm:$0xf] %v4892
          %5021 = vst [vmem:[%s298 + $0x238] sm:$0xf] %v4893
          %5022 = vst [vmem:[%s298 + $0x248] sm:$0xf] %v4894
          %5023 = vst [vmem:[%s298 + $0x258] sm:$0xf] %v4895
          %5024 = vst [vmem:[%s298 + $0x268] sm:$0xf] %v4896
          %5025 = vst [vmem:[%s298 + $0x278] sm:$0xf] %v4897
          %5026 = vst [vmem:[%s298 + $0x288] sm:$0xf] %v4898
          %5027 = vst [vmem:[%s298 + $0x298] sm:$0xf] %v4899
          %5028 = vst [vmem:[%s298 + $0x2a8] sm:$0xf] %v4900
          %5029 = vst [vmem:[%s298 + $0x2b8] sm:$0xf] %v4901
          %5030 = vst [vmem:[%s298 + $0x2c8] sm:$0xf] %v4902
          %5031 = vst [vmem:[%s298 + $0x2d8] sm:$0xf] %v4903
          %5032 = vst [vmem:[%s298 + $0x2e8] sm:$0xf] %v4904
          %5033 = vst [vmem:[%s298 + $0x2f8] sm:$0xf] %v4905
          %5034 = vst [vmem:[%s298 + $0x308] sm:$0xf] %v4906
          %5035 = vst [vmem:[%s298 + $0x318] sm:$0xf] %v4907
          %5036 = vst [vmem:[%s298 + $0x328] sm:$0xf] %v4908
          %5037 = vst [vmem:[%s298 + $0x338] sm:$0xf] %v4909
          %5038 = vst [vmem:[%s298 + $0x348] sm:$0xf] %v4910
          %5039 = vst [vmem:[%s298 + $0x358] sm:$0xf] %v4911
          %5040 = vst [vmem:[%s298 + $0x368] sm:$0xf] %v4912
          %5041 = vst [vmem:[%s298 + $0x378] sm:$0xf] %v4913
          %5042 = vst [vmem:[%s298 + $0x388] sm:$0xf] %v4914
          %5043 = vst [vmem:[%s298 + $0x398] sm:$0xf] %v4915
          %5044 = vst [vmem:[%s298 + $0x3a8] sm:$0xf] %v4916
          %5045 = vst [vmem:[%s298 + $0x3b8] sm:$0xf] %v4917
          %5046 = vst [vmem:[%s298 + $0x3c8] sm:$0xf] %v4918
          %5047 = vst [vmem:[%s298 + $0x3d8] sm:$0xf] %v4919
          %5048 = vst [vmem:[%s298 + $0x3e8] sm:$0xf] %v4920
          %5049 = vst [vmem:[%s298 + $0x3f8] sm:$0xf] %v4921
          %v5050 = vld [vmem:[#allocation2 + $0x18] sm:$0xff]
          %v5051 = vld [vmem:[#allocation2 + $0x38] sm:$0xff]
          %v5052 = vld [vmem:[#allocation2 + $0x58] sm:$0xff]
          %v5053 = vld [vmem:[#allocation2 + $0x78] sm:$0xff]
          %v5054 = vld [vmem:[#allocation2 + $0x98] sm:$0xff]
          %v5055 = vld [vmem:[#allocation2 + $0xb8] sm:$0xff]
          %v5056 = vld [vmem:[#allocation2 + $0xd8] sm:$0xff]
          %v5057 = vld [vmem:[#allocation2 + $0xf8] sm:$0xff]
          %v5058 = vld [vmem:[#allocation2 + $0x118] sm:$0xff]
          %v5059 = vld [vmem:[#allocation2 + $0x138] sm:$0xff]
          %v5060 = vld [vmem:[#allocation2 + $0x158] sm:$0xff]
          %v5061 = vld [vmem:[#allocation2 + $0x178] sm:$0xff]
          %v5062 = vld [vmem:[#allocation2 + $0x198] sm:$0xff]
          %v5063 = vld [vmem:[#allocation2 + $0x1b8] sm:$0xff]
          %v5064 = vld [vmem:[#allocation2 + $0x1d8] sm:$0xff]
          %v5065 = vld [vmem:[#allocation2 + $0x1f8] sm:$0xff]
          %v5066 = vld [vmem:[#allocation2 + $0x218] sm:$0xff]
          %v5067 = vld [vmem:[#allocation2 + $0x238] sm:$0xff]
          %v5068 = vld [vmem:[#allocation2 + $0x258] sm:$0xff]
          %v5069 = vld [vmem:[#allocation2 + $0x278] sm:$0xff]
          %v5070 = vld [vmem:[#allocation2 + $0x298] sm:$0xff]
          %v5071 = vld [vmem:[#allocation2 + $0x2b8] sm:$0xff]
          %v5072 = vld [vmem:[#allocation2 + $0x2d8] sm:$0xff]
          %v5073 = vld [vmem:[#allocation2 + $0x2f8] sm:$0xff]
          %v5074 = vld [vmem:[#allocation2 + $0x318] sm:$0xff]
          %v5075 = vld [vmem:[#allocation2 + $0x338] sm:$0xff]
          %v5076 = vld [vmem:[#allocation2 + $0x358] sm:$0xff]
          %v5077 = vld [vmem:[#allocation2 + $0x378] sm:$0xff]
          %v5078 = vld [vmem:[#allocation2 + $0x398] sm:$0xff]
          %v5079 = vld [vmem:[#allocation2 + $0x3b8] sm:$0xff]
          %v5080 = vld [vmem:[#allocation2 + $0x3d8] sm:$0xff]
          %v5081 = vld [vmem:[#allocation2 + $0x3f8] sm:$0xff]
          %v5082 = vld [vmem:[#allocation2 + $0x418] sm:$0xff]
          %v5083 = vld [vmem:[#allocation2 + $0x438] sm:$0xff]
          %v5084 = vld [vmem:[#allocation2 + $0x458] sm:$0xff]
          %v5085 = vld [vmem:[#allocation2 + $0x478] sm:$0xff]
          %v5086 = vld [vmem:[#allocation2 + $0x498] sm:$0xff]
          %v5087 = vld [vmem:[#allocation2 + $0x4b8] sm:$0xff]
          %v5088 = vld [vmem:[#allocation2 + $0x4d8] sm:$0xff]
          %v5089 = vld [vmem:[#allocation2 + $0x4f8] sm:$0xff]
          %v5090 = vld [vmem:[#allocation2 + $0x518] sm:$0xff]
          %v5091 = vld [vmem:[#allocation2 + $0x538] sm:$0xff]
          %v5092 = vld [vmem:[#allocation2 + $0x558] sm:$0xff]
          %v5093 = vld [vmem:[#allocation2 + $0x578] sm:$0xff]
          %v5094 = vld [vmem:[#allocation2 + $0x598] sm:$0xff]
          %v5095 = vld [vmem:[#allocation2 + $0x5b8] sm:$0xff]
          %v5096 = vld [vmem:[#allocation2 + $0x5d8] sm:$0xff]
          %v5097 = vld [vmem:[#allocation2 + $0x5f8] sm:$0xff]
          %v5098 = vld [vmem:[#allocation2 + $0x618] sm:$0xff]
          %v5099 = vld [vmem:[#allocation2 + $0x638] sm:$0xff]
          %v5100 = vld [vmem:[#allocation2 + $0x658] sm:$0xff]
          %v5101 = vld [vmem:[#allocation2 + $0x678] sm:$0xff]
          %v5102 = vld [vmem:[#allocation2 + $0x698] sm:$0xff]
          %v5103 = vld [vmem:[#allocation2 + $0x6b8] sm:$0xff]
          %v5104 = vld [vmem:[#allocation2 + $0x6d8] sm:$0xff]
          %v5105 = vld [vmem:[#allocation2 + $0x6f8] sm:$0xff]
          %v5106 = vld [vmem:[#allocation2 + $0x718] sm:$0xff]
          %v5107 = vld [vmem:[#allocation2 + $0x738] sm:$0xff]
          %v5108 = vld [vmem:[#allocation2 + $0x758] sm:$0xff]
          %v5109 = vld [vmem:[#allocation2 + $0x778] sm:$0xff]
          %v5110 = vld [vmem:[#allocation2 + $0x798] sm:$0xff]
          %v5111 = vld [vmem:[#allocation2 + $0x7b8] sm:$0xff]
          %v5112 = vld [vmem:[#allocation2 + $0x7d8] sm:$0xff]
          %v5113 = vld [vmem:[#allocation2 + $0x7f8] sm:$0xff]
          %5114 = vrot.lane.b32.xlu0 %v5050, 64
          %v5115 = vpop.permute.xlu0 %5114
          %5116 = vrot.lane.b32.xlu0 %v5051, 64
          %v5117 = vpop.permute.xlu0 %5116
          %5118 = vrot.lane.b32.xlu0 %v5052, 64
          %v5119 = vpop.permute.xlu0 %5118
          %5120 = vrot.lane.b32.xlu0 %v5053, 64
          %v5121 = vpop.permute.xlu0 %5120
          %5122 = vrot.lane.b32.xlu0 %v5054, 64
          %v5123 = vpop.permute.xlu0 %5122
          %5124 = vrot.lane.b32.xlu0 %v5055, 64
          %v5125 = vpop.permute.xlu0 %5124
          %5126 = vrot.lane.b32.xlu0 %v5056, 64
          %v5127 = vpop.permute.xlu0 %5126
          %5128 = vrot.lane.b32.xlu0 %v5057, 64
          %v5129 = vpop.permute.xlu0 %5128
          %5130 = vrot.lane.b32.xlu0 %v5058, 64
          %v5131 = vpop.permute.xlu0 %5130
          %5132 = vrot.lane.b32.xlu0 %v5059, 64
          %v5133 = vpop.permute.xlu0 %5132
          %5134 = vrot.lane.b32.xlu0 %v5060, 64
          %v5135 = vpop.permute.xlu0 %5134
          %5136 = vrot.lane.b32.xlu0 %v5061, 64
          %v5137 = vpop.permute.xlu0 %5136
          %5138 = vrot.lane.b32.xlu0 %v5062, 64
          %v5139 = vpop.permute.xlu0 %5138
          %5140 = vrot.lane.b32.xlu0 %v5063, 64
          %v5141 = vpop.permute.xlu0 %5140
          %5142 = vrot.lane.b32.xlu0 %v5064, 64
          %v5143 = vpop.permute.xlu0 %5142
          %5144 = vrot.lane.b32.xlu0 %v5065, 64
          %v5145 = vpop.permute.xlu0 %5144
          %5146 = vrot.lane.b32.xlu0 %v5066, 64
          %v5147 = vpop.permute.xlu0 %5146
          %5148 = vrot.lane.b32.xlu0 %v5067, 64
          %v5149 = vpop.permute.xlu0 %5148
          %5150 = vrot.lane.b32.xlu0 %v5068, 64
          %v5151 = vpop.permute.xlu0 %5150
          %5152 = vrot.lane.b32.xlu0 %v5069, 64
          %v5153 = vpop.permute.xlu0 %5152
          %5154 = vrot.lane.b32.xlu0 %v5070, 64
          %v5155 = vpop.permute.xlu0 %5154
          %5156 = vrot.lane.b32.xlu0 %v5071, 64
          %v5157 = vpop.permute.xlu0 %5156
          %5158 = vrot.lane.b32.xlu0 %v5072, 64
          %v5159 = vpop.permute.xlu0 %5158
          %5160 = vrot.lane.b32.xlu0 %v5073, 64
          %v5161 = vpop.permute.xlu0 %5160
          %5162 = vrot.lane.b32.xlu0 %v5074, 64
          %v5163 = vpop.permute.xlu0 %5162
          %5164 = vrot.lane.b32.xlu0 %v5075, 64
          %v5165 = vpop.permute.xlu0 %5164
          %5166 = vrot.lane.b32.xlu0 %v5076, 64
          %v5167 = vpop.permute.xlu0 %5166
          %5168 = vrot.lane.b32.xlu0 %v5077, 64
          %v5169 = vpop.permute.xlu0 %5168
          %5170 = vrot.lane.b32.xlu0 %v5078, 64
          %v5171 = vpop.permute.xlu0 %5170
          %5172 = vrot.lane.b32.xlu0 %v5079, 64
          %v5173 = vpop.permute.xlu0 %5172
          %5174 = vrot.lane.b32.xlu0 %v5080, 64
          %v5175 = vpop.permute.xlu0 %5174
          %5176 = vrot.lane.b32.xlu0 %v5081, 64
          %v5177 = vpop.permute.xlu0 %5176
          %5178 = vrot.lane.b32.xlu0 %v5082, 64
          %v5179 = vpop.permute.xlu0 %5178
          %5180 = vrot.lane.b32.xlu0 %v5083, 64
          %v5181 = vpop.permute.xlu0 %5180
          %5182 = vrot.lane.b32.xlu0 %v5084, 64
          %v5183 = vpop.permute.xlu0 %5182
          %5184 = vrot.lane.b32.xlu0 %v5085, 64
          %v5185 = vpop.permute.xlu0 %5184
          %5186 = vrot.lane.b32.xlu0 %v5086, 64
          %v5187 = vpop.permute.xlu0 %5186
          %5188 = vrot.lane.b32.xlu0 %v5087, 64
          %v5189 = vpop.permute.xlu0 %5188
          %5190 = vrot.lane.b32.xlu0 %v5088, 64
          %v5191 = vpop.permute.xlu0 %5190
          %5192 = vrot.lane.b32.xlu0 %v5089, 64
          %v5193 = vpop.permute.xlu0 %5192
          %5194 = vrot.lane.b32.xlu0 %v5090, 64
          %v5195 = vpop.permute.xlu0 %5194
          %5196 = vrot.lane.b32.xlu0 %v5091, 64
          %v5197 = vpop.permute.xlu0 %5196
          %5198 = vrot.lane.b32.xlu0 %v5092, 64
          %v5199 = vpop.permute.xlu0 %5198
          %5200 = vrot.lane.b32.xlu0 %v5093, 64
          %v5201 = vpop.permute.xlu0 %5200
          %5202 = vrot.lane.b32.xlu0 %v5094, 64
          %v5203 = vpop.permute.xlu0 %5202
          %5204 = vrot.lane.b32.xlu0 %v5095, 64
          %v5205 = vpop.permute.xlu0 %5204
          %5206 = vrot.lane.b32.xlu0 %v5096, 64
          %v5207 = vpop.permute.xlu0 %5206
          %5208 = vrot.lane.b32.xlu0 %v5097, 64
          %v5209 = vpop.permute.xlu0 %5208
          %5210 = vrot.lane.b32.xlu0 %v5098, 64
          %v5211 = vpop.permute.xlu0 %5210
          %5212 = vrot.lane.b32.xlu0 %v5099, 64
          %v5213 = vpop.permute.xlu0 %5212
          %5214 = vrot.lane.b32.xlu0 %v5100, 64
          %v5215 = vpop.permute.xlu0 %5214
          %5216 = vrot.lane.b32.xlu0 %v5101, 64
          %v5217 = vpop.permute.xlu0 %5216
          %5218 = vrot.lane.b32.xlu0 %v5102, 64
          %v5219 = vpop.permute.xlu0 %5218
          %5220 = vrot.lane.b32.xlu0 %v5103, 64
          %v5221 = vpop.permute.xlu0 %5220
          %5222 = vrot.lane.b32.xlu0 %v5104, 64
          %v5223 = vpop.permute.xlu0 %5222
          %5224 = vrot.lane.b32.xlu0 %v5105, 64
          %v5225 = vpop.permute.xlu0 %5224
          %5226 = vrot.lane.b32.xlu0 %v5106, 64
          %v5227 = vpop.permute.xlu0 %5226
          %5228 = vrot.lane.b32.xlu0 %v5107, 64
          %v5229 = vpop.permute.xlu0 %5228
          %5230 = vrot.lane.b32.xlu0 %v5108, 64
          %v5231 = vpop.permute.xlu0 %5230
          %5232 = vrot.lane.b32.xlu0 %v5109, 64
          %v5233 = vpop.permute.xlu0 %5232
          %5234 = vrot.lane.b32.xlu0 %v5110, 64
          %v5235 = vpop.permute.xlu0 %5234
          %5236 = vrot.lane.b32.xlu0 %v5111, 64
          %v5237 = vpop.permute.xlu0 %5236
          %5238 = vrot.lane.b32.xlu0 %v5112, 64
          %v5239 = vpop.permute.xlu0 %5238
          %5240 = vrot.lane.b32.xlu0 %v5113, 64
          %v5241 = vpop.permute.xlu0 %5240
          %v5242 = vmul.f32 %v5050, %v2810
          %v5243 = vmul.f32 %v5051, %v2811
          %v5244 = vmul.f32 %v5052, %v2812
          %v5245 = vmul.f32 %v5053, %v2813
          %v5246 = vmul.f32 %v5054, %v2814
          %v5247 = vmul.f32 %v5055, %v2815
          %v5248 = vmul.f32 %v5056, %v2816
          %v5249 = vmul.f32 %v5057, %v2817
          %v5250 = vmul.f32 %v5058, %v2818
          %v5251 = vmul.f32 %v5059, %v2819
          %v5252 = vmul.f32 %v5060, %v2820
          %v5253 = vmul.f32 %v5061, %v2821
          %v5254 = vmul.f32 %v5062, %v2822
          %v5255 = vmul.f32 %v5063, %v2823
          %v5256 = vmul.f32 %v5064, %v2824
          %v5257 = vmul.f32 %v5065, %v2825
          %v5258 = vmul.f32 %v5066, %v2826
          %v5259 = vmul.f32 %v5067, %v2827
          %v5260 = vmul.f32 %v5068, %v2828
          %v5261 = vmul.f32 %v5069, %v2829
          %v5262 = vmul.f32 %v5070, %v2830
          %v5263 = vmul.f32 %v5071, %v2831
          %v5264 = vmul.f32 %v5072, %v2832
          %v5265 = vmul.f32 %v5073, %v2833
          %v5266 = vmul.f32 %v5074, %v2834
          %v5267 = vmul.f32 %v5075, %v2835
          %v5268 = vmul.f32 %v5076, %v2836
          %v5269 = vmul.f32 %v5077, %v2837
          %v5270 = vmul.f32 %v5078, %v2838
          %v5271 = vmul.f32 %v5079, %v2839
          %v5272 = vmul.f32 %v5080, %v2840
          %v5273 = vmul.f32 %v5081, %v2841
          %v5274 = vmul.f32 %v5082, %v2842
          %v5275 = vmul.f32 %v5083, %v2843
          %v5276 = vmul.f32 %v5084, %v2844
          %v5277 = vmul.f32 %v5085, %v2845
          %v5278 = vmul.f32 %v5086, %v2846
          %v5279 = vmul.f32 %v5087, %v2847
          %v5280 = vmul.f32 %v5088, %v2848
          %v5281 = vmul.f32 %v5089, %v2849
          %v5282 = vmul.f32 %v5090, %v2850
          %v5283 = vmul.f32 %v5091, %v2851
          %v5284 = vmul.f32 %v5092, %v2852
          %v5285 = vmul.f32 %v5093, %v2853
          %v5286 = vmul.f32 %v5094, %v2854
          %v5287 = vmul.f32 %v5095, %v2855
          %v5288 = vmul.f32 %v5096, %v2856
          %v5289 = vmul.f32 %v5097, %v2857
          %v5290 = vmul.f32 %v5098, %v2858
          %v5291 = vmul.f32 %v5099, %v2859
          %v5292 = vmul.f32 %v5100, %v2860
          %v5293 = vmul.f32 %v5101, %v2861
          %v5294 = vmul.f32 %v5102, %v2862
          %v5295 = vmul.f32 %v5103, %v2863
          %v5296 = vmul.f32 %v5104, %v2864
          %v5297 = vmul.f32 %v5105, %v2865
          %v5298 = vmul.f32 %v5106, %v2866
          %v5299 = vmul.f32 %v5107, %v2867
          %v5300 = vmul.f32 %v5108, %v2868
          %v5301 = vmul.f32 %v5109, %v2869
          %v5302 = vmul.f32 %v5110, %v2870
          %v5303 = vmul.f32 %v5111, %v2871
          %v5304 = vmul.f32 %v5112, %v2872
          %v5305 = vmul.f32 %v5113, %v2873
          %v5306 = vmul.f32 %v5115, %v2874
          %v5307 = vmul.f32 %v5117, %v2875
          %v5308 = vmul.f32 %v5119, %v2876
          %v5309 = vmul.f32 %v5121, %v2877
          %v5310 = vmul.f32 %v5123, %v2878
          %v5311 = vmul.f32 %v5125, %v2879
          %v5312 = vmul.f32 %v5127, %v2880
          %v5313 = vmul.f32 %v5129, %v2881
          %v5314 = vmul.f32 %v5131, %v2882
          %v5315 = vmul.f32 %v5133, %v2883
          %v5316 = vmul.f32 %v5135, %v2884
          %v5317 = vmul.f32 %v5137, %v2885
          %v5318 = vmul.f32 %v5139, %v2886
          %v5319 = vmul.f32 %v5141, %v2887
          %v5320 = vmul.f32 %v5143, %v2888
          %v5321 = vmul.f32 %v5145, %v2889
          %v5322 = vmul.f32 %v5147, %v2890
          %v5323 = vmul.f32 %v5149, %v2891
          %v5324 = vmul.f32 %v5151, %v2892
          %v5325 = vmul.f32 %v5153, %v2893
          %v5326 = vmul.f32 %v5155, %v2894
          %v5327 = vmul.f32 %v5157, %v2895
          %v5328 = vmul.f32 %v5159, %v2896
          %v5329 = vmul.f32 %v5161, %v2897
          %v5330 = vmul.f32 %v5163, %v2898
          %v5331 = vmul.f32 %v5165, %v2899
          %v5332 = vmul.f32 %v5167, %v2900
          %v5333 = vmul.f32 %v5169, %v2901
          %v5334 = vmul.f32 %v5171, %v2902
          %v5335 = vmul.f32 %v5173, %v2903
          %v5336 = vmul.f32 %v5175, %v2904
          %v5337 = vmul.f32 %v5177, %v2905
          %v5338 = vmul.f32 %v5179, %v2906
          %v5339 = vmul.f32 %v5181, %v2907
          %v5340 = vmul.f32 %v5183, %v2908
          %v5341 = vmul.f32 %v5185, %v2909
          %v5342 = vmul.f32 %v5187, %v2910
          %v5343 = vmul.f32 %v5189, %v2911
          %v5344 = vmul.f32 %v5191, %v2912
          %v5345 = vmul.f32 %v5193, %v2913
          %v5346 = vmul.f32 %v5195, %v2914
          %v5347 = vmul.f32 %v5197, %v2915
          %v5348 = vmul.f32 %v5199, %v2916
          %v5349 = vmul.f32 %v5201, %v2917
          %v5350 = vmul.f32 %v5203, %v2918
          %v5351 = vmul.f32 %v5205, %v2919
          %v5352 = vmul.f32 %v5207, %v2920
          %v5353 = vmul.f32 %v5209, %v2921
          %v5354 = vmul.f32 %v5211, %v2922
          %v5355 = vmul.f32 %v5213, %v2923
          %v5356 = vmul.f32 %v5215, %v2924
          %v5357 = vmul.f32 %v5217, %v2925
          %v5358 = vmul.f32 %v5219, %v2926
          %v5359 = vmul.f32 %v5221, %v2927
          %v5360 = vmul.f32 %v5223, %v2928
          %v5361 = vmul.f32 %v5225, %v2929
          %v5362 = vmul.f32 %v5227, %v2930
          %v5363 = vmul.f32 %v5229, %v2931
          %v5364 = vmul.f32 %v5231, %v2932
          %v5365 = vmul.f32 %v5233, %v2933
          %v5366 = vmul.f32 %v5235, %v2934
          %v5367 = vmul.f32 %v5237, %v2935
          %v5368 = vmul.f32 %v5239, %v2936
          %v5369 = vmul.f32 %v5241, %v2937
          %v5370 = vadd.f32 %v5242, %v5306
          %v5371 = vadd.f32 %v5243, %v5307
          %v5372 = vadd.f32 %v5244, %v5308
          %v5373 = vadd.f32 %v5245, %v5309
          %v5374 = vadd.f32 %v5246, %v5310
          %v5375 = vadd.f32 %v5247, %v5311
          %v5376 = vadd.f32 %v5248, %v5312
          %v5377 = vadd.f32 %v5249, %v5313
          %v5378 = vadd.f32 %v5250, %v5314
          %v5379 = vadd.f32 %v5251, %v5315
          %v5380 = vadd.f32 %v5252, %v5316
          %v5381 = vadd.f32 %v5253, %v5317
          %v5382 = vadd.f32 %v5254, %v5318
          %v5383 = vadd.f32 %v5255, %v5319
          %v5384 = vadd.f32 %v5256, %v5320
          %v5385 = vadd.f32 %v5257, %v5321
          %v5386 = vadd.f32 %v5258, %v5322
          %v5387 = vadd.f32 %v5259, %v5323
          %v5388 = vadd.f32 %v5260, %v5324
          %v5389 = vadd.f32 %v5261, %v5325
          %v5390 = vadd.f32 %v5262, %v5326
          %v5391 = vadd.f32 %v5263, %v5327
          %v5392 = vadd.f32 %v5264, %v5328
          %v5393 = vadd.f32 %v5265, %v5329
          %v5394 = vadd.f32 %v5266, %v5330
          %v5395 = vadd.f32 %v5267, %v5331
          %v5396 = vadd.f32 %v5268, %v5332
          %v5397 = vadd.f32 %v5269, %v5333
          %v5398 = vadd.f32 %v5270, %v5334
          %v5399 = vadd.f32 %v5271, %v5335
          %v5400 = vadd.f32 %v5272, %v5336
          %v5401 = vadd.f32 %v5273, %v5337
          %v5402 = vadd.f32 %v5274, %v5338
          %v5403 = vadd.f32 %v5275, %v5339
          %v5404 = vadd.f32 %v5276, %v5340
          %v5405 = vadd.f32 %v5277, %v5341
          %v5406 = vadd.f32 %v5278, %v5342
          %v5407 = vadd.f32 %v5279, %v5343
          %v5408 = vadd.f32 %v5280, %v5344
          %v5409 = vadd.f32 %v5281, %v5345
          %v5410 = vadd.f32 %v5282, %v5346
          %v5411 = vadd.f32 %v5283, %v5347
          %v5412 = vadd.f32 %v5284, %v5348
          %v5413 = vadd.f32 %v5285, %v5349
          %v5414 = vadd.f32 %v5286, %v5350
          %v5415 = vadd.f32 %v5287, %v5351
          %v5416 = vadd.f32 %v5288, %v5352
          %v5417 = vadd.f32 %v5289, %v5353
          %v5418 = vadd.f32 %v5290, %v5354
          %v5419 = vadd.f32 %v5291, %v5355
          %v5420 = vadd.f32 %v5292, %v5356
          %v5421 = vadd.f32 %v5293, %v5357
          %v5422 = vadd.f32 %v5294, %v5358
          %v5423 = vadd.f32 %v5295, %v5359
          %v5424 = vadd.f32 %v5296, %v5360
          %v5425 = vadd.f32 %v5297, %v5361
          %v5426 = vadd.f32 %v5298, %v5362
          %v5427 = vadd.f32 %v5299, %v5363
          %v5428 = vadd.f32 %v5300, %v5364
          %v5429 = vadd.f32 %v5301, %v5365
          %v5430 = vadd.f32 %v5302, %v5366
          %v5431 = vadd.f32 %v5303, %v5367
          %v5432 = vadd.f32 %v5304, %v5368
          %v5433 = vadd.f32 %v5305, %v5369
          %v5434 = vpack.c.bf16 %v5371, %v5370
          %v5435 = vpack.c.bf16 %v5373, %v5372
          %v5436 = vpack.c.bf16 %v5375, %v5374
          %v5437 = vpack.c.bf16 %v5377, %v5376
          %v5438 = vpack.c.bf16 %v5379, %v5378
          %v5439 = vpack.c.bf16 %v5381, %v5380
          %v5440 = vpack.c.bf16 %v5383, %v5382
          %v5441 = vpack.c.bf16 %v5385, %v5384
          %v5442 = vpack.c.bf16 %v5387, %v5386
          %v5443 = vpack.c.bf16 %v5389, %v5388
          %v5444 = vpack.c.bf16 %v5391, %v5390
          %v5445 = vpack.c.bf16 %v5393, %v5392
          %v5446 = vpack.c.bf16 %v5395, %v5394
          %v5447 = vpack.c.bf16 %v5397, %v5396
          %v5448 = vpack.c.bf16 %v5399, %v5398
          %v5449 = vpack.c.bf16 %v5401, %v5400
          %v5450 = vpack.c.bf16 %v5403, %v5402
          %v5451 = vpack.c.bf16 %v5405, %v5404
          %v5452 = vpack.c.bf16 %v5407, %v5406
          %v5453 = vpack.c.bf16 %v5409, %v5408
          %v5454 = vpack.c.bf16 %v5411, %v5410
          %v5455 = vpack.c.bf16 %v5413, %v5412
          %v5456 = vpack.c.bf16 %v5415, %v5414
          %v5457 = vpack.c.bf16 %v5417, %v5416
          %v5458 = vpack.c.bf16 %v5419, %v5418
          %v5459 = vpack.c.bf16 %v5421, %v5420
          %v5460 = vpack.c.bf16 %v5423, %v5422
          %v5461 = vpack.c.bf16 %v5425, %v5424
          %v5462 = vpack.c.bf16 %v5427, %v5426
          %v5463 = vpack.c.bf16 %v5429, %v5428
          %v5464 = vpack.c.bf16 %v5431, %v5430
          %v5465 = vpack.c.bf16 %v5433, %v5432
          %v5498 = vunpack.c.l.b16 %v5434
          %v5499 = vunpack.c.h.b16 %v5434
          %v5500 = vunpack.c.l.b16 %v5435
          %v5501 = vunpack.c.h.b16 %v5435
          %v5502 = vunpack.c.l.b16 %v5436
          %v5503 = vunpack.c.h.b16 %v5436
          %v5504 = vunpack.c.l.b16 %v5437
          %v5505 = vunpack.c.h.b16 %v5437
          %v5506 = vunpack.c.l.b16 %v5438
          %v5507 = vunpack.c.h.b16 %v5438
          %v5508 = vunpack.c.l.b16 %v5439
          %v5509 = vunpack.c.h.b16 %v5439
          %v5510 = vunpack.c.l.b16 %v5440
          %v5511 = vunpack.c.h.b16 %v5440
          %v5512 = vunpack.c.l.b16 %v5441
          %v5513 = vunpack.c.h.b16 %v5441
          %v5514 = vunpack.c.l.b16 %v5442
          %v5515 = vunpack.c.h.b16 %v5442
          %v5516 = vunpack.c.l.b16 %v5443
          %v5517 = vunpack.c.h.b16 %v5443
          %v5518 = vunpack.c.l.b16 %v5444
          %v5519 = vunpack.c.h.b16 %v5444
          %v5520 = vunpack.c.l.b16 %v5445
          %v5521 = vunpack.c.h.b16 %v5445
          %v5522 = vunpack.c.l.b16 %v5446
          %v5523 = vunpack.c.h.b16 %v5446
          %v5524 = vunpack.c.l.b16 %v5447
          %v5525 = vunpack.c.h.b16 %v5447
          %v5526 = vunpack.c.l.b16 %v5448
          %v5527 = vunpack.c.h.b16 %v5448
          %v5528 = vunpack.c.l.b16 %v5449
          %v5529 = vunpack.c.h.b16 %v5449
          %v5530 = vunpack.c.l.b16 %v5450
          %v5531 = vunpack.c.h.b16 %v5450
          %v5532 = vunpack.c.l.b16 %v5451
          %v5533 = vunpack.c.h.b16 %v5451
          %v5534 = vunpack.c.l.b16 %v5452
          %v5535 = vunpack.c.h.b16 %v5452
          %v5536 = vunpack.c.l.b16 %v5453
          %v5537 = vunpack.c.h.b16 %v5453
          %v5538 = vunpack.c.l.b16 %v5454
          %v5539 = vunpack.c.h.b16 %v5454
          %v5540 = vunpack.c.l.b16 %v5455
          %v5541 = vunpack.c.h.b16 %v5455
          %v5542 = vunpack.c.l.b16 %v5456
          %v5543 = vunpack.c.h.b16 %v5456
          %v5544 = vunpack.c.l.b16 %v5457
          %v5545 = vunpack.c.h.b16 %v5457
          %v5546 = vunpack.c.l.b16 %v5458
          %v5547 = vunpack.c.h.b16 %v5458
          %v5548 = vunpack.c.l.b16 %v5459
          %v5549 = vunpack.c.h.b16 %v5459
          %v5550 = vunpack.c.l.b16 %v5460
          %v5551 = vunpack.c.h.b16 %v5460
          %v5552 = vunpack.c.l.b16 %v5461
          %v5553 = vunpack.c.h.b16 %v5461
          %v5554 = vunpack.c.l.b16 %v5462
          %v5555 = vunpack.c.h.b16 %v5462
          %v5556 = vunpack.c.l.b16 %v5463
          %v5557 = vunpack.c.h.b16 %v5463
          %v5558 = vunpack.c.l.b16 %v5464
          %v5559 = vunpack.c.h.b16 %v5464
          %v5560 = vunpack.c.l.b16 %v5465
          %v5561 = vunpack.c.h.b16 %v5465
          %v5562 = vpack.c.b16 %v5498, %v5498
          %v5563 = vpack.c.b16 %v5499, %v5499
          %v5564 = vpack.c.b16 %v5500, %v5500
          %v5565 = vpack.c.b16 %v5501, %v5501
          %v5566 = vpack.c.b16 %v5502, %v5502
          %v5567 = vpack.c.b16 %v5503, %v5503
          %v5568 = vpack.c.b16 %v5504, %v5504
          %v5569 = vpack.c.b16 %v5505, %v5505
          %v5570 = vpack.c.b16 %v5506, %v5506
          %v5571 = vpack.c.b16 %v5507, %v5507
          %v5572 = vpack.c.b16 %v5508, %v5508
          %v5573 = vpack.c.b16 %v5509, %v5509
          %v5574 = vpack.c.b16 %v5510, %v5510
          %v5575 = vpack.c.b16 %v5511, %v5511
          %v5576 = vpack.c.b16 %v5512, %v5512
          %v5577 = vpack.c.b16 %v5513, %v5513
          %v5578 = vpack.c.b16 %v5514, %v5514
          %v5579 = vpack.c.b16 %v5515, %v5515
          %v5580 = vpack.c.b16 %v5516, %v5516
          %v5581 = vpack.c.b16 %v5517, %v5517
          %v5582 = vpack.c.b16 %v5518, %v5518
          %v5583 = vpack.c.b16 %v5519, %v5519
          %v5584 = vpack.c.b16 %v5520, %v5520
          %v5585 = vpack.c.b16 %v5521, %v5521
          %v5586 = vpack.c.b16 %v5522, %v5522
          %v5587 = vpack.c.b16 %v5523, %v5523
          %v5588 = vpack.c.b16 %v5524, %v5524
          %v5589 = vpack.c.b16 %v5525, %v5525
          %v5590 = vpack.c.b16 %v5526, %v5526
          %v5591 = vpack.c.b16 %v5527, %v5527
          %v5592 = vpack.c.b16 %v5528, %v5528
          %v5593 = vpack.c.b16 %v5529, %v5529
          %v5594 = vpack.c.b16 %v5530, %v5530
          %v5595 = vpack.c.b16 %v5531, %v5531
          %v5596 = vpack.c.b16 %v5532, %v5532
          %v5597 = vpack.c.b16 %v5533, %v5533
          %v5598 = vpack.c.b16 %v5534, %v5534
          %v5599 = vpack.c.b16 %v5535, %v5535
          %v5600 = vpack.c.b16 %v5536, %v5536
          %v5601 = vpack.c.b16 %v5537, %v5537
          %v5602 = vpack.c.b16 %v5538, %v5538
          %v5603 = vpack.c.b16 %v5539, %v5539
          %v5604 = vpack.c.b16 %v5540, %v5540
          %v5605 = vpack.c.b16 %v5541, %v5541
          %v5606 = vpack.c.b16 %v5542, %v5542
          %v5607 = vpack.c.b16 %v5543, %v5543
          %v5608 = vpack.c.b16 %v5544, %v5544
          %v5609 = vpack.c.b16 %v5545, %v5545
          %v5610 = vpack.c.b16 %v5546, %v5546
          %v5611 = vpack.c.b16 %v5547, %v5547
          %v5612 = vpack.c.b16 %v5548, %v5548
          %v5613 = vpack.c.b16 %v5549, %v5549
          %v5614 = vpack.c.b16 %v5550, %v5550
          %v5615 = vpack.c.b16 %v5551, %v5551
          %v5616 = vpack.c.b16 %v5552, %v5552
          %v5617 = vpack.c.b16 %v5553, %v5553
          %v5618 = vpack.c.b16 %v5554, %v5554
          %v5619 = vpack.c.b16 %v5555, %v5555
          %v5620 = vpack.c.b16 %v5556, %v5556
          %v5621 = vpack.c.b16 %v5557, %v5557
          %v5622 = vpack.c.b16 %v5558, %v5558
          %v5623 = vpack.c.b16 %v5559, %v5559
          %v5624 = vpack.c.b16 %v5560, %v5560
          %v5625 = vpack.c.b16 %v5561, %v5561
          %5690 = vst [vmem:[%s298 + $0xc] sm:$0xf] %v5562
          %5691 = vst [vmem:[%s298 + $0x1c] sm:$0xf] %v5563
          %5692 = vst [vmem:[%s298 + $0x2c] sm:$0xf] %v5564
          %5693 = vst [vmem:[%s298 + $0x3c] sm:$0xf] %v5565
          %5694 = vst [vmem:[%s298 + $0x4c] sm:$0xf] %v5566
          %5695 = vst [vmem:[%s298 + $0x5c] sm:$0xf] %v5567
          %5696 = vst [vmem:[%s298 + $0x6c] sm:$0xf] %v5568
          %5697 = vst [vmem:[%s298 + $0x7c] sm:$0xf] %v5569
          %5698 = vst [vmem:[%s298 + $0x8c] sm:$0xf] %v5570
          %5699 = vst [vmem:[%s298 + $0x9c] sm:$0xf] %v5571
          %5700 = vst [vmem:[%s298 + $0xac] sm:$0xf] %v5572
          %5701 = vst [vmem:[%s298 + $0xbc] sm:$0xf] %v5573
          %5702 = vst [vmem:[%s298 + $0xcc] sm:$0xf] %v5574
          %5703 = vst [vmem:[%s298 + $0xdc] sm:$0xf] %v5575
          %5704 = vst [vmem:[%s298 + $0xec] sm:$0xf] %v5576
          %5705 = vst [vmem:[%s298 + $0xfc] sm:$0xf] %v5577
          %5706 = vst [vmem:[%s298 + $0x10c] sm:$0xf] %v5578
          %5707 = vst [vmem:[%s298 + $0x11c] sm:$0xf] %v5579
          %5708 = vst [vmem:[%s298 + $0x12c] sm:$0xf] %v5580
          %5709 = vst [vmem:[%s298 + $0x13c] sm:$0xf] %v5581
          %5710 = vst [vmem:[%s298 + $0x14c] sm:$0xf] %v5582
          %5711 = vst [vmem:[%s298 + $0x15c] sm:$0xf] %v5583
          %5712 = vst [vmem:[%s298 + $0x16c] sm:$0xf] %v5584
          %5713 = vst [vmem:[%s298 + $0x17c] sm:$0xf] %v5585
          %5714 = vst [vmem:[%s298 + $0x18c] sm:$0xf] %v5586
          %5715 = vst [vmem:[%s298 + $0x19c] sm:$0xf] %v5587
          %5716 = vst [vmem:[%s298 + $0x1ac] sm:$0xf] %v5588
          %5717 = vst [vmem:[%s298 + $0x1bc] sm:$0xf] %v5589
          %5718 = vst [vmem:[%s298 + $0x1cc] sm:$0xf] %v5590
          %5719 = vst [vmem:[%s298 + $0x1dc] sm:$0xf] %v5591
          %5720 = vst [vmem:[%s298 + $0x1ec] sm:$0xf] %v5592
          %5721 = vst [vmem:[%s298 + $0x1fc] sm:$0xf] %v5593
          %5722 = vst [vmem:[%s298 + $0x20c] sm:$0xf] %v5594
          %5723 = vst [vmem:[%s298 + $0x21c] sm:$0xf] %v5595
          %5724 = vst [vmem:[%s298 + $0x22c] sm:$0xf] %v5596
          %5725 = vst [vmem:[%s298 + $0x23c] sm:$0xf] %v5597
          %5726 = vst [vmem:[%s298 + $0x24c] sm:$0xf] %v5598
          %5727 = vst [vmem:[%s298 + $0x25c] sm:$0xf] %v5599
          %5728 = vst [vmem:[%s298 + $0x26c] sm:$0xf] %v5600
          %5729 = vst [vmem:[%s298 + $0x27c] sm:$0xf] %v5601
          %5730 = vst [vmem:[%s298 + $0x28c] sm:$0xf] %v5602
          %5731 = vst [vmem:[%s298 + $0x29c] sm:$0xf] %v5603
          %5732 = vst [vmem:[%s298 + $0x2ac] sm:$0xf] %v5604
          %5733 = vst [vmem:[%s298 + $0x2bc] sm:$0xf] %v5605
          %5734 = vst [vmem:[%s298 + $0x2cc] sm:$0xf] %v5606
          %5735 = vst [vmem:[%s298 + $0x2dc] sm:$0xf] %v5607
          %5736 = vst [vmem:[%s298 + $0x2ec] sm:$0xf] %v5608
          %5737 = vst [vmem:[%s298 + $0x2fc] sm:$0xf] %v5609
          %5738 = vst [vmem:[%s298 + $0x30c] sm:$0xf] %v5610
          %5739 = vst [vmem:[%s298 + $0x31c] sm:$0xf] %v5611
          %5740 = vst [vmem:[%s298 + $0x32c] sm:$0xf] %v5612
          %5741 = vst [vmem:[%s298 + $0x33c] sm:$0xf] %v5613
          %5742 = vst [vmem:[%s298 + $0x34c] sm:$0xf] %v5614
          %5743 = vst [vmem:[%s298 + $0x35c] sm:$0xf] %v5615
          %5744 = vst [vmem:[%s298 + $0x36c] sm:$0xf] %v5616
          %5745 = vst [vmem:[%s298 + $0x37c] sm:$0xf] %v5617
          %5746 = vst [vmem:[%s298 + $0x38c] sm:$0xf] %v5618
          %5747 = vst [vmem:[%s298 + $0x39c] sm:$0xf] %v5619
          %5748 = vst [vmem:[%s298 + $0x3ac] sm:$0xf] %v5620
          %5749 = vst [vmem:[%s298 + $0x3bc] sm:$0xf] %v5621
          %5750 = vst [vmem:[%s298 + $0x3cc] sm:$0xf] %v5622
          %5751 = vst [vmem:[%s298 + $0x3dc] sm:$0xf] %v5623
          %5752 = vst [vmem:[%s298 + $0x3ec] sm:$0xf] %v5624
          %5753 = vst [vmem:[%s298 + $0x3fc] sm:$0xf] %v5625
        $region60: #{tpu_custom_call.1} parent=35 // pred_fallthru
          _
        %s5754 = sand.u32 %s150, 1
        %s5755 = scalar_lea.sflag [#allocation5], %s5754
        %s5756 = sand.u32 %s150, 1
        %s5757 = smul.addr %s5756, 1024
        %s5758 = scalar_lea.vmem [#allocation11], %s5757
        // Predicated region
        $region61: #{tpu_custom_call.1} parent=35 // pred_check
          %p5759 = pneg %p160
        $region62: #{tpu_custom_call.1} parent=35 // pred_check_branch
          %5761 = sbr.rel (%p5759) target = $region64
        $region63: #{tpu_custom_call.1} parent=35 // pred_region
          %s5762 = smul.u32 64, %s28
          %s5763 = smul.u32 4, %s29
          %s5765 = ssub.s32 16384, 16384
          %5766 = vsyncadd %s5755, %s5765
          %s5767 = smul.addr %s5762, 4
          %s5768 = sadd.s32 %s5763, %s5767
          %s5769 = smul.addr %s5768, 64
          %s5770 = scalar_lea.hbm %s4, %s5769
          %s5771 = sshll.u32 %s5758, 4
          %s5772 = int_to_ptr.vmem [resolvable:$true] %s5771
          %5777 = dma.vmem_to_hbm [thread:$0]  %s5772, 16384, %s5770, %s5755, 256, 256, 16
        $region64: #{tpu_custom_call.1} parent=35 // pred_fallthru
          _
      $region36: #{tpu_custom_call.1} parent=5 // pred_fallthru
        _
      %p5778 = scmp.le.s32.totalorder 2, %s18
      // Predicated region
      $region65: #{tpu_custom_call.1} parent=5 // pred_check
        %p5779 = pneg %p5778
      $region66: #{tpu_custom_call.1} parent=5 // pred_check_branch
        %5781 = sbr.rel (%p5779) target = $region68
      $region67: #{tpu_custom_call.1} parent=5 // pred_region
        %s5782 = ssub.s32 %s18, 2
        // Predicated region
        $region69: #{tpu_custom_call.1} parent=67 // pred_check
          %p5783 = pneg %p166
        $region70: #{tpu_custom_call.1} parent=67 // pred_check_branch
          %5785 = sbr.rel (%p5783) target = $region72
        $region71: #{tpu_custom_call.1} parent=67 // pred_region
          %s5786 = sand.u32 %s151, 1
          %s5787 = scalar_lea.sflag [#allocation5], %s5786
          %s5788 = sand.u32 %s151, 1
          %s5789 = smul.addr %s5788, 1024
          %s5790 = scalar_lea.vmem [#allocation11], %s5789
          %5791 = dma.done %s5787, 16384
        $region72: #{tpu_custom_call.1} parent=67 // pred_fallthru
          _
      $region68: #{tpu_custom_call.1} parent=5 // pred_fallthru
        _
    $region6: #{tpu_custom_call.1} parent=1 // loop_footer
      %s22 = sadd.s32 1, %s18
    $region7: #{tpu_custom_call.1} parent=1 // loop_footer_branch
      %17 = sbr.rel target = $region3
    $region8: #{tpu_custom_call.1} parent=1 // loop_exit
      _
    %5792 = vsyncpa [#allocation4], 1
    %s5793 = scalar_lea.sflag [#allocation4], 1
    %5794 = vsyncpa %s5793, 1
    %5795 = vsyncpa [#allocation7], 1
    %5796 = vsyncpa [#allocation10], 1
    %5797 = vsyncpa [#allocation5], 1
    %s5798 = scalar_lea.sflag [#allocation5], 1
    %5799 = vsyncpa %s5798, 1

</llo_original>
